<compile_context>
chip_gen: v7x
topology: tpu7x:2x2x1
jax: 0.10.0
libtpu: 0.0.40
codegen_flags: <defaults>
</compile_context>

<pallas_src>
import jax
import jax.numpy as jnp
from jax.experimental import pallas as pl
from jax.experimental.pallas import tpu as pltpu


def _round_up(n, m):
    return ((n + m - 1) // m) * m


def downsample_forward(x, w, *, tile_rows=512, compute_dtype=jnp.float32):
    """Downsample forward.

    x: (B, Cin, H, W) float32, NCHW (PyTorch layout).
    w: (Cout, Cin, 3, 3) float32 conv weight (Cout = Cin // 2, no bias).
    returns: (B, 4*Cout, H//2, W//2) float32, NCHW (PyTorch layout).
    """
    B, Cin, H, W = x.shape
    Cout = w.shape[0]
    assert w.shape == (Cout, Cin, 3, 3)
    assert H % 2 == 0 and W % 2 == 0

    WP = W + 2                      # padded width
    M = H * WP                      # rows of the padded-width output grid we compute
    S = 2 * WP + 2                  # largest flattened tap shift (dy=2, dx=2)
    TM = min(_round_up(M, 8), _round_up(tile_rows, 8))
    T = -(-M // TM)                 # output row tiles per batch
    n_rows = T * TM
    Npad = n_rows + S               # input slab rows (always >= (H+2)*(W+2))

    # ---- glue: NCHW -> channel-last, zero-pad spatial halo, flatten rows ----
    xh = jnp.transpose(x, (0, 2, 3, 1))                        # (B, H, W, Cin)
    xh = jnp.pad(xh, ((0, 0), (1, 1), (1, 1), (0, 0)))         # (B, H+2, W+2, Cin)
    xf = xh.reshape(B, (H + 2) * WP, Cin)
    xf = jnp.pad(xf, ((0, 0), (0, Npad - (H + 2) * WP), (0, 0)))
    xf = xf.astype(compute_dtype)

    # Conv weight -> (9, Cin, Cout): tap-major, Cout on lanes (no in-kernel .T).
    wt = jnp.transpose(w, (2, 3, 1, 0)).reshape(9, Cin, Cout).astype(compute_dtype)

    # TODO(synk): for very large H*W where the per-batch padded slab (Npad*Cin*4B,
    # double-buffered) no longer fits VMEM (notably v7x's 64 MiB), switch the input
    # to halo-duplicated row tiles or a manual make_async_copy pipeline.
    def conv_kernel(x_ref, w_ref, o_ref):
        # x_ref: (Npad, Cin) padded slab for this batch (VMEM-resident across the
        #        row-tile axis), w_ref: (9, Cin, Cout), o_ref: (TM, Cout) tile.
        base = pl.multiple_of(pl.program_id(1) * TM, TM)
        acc = jnp.zeros((TM, Cout), jnp.float32)
        for dy in range(3):
            for dx in range(3):
                shift = dy * WP + dx                        # static tap offset
                win = x_ref[pl.ds(base + shift, TM), :]     # contiguous row window
                acc = acc + jnp.dot(win, w_ref[dy * 3 + dx],
                                    preferred_element_type=jnp.float32)
        o_ref[...] = acc

    out = pl.pallas_call(
        conv_kernel,
        grid=(B, T),
        in_specs=[
            pl.BlockSpec((None, Npad, Cin), lambda b, t: (b, 0, 0)),
            pl.BlockSpec((9, Cin, Cout), lambda b, t: (0, 0, 0)),
        ],
        out_specs=pl.BlockSpec((None, TM, Cout), lambda b, t: (b, t, 0)),
        out_shape=jax.ShapeDtypeStruct((B, n_rows, Cout), jnp.float32),
        compiler_params=pltpu.CompilerParams(
            dimension_semantics=("parallel", "arbitrary")),
    )(xf, wt)

    # ---- glue: crop valid region, PixelUnshuffle(2) + back to NCHW ----
    conv = out[:, :M, :].reshape(B, H, WP, Cout)[:, :, :W, :]   # (B, H, W, Cout)
    y = conv.reshape(B, H // 2, 2, W // 2, 2, Cout)
    y = jnp.transpose(y, (0, 5, 2, 4, 1, 3))                    # (B, Cout, 2, 2, H/2, W/2)
    return y.reshape(B, Cout * 4, H // 2, W // 2)               # channel = c*4 + r*2 + s


if __name__ == "__main__":
    B, n_feat, H, W = 2, 32, 16, 16
    key = jax.random.PRNGKey(0)
    kx, kw = jax.random.split(key)
    x = jax.random.normal(kx, (B, n_feat, H, W), jnp.float32)
    w = 0.1 * jax.random.normal(kw, (n_feat // 2, n_feat, 3, 3), jnp.float32)

    fwd = jax.jit(downsample_forward)
    out = jax.block_until_ready(fwd(x, w))
    assert out.shape == (B, 2 * n_feat, H // 2, W // 2), out.shape
    assert bool(jnp.all(jnp.isfinite(out)))

    # Pure-JAX reference: conv3x3 (pad=1, no bias) + pixel_unshuffle(2), NCHW.
    Cout = n_feat // 2
    ref_conv = jax.lax.conv_general_dilated(
        x, w, window_strides=(1, 1), padding=((1, 1), (1, 1)),
        dimension_numbers=("NCHW", "OIHW", "NCHW"))
    ref = ref_conv.reshape(B, Cout, H // 2, 2, W // 2, 2)
    ref = jnp.transpose(ref, (0, 1, 3, 5, 2, 4)).reshape(B, 4 * Cout, H // 2, W // 2)

    err = float(jnp.max(jnp.abs(out - ref)))
    assert err < 5e-2, f"max abs err {err}"
    print("KERNEL_OK")
</pallas_src>

<mosaic_0001>
module attributes {stable_mosaic.version = 11 : i64} {
  func.func @conv_kernel(%arg0: i32, %arg1: i32, %arg2: memref<1x326x32xf32, #tpu.memory_space<vmem>>, %arg3: memref<9x32x16xf32, #tpu.memory_space<vmem>>, %arg4: memref<1x288x16xf32, #tpu.memory_space<vmem>>) attributes {dimension_semantics = [#tpu.dimension_semantics<parallel>, #tpu.dimension_semantics<arbitrary>], iteration_bounds = array<i64: 2, 1>, scalar_prefetch = 0 : i64, scratch_operands = 0 : i64, tpu.core_type = #tpu.core_type<tc>, window_params = [{transform_indices = @transform_0, window_bounds = array<i64: 1, 326, 32>}, {pipeline_mode = #tpu.pipeline_mode<synchronous>, transform_indices = @transform_1, window_bounds = array<i64: 9, 32, 16>}, {transform_indices = @transform_2, window_bounds = array<i64: 1, 288, 16>}]} {
    %c288_i32 = arith.constant 288 : i32
    %0 = arith.muli %arg1, %c288_i32 : i32
    %1 = tpu.assume_multiple %0, 288 : i32
    %cst = arith.constant 0.000000e+00 : f32
    %2 = vector.broadcast %cst : f32 to vector<288x16xf32>
    %c0_i32 = arith.constant 0 : i32
    %3 = arith.addi %1, %c0_i32 : i32
    %c0 = arith.constant 0 : index
    %4 = arith.index_cast %3 : i32 to index
    %c0_0 = arith.constant 0 : index
    %5 = vector.load %arg2[%c0, %4, %c0_0] : memref<1x326x32xf32, #tpu.memory_space<vmem>>, vector<1x288x32xf32>
    %6 = vector.shape_cast %5 : vector<1x288x32xf32> to vector<288x32xf32>
    %c0_1 = arith.constant 0 : index
    %c0_2 = arith.constant 0 : index
    %c0_3 = arith.constant 0 : index
    %7 = vector.load %arg3[%c0_1, %c0_2, %c0_3] : memref<9x32x16xf32, #tpu.memory_space<vmem>>, vector<1x32x16xf32>
    %8 = vector.shape_cast %7 : vector<1x32x16xf32> to vector<32x16xf32>
    %cst_4 = arith.constant dense<0.000000e+00> : vector<288x16xf32>
    %9 = tpu.matmul %6, %8, %cst_4 {dimension_numbers = #tpu.dot_dimension_numbers<[1], [0], [0], [1], [0, 0, 1, 1], [], []>} : vector<288x32xf32>, vector<32x16xf32>, vector<288x16xf32> -> vector<288x16xf32>
    %10 = arith.addf %2, %9 : vector<288x16xf32>
    %c1_i32 = arith.constant 1 : i32
    %11 = arith.addi %1, %c1_i32 : i32
    %c0_5 = arith.constant 0 : index
    %12 = arith.index_cast %11 : i32 to index
    %c0_6 = arith.constant 0 : index
    %13 = vector.load %arg2[%c0_5, %12, %c0_6] : memref<1x326x32xf32, #tpu.memory_space<vmem>>, vector<1x288x32xf32>
    %14 = vector.shape_cast %13 : vector<1x288x32xf32> to vector<288x32xf32>
    %c1 = arith.constant 1 : index
    %c0_7 = arith.constant 0 : index
    %c0_8 = arith.constant 0 : index
    %15 = vector.load %arg3[%c1, %c0_7, %c0_8] : memref<9x32x16xf32, #tpu.memory_space<vmem>>, vector<1x32x16xf32>
    %16 = vector.shape_cast %15 : vector<1x32x16xf32> to vector<32x16xf32>
    %cst_9 = arith.constant dense<0.000000e+00> : vector<288x16xf32>
    %17 = tpu.matmul %14, %16, %cst_9 {dimension_numbers = #tpu.dot_dimension_numbers<[1], [0], [0], [1], [0, 0, 1, 1], [], []>} : vector<288x32xf32>, vector<32x16xf32>, vector<288x16xf32> -> vector<288x16xf32>
    %18 = arith.addf %10, %17 : vector<288x16xf32>
    %c2_i32 = arith.constant 2 : i32
    %19 = arith.addi %1, %c2_i32 : i32
    %c0_10 = arith.constant 0 : index
    %20 = arith.index_cast %19 : i32 to index
    %c0_11 = arith.constant 0 : index
    %21 = vector.load %arg2[%c0_10, %20, %c0_11] : memref<1x326x32xf32, #tpu.memory_space<vmem>>, vector<1x288x32xf32>
    %22 = vector.shape_cast %21 : vector<1x288x32xf32> to vector<288x32xf32>
    %c2 = arith.constant 2 : index
    %c0_12 = arith.constant 0 : index
    %c0_13 = arith.constant 0 : index
    %23 = vector.load %arg3[%c2, %c0_12, %c0_13] : memref<9x32x16xf32, #tpu.memory_space<vmem>>, vector<1x32x16xf32>
    %24 = vector.shape_cast %23 : vector<1x32x16xf32> to vector<32x16xf32>
    %cst_14 = arith.constant dense<0.000000e+00> : vector<288x16xf32>
    %25 = tpu.matmul %22, %24, %cst_14 {dimension_numbers = #tpu.dot_dimension_numbers<[1], [0], [0], [1], [0, 0, 1, 1], [], []>} : vector<288x32xf32>, vector<32x16xf32>, vector<288x16xf32> -> vector<288x16xf32>
    %26 = arith.addf %18, %25 : vector<288x16xf32>
    %c18_i32 = arith.constant 18 : i32
    %27 = arith.addi %1, %c18_i32 : i32
    %c0_15 = arith.constant 0 : index
    %28 = arith.index_cast %27 : i32 to index
    %c0_16 = arith.constant 0 : index
    %29 = vector.load %arg2[%c0_15, %28, %c0_16] : memref<1x326x32xf32, #tpu.memory_space<vmem>>, vector<1x288x32xf32>
    %30 = vector.shape_cast %29 : vector<1x288x32xf32> to vector<288x32xf32>
    %c3 = arith.constant 3 : index
    %c0_17 = arith.constant 0 : index
    %c0_18 = arith.constant 0 : index
    %31 = vector.load %arg3[%c3, %c0_17, %c0_18] : memref<9x32x16xf32, #tpu.memory_space<vmem>>, vector<1x32x16xf32>
    %32 = vector.shape_cast %31 : vector<1x32x16xf32> to vector<32x16xf32>
    %cst_19 = arith.constant dense<0.000000e+00> : vector<288x16xf32>
    %33 = tpu.matmul %30, %32, %cst_19 {dimension_numbers = #tpu.dot_dimension_numbers<[1], [0], [0], [1], [0, 0, 1, 1], [], []>} : vector<288x32xf32>, vector<32x16xf32>, vector<288x16xf32> -> vector<288x16xf32>
    %34 = arith.addf %26, %33 : vector<288x16xf32>
    %c19_i32 = arith.constant 19 : i32
    %35 = arith.addi %1, %c19_i32 : i32
    %c0_20 = arith.constant 0 : index
    %36 = arith.index_cast %35 : i32 to index
    %c0_21 = arith.constant 0 : index
    %37 = vector.load %arg2[%c0_20, %36, %c0_21] : memref<1x326x32xf32, #tpu.memory_space<vmem>>, vector<1x288x32xf32>
    %38 = vector.shape_cast %37 : vector<1x288x32xf32> to vector<288x32xf32>
    %c4 = arith.constant 4 : index
    %c0_22 = arith.constant 0 : index
    %c0_23 = arith.constant 0 : index
    %39 = vector.load %arg3[%c4, %c0_22, %c0_23] : memref<9x32x16xf32, #tpu.memory_space<vmem>>, vector<1x32x16xf32>
    %40 = vector.shape_cast %39 : vector<1x32x16xf32> to vector<32x16xf32>
    %cst_24 = arith.constant dense<0.000000e+00> : vector<288x16xf32>
    %41 = tpu.matmul %38, %40, %cst_24 {dimension_numbers = #tpu.dot_dimension_numbers<[1], [0], [0], [1], [0, 0, 1, 1], [], []>} : vector<288x32xf32>, vector<32x16xf32>, vector<288x16xf32> -> vector<288x16xf32>
    %42 = arith.addf %34, %41 : vector<288x16xf32>
    %c20_i32 = arith.constant 20 : i32
    %43 = arith.addi %1, %c20_i32 : i32
    %c0_25 = arith.constant 0 : index
    %44 = arith.index_cast %43 : i32 to index
    %c0_26 = arith.constant 0 : index
    %45 = vector.load %arg2[%c0_25, %44, %c0_26] : memref<1x326x32xf32, #tpu.memory_space<vmem>>, vector<1x288x32xf32>
    %46 = vector.shape_cast %45 : vector<1x288x32xf32> to vector<288x32xf32>
    %c5 = arith.constant 5 : index
    %c0_27 = arith.constant 0 : index
    %c0_28 = arith.constant 0 : index
    %47 = vector.load %arg3[%c5, %c0_27, %c0_28] : memref<9x32x16xf32, #tpu.memory_space<vmem>>, vector<1x32x16xf32>
    %48 = vector.shape_cast %47 : vector<1x32x16xf32> to vector<32x16xf32>
    %cst_29 = arith.constant dense<0.000000e+00> : vector<288x16xf32>
    %49 = tpu.matmul %46, %48, %cst_29 {dimension_numbers = #tpu.dot_dimension_numbers<[1], [0], [0], [1], [0, 0, 1, 1], [], []>} : vector<288x32xf32>, vector<32x16xf32>, vector<288x16xf32> -> vector<288x16xf32>
    %50 = arith.addf %42, %49 : vector<288x16xf32>
    %c36_i32 = arith.constant 36 : i32
    %51 = arith.addi %1, %c36_i32 : i32
    %c0_30 = arith.constant 0 : index
    %52 = arith.index_cast %51 : i32 to index
    %c0_31 = arith.constant 0 : index
    %53 = vector.load %arg2[%c0_30, %52, %c0_31] : memref<1x326x32xf32, #tpu.memory_space<vmem>>, vector<1x288x32xf32>
    %54 = vector.shape_cast %53 : vector<1x288x32xf32> to vector<288x32xf32>
    %c6 = arith.constant 6 : index
    %c0_32 = arith.constant 0 : index
    %c0_33 = arith.constant 0 : index
    %55 = vector.load %arg3[%c6, %c0_32, %c0_33] : memref<9x32x16xf32, #tpu.memory_space<vmem>>, vector<1x32x16xf32>
    %56 = vector.shape_cast %55 : vector<1x32x16xf32> to vector<32x16xf32>
    %cst_34 = arith.constant dense<0.000000e+00> : vector<288x16xf32>
    %57 = tpu.matmul %54, %56, %cst_34 {dimension_numbers = #tpu.dot_dimension_numbers<[1], [0], [0], [1], [0, 0, 1, 1], [], []>} : vector<288x32xf32>, vector<32x16xf32>, vector<288x16xf32> -> vector<288x16xf32>
    %58 = arith.addf %50, %57 : vector<288x16xf32>
    %c37_i32 = arith.constant 37 : i32
    %59 = arith.addi %1, %c37_i32 : i32
    %c0_35 = arith.constant 0 : index
    %60 = arith.index_cast %59 : i32 to index
    %c0_36 = arith.constant 0 : index
    %61 = vector.load %arg2[%c0_35, %60, %c0_36] : memref<1x326x32xf32, #tpu.memory_space<vmem>>, vector<1x288x32xf32>
    %62 = vector.shape_cast %61 : vector<1x288x32xf32> to vector<288x32xf32>
    %c7 = arith.constant 7 : index
    %c0_37 = arith.constant 0 : index
    %c0_38 = arith.constant 0 : index
    %63 = vector.load %arg3[%c7, %c0_37, %c0_38] : memref<9x32x16xf32, #tpu.memory_space<vmem>>, vector<1x32x16xf32>
    %64 = vector.shape_cast %63 : vector<1x32x16xf32> to vector<32x16xf32>
    %cst_39 = arith.constant dense<0.000000e+00> : vector<288x16xf32>
    %65 = tpu.matmul %62, %64, %cst_39 {dimension_numbers = #tpu.dot_dimension_numbers<[1], [0], [0], [1], [0, 0, 1, 1], [], []>} : vector<288x32xf32>, vector<32x16xf32>, vector<288x16xf32> -> vector<288x16xf32>
    %66 = arith.addf %58, %65 : vector<288x16xf32>
    %c38_i32 = arith.constant 38 : i32
    %67 = arith.addi %1, %c38_i32 : i32
    %c0_40 = arith.constant 0 : index
    %68 = arith.index_cast %67 : i32 to index
    %c0_41 = arith.constant 0 : index
    %69 = vector.load %arg2[%c0_40, %68, %c0_41] : memref<1x326x32xf32, #tpu.memory_space<vmem>>, vector<1x288x32xf32>
    %70 = vector.shape_cast %69 : vector<1x288x32xf32> to vector<288x32xf32>
    %c8 = arith.constant 8 : index
    %c0_42 = arith.constant 0 : index
    %c0_43 = arith.constant 0 : index
    %71 = vector.load %arg3[%c8, %c0_42, %c0_43] : memref<9x32x16xf32, #tpu.memory_space<vmem>>, vector<1x32x16xf32>
    %72 = vector.shape_cast %71 : vector<1x32x16xf32> to vector<32x16xf32>
    %cst_44 = arith.constant dense<0.000000e+00> : vector<288x16xf32>
    %73 = tpu.matmul %70, %72, %cst_44 {dimension_numbers = #tpu.dot_dimension_numbers<[1], [0], [0], [1], [0, 0, 1, 1], [], []>} : vector<288x32xf32>, vector<32x16xf32>, vector<288x16xf32> -> vector<288x16xf32>
    %74 = arith.addf %66, %73 : vector<288x16xf32>
    %c0_45 = arith.constant 0 : index
    %c0_46 = arith.constant 0 : index
    %c0_47 = arith.constant 0 : index
    %75 = vector.load %arg4[%c0_45, %c0_46, %c0_47] : memref<1x288x16xf32, #tpu.memory_space<vmem>>, vector<1x288x16xf32>
    %76 = vector.shape_cast %75 : vector<1x288x16xf32> to vector<288x16xf32>
    %77 = vector.shape_cast %74 : vector<288x16xf32> to vector<1x288x16xf32>
    tpu.vector_store %arg4[%c0_45, %c0_46, %c0_47], %77 {strides = array<i32>} : memref<1x288x16xf32, #tpu.memory_space<vmem>>, vector<1x288x16xf32>,
    return
  }
  func.func @transform_0(%arg0: i32, %arg1: i32) -> (i32, i32, i32) {
    %c0_i32 = arith.constant 0 : i32
    %c0_i32_0 = arith.constant 0 : i32
    %c0_i32_1 = arith.constant 0 : i32
    return %arg0, %c0_i32, %c0_i32_0 : i32, i32, i32
  }
  func.func @transform_1(%arg0: i32, %arg1: i32) -> (i32, i32, i32) {
    %c0_i32 = arith.constant 0 : i32
    %c0_i32_0 = arith.constant 0 : i32
    %c0_i32_1 = arith.constant 0 : i32
    %c0_i32_2 = arith.constant 0 : i32
    return %c0_i32, %c0_i32_0, %c0_i32_1 : i32, i32, i32
  }
  func.func @transform_2(%arg0: i32, %arg1: i32) -> (i32, i32, i32) {
    %c0_i32 = arith.constant 0 : i32
    %c0_i32_0 = arith.constant 0 : i32
    return %arg0, %arg1, %c0_i32 : i32, i32, i32
  }
}

</mosaic_0001>

<llo_original>
// kernel: downsample_forward.1
$region0: #{downsample_forward.1}
  #allocation0 [shape = 'u32[]', space=smem, size = 0x4, offset = 0x4, fixed_abs, tag = 'smem constant byte address 0x4 - core index']
  #allocation1 [shape = 'u32[144,128]{1,0:T(1,128)}', space=vmem, size = 0x12000, scoped, tag = 'internal scratch']
  %s0 = inlined_call_operand.vmem [shape: f32[2,326,32], index: 0, kind: input, shape index: {}]
  %s1 = inlined_call_operand.vmem [shape: f32[9,32,16], index: 1, kind: input, shape index: {}]
  %s2 = inlined_call_operand.vmem [shape: f32[2,288,16], index: 2, kind: output, shape index: {}]
  %s3 = sld [smem:[#allocation0]]
  $region41: #{downsample_forward.1} parent=0
    _
  %s5 = ssub.s32 1, %s3
  %s6 = scalar_select 0, %s5, %s3
  loop: start=0, step=1, limit=4
  $region2: #{downsample_forward.1} parent=0 // loop_pre_header
    _
  $region3: #{downsample_forward.1} parent=0 // loop_header
    %s8 = sphi 0, %s12
    %p9 = scmp.ge.s32.totalorder %s8, 4
    %s15 = sphi 0, %s27
    %s16 = sphi 0, %s23
    %s17 = sphi 0, %s15
    %s18 = sphi 0, %s16
    %s19 = sphi 0, %s17
    %s20 = sphi 0, %s18
    %s30 = sphi 0, %s32
    %s33 = sphi 0, %s30
    %s34 = sphi 0, %s33
    %s50 = sphi 0, %s34
    %s54 = sphi 0, %s54
    %s56 = sphi 0, %s54
    %s57 = sphi 0, %s56
    %s71 = sphi 0, %s57
    %s79 = sphi 0, %s81
    %s82 = sphi 0, %s79
    %s83 = sphi 0, %s82
    %s99 = sphi 0, %s83
  $region4: #{downsample_forward.1} parent=0 // loop_header_branch
    %11 = sbr.rel (%p9) target = $region8
  $region5: #{downsample_forward.1} parent=0 // loop_body
    %s13 = ssub.s32 %s8, 1
    %s14 = ssub.s32 %s8, 2
    %s21 = sadd.s32 1, %s16
    %p22 = scmp.ge.s32.totalorder %s21, 1
    %s23 = scalar_select %p22, 0, %s21
    %s24 = sadd.s32 1, %s15
    %s25 = scalar_select %p22, %s24, %s15
    %p26 = scmp.ge.s32.totalorder %s25, 2
    %s27 = scalar_select %p26, 0, %s25
    %s28 = ssub.s32 %s15, %s27
    %p29 = scmp.eq.s32.totalorder %s28, 0
    %s31 = sadd.s32 %s30, 1
    %s32 = scalar_select %p29, %s30, %s31
    %p35 = pneg %p29
    %p36 = scmp.eq.s32.totalorder %s8, 1
    %p37 = por %p35, %p36
    %p38 = scmp.ne.s32.totalorder %s30, %s33
    %p39 = scmp.eq.s32.totalorder %s8, 0
    %p40 = por %p38, %p39
    %p41 = scmp.ne.s32.totalorder %s30, %s33
    %p42 = scmp.eq.s32.totalorder %s13, 1
    %p43 = por %p41, %p42
    %p44 = scmp.ne.s32.totalorder %s33, %s34
    %p45 = scmp.eq.s32.totalorder %s13, 0
    %p46 = por %p44, %p45
    %p47 = scmp.ne.s32.totalorder %s33, %s34
    %p48 = scmp.eq.s32.totalorder %s14, 1
    %p49 = por %p47, %p48
    %p51 = scmp.ne.s32.totalorder %s34, %s50
    %p52 = scmp.eq.s32.totalorder %s14, 0
    %p53 = por %p51, %p52
    %s55 = sadd.s32 %s54, 1
    %p58 = scmp.eq.s32.totalorder %s8, 1
    %p59 = scmp.ne.s32.totalorder %s54, %s56
    %p60 = scmp.eq.s32.totalorder %s8, 0
    %p61 = por %p59, %p60
    %p62 = scmp.ne.s32.totalorder %s54, %s56
    %p63 = scmp.eq.s32.totalorder %s13, 1
    %p64 = por %p62, %p63
    %p65 = scmp.ne.s32.totalorder %s56, %s57
    %p66 = scmp.eq.s32.totalorder %s13, 0
    %p67 = por %p65, %p66
    %p68 = scmp.ne.s32.totalorder %s56, %s57
    %p69 = scmp.eq.s32.totalorder %s14, 1
    %p70 = por %p68, %p69
    %p72 = scmp.ne.s32.totalorder %s57, %s71
    %p73 = scmp.eq.s32.totalorder %s14, 0
    %p74 = por %p72, %p73
    %s75 = ssub.s32 %s15, %s27
    %s76 = ssub.s32 %s16, %s23
    %s77 = sor.u32 %s75, %s76
    %p78 = scmp.eq.s32.totalorder %s77, 0
    %s80 = sadd.s32 %s79, 1
    %s81 = scalar_select %p78, %s79, %s80
    %p84 = pneg %p78
    %p85 = scmp.eq.s32.totalorder %s8, 1
    %p86 = por %p84, %p85
    %p87 = scmp.ne.s32.totalorder %s79, %s82
    %p88 = scmp.eq.s32.totalorder %s8, 0
    %p89 = por %p87, %p88
    %p90 = scmp.ne.s32.totalorder %s79, %s82
    %p91 = scmp.eq.s32.totalorder %s13, 1
    %p92 = por %p90, %p91
    %p93 = scmp.ne.s32.totalorder %s82, %s83
    %p94 = scmp.eq.s32.totalorder %s13, 0
    %p95 = por %p93, %p94
    %p96 = scmp.ne.s32.totalorder %s82, %s83
    %p97 = scmp.eq.s32.totalorder %s14, 1
    %p98 = por %p96, %p97
    %p100 = scmp.ne.s32.totalorder %s83, %s99
    %p101 = scmp.eq.s32.totalorder %s14, 0
    %p102 = por %p100, %p101
    %p103 = scmp.le.s32.totalorder 1, %s8
    %p104 = scmp.lt.s32.totalorder %s8, 3
    %p105 = pnand %p103, %p104
    %p106 = pneg %p105
    // Predicated region
    $region9: #{downsample_forward.1} parent=5 // pred_check
      _
    $region10: #{downsample_forward.1} parent=5 // pred_check_branch
      %108 = sbr.rel (%p105) target = $region12
    $region11: #{downsample_forward.1} parent=5 // pred_region
      %s109 = ssub.s32 %s8, 1
      // Predicated region
      $region13: #{downsample_forward.1} parent=11 // pred_check
        %p110 = pneg %p67
      $region14: #{downsample_forward.1} parent=11 // pred_check_branch
        %112 = sbr.rel (%p110) target = $region16
      $region15: #{downsample_forward.1} parent=11 // pred_region
        _
      $region16: #{downsample_forward.1} parent=11 // pred_fallthru
        _
    $region12: #{downsample_forward.1} parent=5 // pred_fallthru
      _
    %p113 = scmp.lt.s32.totalorder %s8, 2
    // Predicated region
    $region17: #{downsample_forward.1} parent=5 // pred_check
      %p114 = pneg %p113
    $region18: #{downsample_forward.1} parent=5 // pred_check_branch
      %116 = sbr.rel (%p114) target = $region20
    $region19: #{downsample_forward.1} parent=5 // pred_region
      // Predicated region
      $region21: #{downsample_forward.1} parent=19 // pred_check
        %p117 = pneg %p40
      $region22: #{downsample_forward.1} parent=19 // pred_check_branch
        %119 = sbr.rel (%p117) target = $region24
      $region23: #{downsample_forward.1} parent=19 // pred_region
        %p120 = scmp.lt.s32.totalorder %s15, 1
        %s121 = scalar_select %p120, %s15, 1
        %s122 = smul.addr %s121, 41
        %s123 = smul.addr %s122, 8
        %s124 = scalar_lea.vmem %s0, %s123
      $region24: #{downsample_forward.1} parent=19 // pred_fallthru
        _
    $region20: #{downsample_forward.1} parent=5 // pred_fallthru
      _
    %p125 = scmp.le.s32.totalorder 1, %s8
    %p126 = scmp.lt.s32.totalorder %s8, 3
    %p127 = pnand %p125, %p126
    %p128 = pneg %p127
    // Predicated region
    $region25: #{downsample_forward.1} parent=5 // pred_check
      _
    $region26: #{downsample_forward.1} parent=5 // pred_check_branch
      %130 = sbr.rel (%p127) target = $region28
    $region27: #{downsample_forward.1} parent=5 // pred_region
      %s131 = ssub.s32 %s8, 1
      %p132 = scmp.lt.s32.totalorder %s17, 1
      %s133 = scalar_select %p132, %s17, 1
      %s134 = smul.addr %s133, 41
      %s135 = smul.addr %s134, 8
      %s136 = scalar_lea.vmem %s0, %s135
      %p137 = pneg %p46
      %p138 = pneg %p43
      %p139 = pneg %p67
      %p140 = pneg %p64
      %p141 = pneg %p95
      %p142 = pneg %p92
      %s143 = smul.u32 36, %s18
      %p144 = scmp.lt.s32.totalorder %s17, 1
      %s145 = scalar_select %p144, %s17, 1
      %p146 = scmp.lt.s32.totalorder %s143, 35
      %s147 = scalar_select %p146, %s143, 35
      %s148 = smul.addr %s145, 36
      %s149 = sadd.s32 %s147, %s148
      %s150 = smul.addr %s149, 8
      %s151 = scalar_lea.vmem %s2, %s150
      %p152 = scmp.lt.s32.totalorder %s17, 1
      %s153 = scalar_select %p152, %s17, 1
      %s154 = smul.addr %s153, 41
      %s155 = smul.addr %s154, 8
      %s156 = scalar_lea.vmem %s0, %s155
      %s157 = smul.u32 36, %s18
      %p158 = scmp.lt.s32.totalorder %s17, 1
      %s159 = scalar_select %p158, %s17, 1
      %p160 = scmp.lt.s32.totalorder %s157, 35
      %s161 = scalar_select %p160, %s157, 35
      %s162 = smul.addr %s159, 36
      %s163 = sadd.s32 %s161, %s162
      %s164 = smul.addr %s163, 8
      %s165 = scalar_lea.vmem %s2, %s164
      %s166 = smul.u32 36, %s18
      %s167 = smul.u32 %s18, 288
      %s168 = scalar_lea.vmem %s156, %s167
      %v169 = vld [vmem:[%s168] sm:$0xff]
      %v170 = vld [vmem:[%s168 + $0x8] sm:$0xff]
      %v171 = vld [vmem:[%s168 + $0x10] sm:$0xff]
      %v172 = vld [vmem:[%s168 + $0x18] sm:$0xff]
      %v173 = vld [vmem:[%s168 + $0x20] sm:$0xff]
      %v174 = vld [vmem:[%s168 + $0x28] sm:$0xff]
      %v175 = vld [vmem:[%s168 + $0x30] sm:$0xff]
      %v176 = vld [vmem:[%s168 + $0x38] sm:$0xff]
      %v177 = vld [vmem:[%s168 + $0x40] sm:$0xff]
      %v178 = vld [vmem:[%s168 + $0x48] sm:$0xff]
      %v179 = vld [vmem:[%s168 + $0x50] sm:$0xff]
      %v180 = vld [vmem:[%s168 + $0x58] sm:$0xff]
      %v181 = vld [vmem:[%s168 + $0x60] sm:$0xff]
      %v182 = vld [vmem:[%s168 + $0x68] sm:$0xff]
      %v183 = vld [vmem:[%s168 + $0x70] sm:$0xff]
      %v184 = vld [vmem:[%s168 + $0x78] sm:$0xff]
      %v185 = vld [vmem:[%s168 + $0x80] sm:$0xff]
      %v186 = vld [vmem:[%s168 + $0x88] sm:$0xff]
      %v187 = vld [vmem:[%s168 + $0x90] sm:$0xff]
      %v188 = vld [vmem:[%s168 + $0x98] sm:$0xff]
      %v189 = vld [vmem:[%s168 + $0xa0] sm:$0xff]
      %v190 = vld [vmem:[%s168 + $0xa8] sm:$0xff]
      %v191 = vld [vmem:[%s168 + $0xb0] sm:$0xff]
      %v192 = vld [vmem:[%s168 + $0xb8] sm:$0xff]
      %v193 = vld [vmem:[%s168 + $0xc0] sm:$0xff]
      %v194 = vld [vmem:[%s168 + $0xc8] sm:$0xff]
      %v195 = vld [vmem:[%s168 + $0xd0] sm:$0xff]
      %v196 = vld [vmem:[%s168 + $0xd8] sm:$0xff]
      %v197 = vld [vmem:[%s168 + $0xe0] sm:$0xff]
      %v198 = vld [vmem:[%s168 + $0xe8] sm:$0xff]
      %v199 = vld [vmem:[%s168 + $0xf0] sm:$0xff]
      %v200 = vld [vmem:[%s168 + $0xf8] sm:$0xff]
      %v201 = vld [vmem:[%s168 + $0x100] sm:$0xff]
      %v202 = vld [vmem:[%s168 + $0x108] sm:$0xff]
      %v203 = vld [vmem:[%s168 + $0x110] sm:$0xff]
      %v204 = vld [vmem:[%s168 + $0x118] sm:$0xff]
      %v205 = vld [vmem:[%s1] sm:$0xff]
      %v206 = vld [vmem:[%s1 + $0x8] sm:$0xff]
      %v207 = vld [vmem:[%s1 + $0x10] sm:$0xff]
      %v208 = vld [vmem:[%s1 + $0x18] sm:$0xff]
      %s209 = sadd.s32 %s167, 1
      %s210 = scalar_lea.vmem %s156, %s209
      %v211 = vld [vmem:[%s210] sm:$0xff]
      %v212 = vld [vmem:[%s210 + $0x8] sm:$0xff]
      %v213 = vld [vmem:[%s210 + $0x10] sm:$0xff]
      %v214 = vld [vmem:[%s210 + $0x18] sm:$0xff]
      %v215 = vld [vmem:[%s210 + $0x20] sm:$0xff]
      %v216 = vld [vmem:[%s210 + $0x28] sm:$0xff]
      %v217 = vld [vmem:[%s210 + $0x30] sm:$0xff]
      %v218 = vld [vmem:[%s210 + $0x38] sm:$0xff]
      %v219 = vld [vmem:[%s210 + $0x40] sm:$0xff]
      %v220 = vld [vmem:[%s210 + $0x48] sm:$0xff]
      %v221 = vld [vmem:[%s210 + $0x50] sm:$0xff]
      %v222 = vld [vmem:[%s210 + $0x58] sm:$0xff]
      %v223 = vld [vmem:[%s210 + $0x60] sm:$0xff]
      %v224 = vld [vmem:[%s210 + $0x68] sm:$0xff]
      %v225 = vld [vmem:[%s210 + $0x70] sm:$0xff]
      %v226 = vld [vmem:[%s210 + $0x78] sm:$0xff]
      %v227 = vld [vmem:[%s210 + $0x80] sm:$0xff]
      %v228 = vld [vmem:[%s210 + $0x88] sm:$0xff]
      %v229 = vld [vmem:[%s210 + $0x90] sm:$0xff]
      %v230 = vld [vmem:[%s210 + $0x98] sm:$0xff]
      %v231 = vld [vmem:[%s210 + $0xa0] sm:$0xff]
      %v232 = vld [vmem:[%s210 + $0xa8] sm:$0xff]
      %v233 = vld [vmem:[%s210 + $0xb0] sm:$0xff]
      %v234 = vld [vmem:[%s210 + $0xb8] sm:$0xff]
      %v235 = vld [vmem:[%s210 + $0xc0] sm:$0xff]
      %v236 = vld [vmem:[%s210 + $0xc8] sm:$0xff]
      %v237 = vld [vmem:[%s210 + $0xd0] sm:$0xff]
      %v238 = vld [vmem:[%s210 + $0xd8] sm:$0xff]
      %v239 = vld [vmem:[%s210 + $0xe0] sm:$0xff]
      %v240 = vld [vmem:[%s210 + $0xe8] sm:$0xff]
      %v241 = vld [vmem:[%s210 + $0xf0] sm:$0xff]
      %v242 = vld [vmem:[%s210 + $0xf8] sm:$0xff]
      %v243 = vld [vmem:[%s210 + $0x100] sm:$0xff]
      %v244 = vld [vmem:[%s210 + $0x108] sm:$0xff]
      %v245 = vld [vmem:[%s210 + $0x110] sm:$0xff]
      %v246 = vld [vmem:[%s210 + $0x118] sm:$0xff]
      %s247 = scalar_lea.vmem %s1, 32
      %v248 = vld [vmem:[%s247] sm:$0xff]
      %v249 = vld [vmem:[%s247 + $0x8] sm:$0xff]
      %v250 = vld [vmem:[%s247 + $0x10] sm:$0xff]
      %v251 = vld [vmem:[%s247 + $0x18] sm:$0xff]
      %vm252 = vcmask 261120
      %v254 = vsel %vm252, %v211, 0
      %v257 = vsel %vm252, %v212, 0
      %v260 = vsel %vm252, %v213, 0
      %v263 = vsel %vm252, %v214, 0
      %v266 = vsel %vm252, %v215, 0
      %v269 = vsel %vm252, %v216, 0
      %v272 = vsel %vm252, %v217, 0
      %v275 = vsel %vm252, %v218, 0
      %v278 = vsel %vm252, %v219, 0
      %v281 = vsel %vm252, %v220, 0
      %v284 = vsel %vm252, %v221, 0
      %v287 = vsel %vm252, %v222, 0
      %v290 = vsel %vm252, %v223, 0
      %v293 = vsel %vm252, %v224, 0
      %v296 = vsel %vm252, %v225, 0
      %v299 = vsel %vm252, %v226, 0
      %v302 = vsel %vm252, %v227, 0
      %v305 = vsel %vm252, %v228, 0
      %v308 = vsel %vm252, %v229, 0
      %v311 = vsel %vm252, %v230, 0
      %v314 = vsel %vm252, %v231, 0
      %v317 = vsel %vm252, %v232, 0
      %v320 = vsel %vm252, %v233, 0
      %v323 = vsel %vm252, %v234, 0
      %v326 = vsel %vm252, %v235, 0
      %v329 = vsel %vm252, %v236, 0
      %v332 = vsel %vm252, %v237, 0
      %v335 = vsel %vm252, %v238, 0
      %v338 = vsel %vm252, %v239, 0
      %v341 = vsel %vm252, %v240, 0
      %v344 = vsel %vm252, %v241, 0
      %v347 = vsel %vm252, %v242, 0
      %v350 = vsel %vm252, %v243, 0
      %v353 = vsel %vm252, %v244, 0
      %v356 = vsel %vm252, %v245, 0
      %v359 = vsel %vm252, %v246, 0
      %361 = vmatprep.subr.mxu0 0.0
      %362 = vmatpush1.msra.mxu0 %v248
      %363 = vmatprep.subr.mxu0 0.0
      %364 = vmatpush1.msra.mxu0 %v249
      %365 = vmatprep.subr.mxu0 0.0
      %366 = vmatpush1.msra.mxu0 %v250
      %367 = vmatprep.subr.mxu0 0.0
      %368 = vmatpush1.msra.mxu0 %v251
      %369 = vmatprep.subr.mxu0 0.0
      %370 = vmatpush1.msra.mxu0 0.0
      %371 = vmatprep.subr.mxu0 0.0
      %372 = vmatpush1.msra.mxu0 0.0
      %373 = vmatprep.subr.mxu0 0.0
      %374 = vmatpush1.msra.mxu0 0.0
      %375 = vmatprep.subr.mxu0 0.0
      %376 = vmatpush1.msra.mxu0 0.0
      %377 = vmatprep.subr.mxu0 0.0
      %378 = vmatpush1.msra.mxu0 0.0
      %379 = vmatprep.subr.mxu0 0.0
      %380 = vmatpush1.msra.mxu0 0.0
      %381 = vmatprep.subr.mxu0 0.0
      %382 = vmatpush1.msra.mxu0 0.0
      %383 = vmatprep.subr.mxu0 0.0
      %384 = vmatpush1.msra.mxu0 0.0
      %385 = vmatprep.subr.mxu0 0.0
      %386 = vmatpush1.msra.mxu0 0.0
      %387 = vmatprep.subr.mxu0 0.0
      %388 = vmatpush1.msra.mxu0 0.0
      %389 = vmatprep.subr.mxu0 0.0
      %390 = vmatpush1.msra.mxu0 0.0
      %391 = vmatprep.subr.mxu0 0.0
      %392 = vmatpush1.msra.mxu0 0.0
      %393 = vmatprep.subr.mxu0 0.0
      %394 = vmatpush1.msra.mxu0 0.0
      %395 = vmatprep.subr.mxu0 0.0
      %396 = vmatpush1.msra.mxu0 0.0
      %397 = vmatprep.subr.mxu0 0.0
      %398 = vmatpush1.msra.mxu0 0.0
      %399 = vmatprep.subr.mxu0 0.0
      %400 = vmatpush1.msra.mxu0 0.0
      %401 = vmatprep.subr.mxu0 0.0
      %402 = vmatpush1.msra.mxu0 0.0
      %403 = vmatprep.subr.mxu0 0.0
      %404 = vmatpush1.msra.mxu0 0.0
      %405 = vmatprep.subr.mxu0 0.0
      %406 = vmatpush1.msra.mxu0 0.0
      %407 = vmatprep.subr.mxu0 0.0
      %408 = vmatpush1.msra.mxu0 0.0
      %409 = vmatprep.subr.mxu0 0.0
      %410 = vmatpush1.msra.mxu0 0.0
      %411 = vmatprep.subr.mxu0 0.0
      %412 = vmatpush1.msra.mxu0 0.0
      %413 = vmatprep.subr.mxu0 0.0
      %414 = vmatpush1.msra.mxu0 0.0
      %415 = vmatprep.subr.mxu0 0.0
      %416 = vmatpush1.msra.mxu0 0.0
      %417 = vmatprep.subr.mxu0 0.0
      %418 = vmatpush1.msra.mxu0 0.0
      %419 = vmatprep.subr.mxu0 0.0
      %420 = vmatpush1.msra.mxu0 0.0
      %421 = vmatprep.subr.mxu0 0.0
      %422 = vmatpush1.msra.mxu0 0.0
      %423 = vmatprep.subr.mxu0 0.0
      %424 = vmatpush1.msra.mxu0 0.0
      %425 = vmatprep.mubr.f32.mxu0 0.0
      %426 = vmatmul.mubr.f32.gmra.mrb[0].mxu0 %v254
      %v427 = vpop.f32.mrb[0].mxu0
      %v428 = vadd.f32 0.0, %v427
      %v429 = vpop.f32.mrb[0].mxu0
      %430 = vmatprep.mubr.f32.mxu0 0.0
      %431 = vmatmul.mubr.f32.gmra.mrb[0].mxu0 %v257
      %v432 = vpop.f32.mrb[0].mxu0
      %v433 = vadd.f32 0.0, %v432
      %v434 = vpop.f32.mrb[0].mxu0
      %435 = vmatprep.mubr.f32.mxu0 0.0
      %436 = vmatmul.mubr.f32.gmra.mrb[0].mxu0 %v260
      %v437 = vpop.f32.mrb[0].mxu0
      %v438 = vadd.f32 0.0, %v437
      %v439 = vpop.f32.mrb[0].mxu0
      %440 = vmatprep.mubr.f32.mxu0 0.0
      %441 = vmatmul.mubr.f32.gmra.mrb[0].mxu0 %v263
      %v442 = vpop.f32.mrb[0].mxu0
      %v443 = vadd.f32 0.0, %v442
      %v444 = vpop.f32.mrb[0].mxu0
      %445 = vmatprep.mubr.f32.mxu0 0.0
      %446 = vmatmul.mubr.f32.gmra.mrb[0].mxu0 %v266
      %v447 = vpop.f32.mrb[0].mxu0
      %v448 = vadd.f32 0.0, %v447
      %v449 = vpop.f32.mrb[0].mxu0
      %450 = vmatprep.mubr.f32.mxu0 0.0
      %451 = vmatmul.mubr.f32.gmra.mrb[0].mxu0 %v269
      %v452 = vpop.f32.mrb[0].mxu0
      %v453 = vadd.f32 0.0, %v452
      %v454 = vpop.f32.mrb[0].mxu0
      %455 = vmatprep.mubr.f32.mxu0 0.0
      %456 = vmatmul.mubr.f32.gmra.mrb[0].mxu0 %v272
      %v457 = vpop.f32.mrb[0].mxu0
      %v458 = vadd.f32 0.0, %v457
      %v459 = vpop.f32.mrb[0].mxu0
      %460 = vmatprep.mubr.f32.mxu0 0.0
      %461 = vmatmul.mubr.f32.gmra.mrb[0].mxu0 %v275
      %v462 = vpop.f32.mrb[0].mxu0
      %v463 = vadd.f32 0.0, %v462
      %v464 = vpop.f32.mrb[0].mxu0
      %465 = vmatprep.mubr.f32.mxu0 0.0
      %466 = vmatmul.mubr.f32.gmra.mrb[0].mxu0 %v278
      %v467 = vpop.f32.mrb[0].mxu0
      %v468 = vadd.f32 0.0, %v467
      %v469 = vpop.f32.mrb[0].mxu0
      %470 = vmatprep.mubr.f32.mxu0 0.0
      %471 = vmatmul.mubr.f32.gmra.mrb[0].mxu0 %v281
      %v472 = vpop.f32.mrb[0].mxu0
      %v473 = vadd.f32 0.0, %v472
      %v474 = vpop.f32.mrb[0].mxu0
      %475 = vmatprep.mubr.f32.mxu0 0.0
      %476 = vmatmul.mubr.f32.gmra.mrb[0].mxu0 %v284
      %v477 = vpop.f32.mrb[0].mxu0
      %v478 = vadd.f32 0.0, %v477
      %v479 = vpop.f32.mrb[0].mxu0
      %480 = vmatprep.mubr.f32.mxu0 0.0
      %481 = vmatmul.mubr.f32.gmra.mrb[0].mxu0 %v287
      %v482 = vpop.f32.mrb[0].mxu0
      %v483 = vadd.f32 0.0, %v482
      %v484 = vpop.f32.mrb[0].mxu0
      %485 = vmatprep.mubr.f32.mxu0 0.0
      %486 = vmatmul.mubr.f32.gmra.mrb[0].mxu0 %v290
      %v487 = vpop.f32.mrb[0].mxu0
      %v488 = vadd.f32 0.0, %v487
      %v489 = vpop.f32.mrb[0].mxu0
      %490 = vmatprep.mubr.f32.mxu0 0.0
      %491 = vmatmul.mubr.f32.gmra.mrb[0].mxu0 %v293
      %v492 = vpop.f32.mrb[0].mxu0
      %v493 = vadd.f32 0.0, %v492
      %v494 = vpop.f32.mrb[0].mxu0
      %495 = vmatprep.mubr.f32.mxu0 0.0
      %496 = vmatmul.mubr.f32.gmra.mrb[0].mxu0 %v296
      %v497 = vpop.f32.mrb[0].mxu0
      %v498 = vadd.f32 0.0, %v497
      %v499 = vpop.f32.mrb[0].mxu0
      %500 = vmatprep.mubr.f32.mxu0 0.0
      %501 = vmatmul.mubr.f32.gmra.mrb[0].mxu0 %v299
      %v502 = vpop.f32.mrb[0].mxu0
      %v503 = vadd.f32 0.0, %v502
      %v504 = vpop.f32.mrb[0].mxu0
      %505 = vmatprep.mubr.f32.mxu0 0.0
      %506 = vmatmul.mubr.f32.gmra.mrb[0].mxu0 %v302
      %v507 = vpop.f32.mrb[0].mxu0
      %v508 = vadd.f32 0.0, %v507
      %v509 = vpop.f32.mrb[0].mxu0
      %510 = vmatprep.mubr.f32.mxu0 0.0
      %511 = vmatmul.mubr.f32.gmra.mrb[0].mxu0 %v305
      %v512 = vpop.f32.mrb[0].mxu0
      %v513 = vadd.f32 0.0, %v512
      %v514 = vpop.f32.mrb[0].mxu0
      %515 = vmatprep.mubr.f32.mxu0 0.0
      %516 = vmatmul.mubr.f32.gmra.mrb[0].mxu0 %v308
      %v517 = vpop.f32.mrb[0].mxu0
      %v518 = vadd.f32 0.0, %v517
      %v519 = vpop.f32.mrb[0].mxu0
      %520 = vmatprep.mubr.f32.mxu0 0.0
      %521 = vmatmul.mubr.f32.gmra.mrb[0].mxu0 %v311
      %v522 = vpop.f32.mrb[0].mxu0
      %v523 = vadd.f32 0.0, %v522
      %v524 = vpop.f32.mrb[0].mxu0
      %525 = vmatprep.mubr.f32.mxu0 0.0
      %526 = vmatmul.mubr.f32.gmra.mrb[0].mxu0 %v314
      %v527 = vpop.f32.mrb[0].mxu0
      %v528 = vadd.f32 0.0, %v527
      %v529 = vpop.f32.mrb[0].mxu0
      %530 = vmatprep.mubr.f32.mxu0 0.0
      %531 = vmatmul.mubr.f32.gmra.mrb[0].mxu0 %v317
      %v532 = vpop.f32.mrb[0].mxu0
      %v533 = vadd.f32 0.0, %v532
      %v534 = vpop.f32.mrb[0].mxu0
      %535 = vmatprep.mubr.f32.mxu0 0.0
      %536 = vmatmul.mubr.f32.gmra.mrb[0].mxu0 %v320
      %v537 = vpop.f32.mrb[0].mxu0
      %v538 = vadd.f32 0.0, %v537
      %v539 = vpop.f32.mrb[0].mxu0
      %540 = vmatprep.mubr.f32.mxu0 0.0
      %541 = vmatmul.mubr.f32.gmra.mrb[0].mxu0 %v323
      %v542 = vpop.f32.mrb[0].mxu0
      %v543 = vadd.f32 0.0, %v542
      %v544 = vpop.f32.mrb[0].mxu0
      %545 = vmatprep.mubr.f32.mxu0 0.0
      %546 = vmatmul.mubr.f32.gmra.mrb[0].mxu0 %v326
      %v547 = vpop.f32.mrb[0].mxu0
      %v548 = vadd.f32 0.0, %v547
      %v549 = vpop.f32.mrb[0].mxu0
      %550 = vmatprep.mubr.f32.mxu0 0.0
      %551 = vmatmul.mubr.f32.gmra.mrb[0].mxu0 %v329
      %v552 = vpop.f32.mrb[0].mxu0
      %v553 = vadd.f32 0.0, %v552
      %v554 = vpop.f32.mrb[0].mxu0
      %555 = vmatprep.mubr.f32.mxu0 0.0
      %556 = vmatmul.mubr.f32.gmra.mrb[0].mxu0 %v332
      %v557 = vpop.f32.mrb[0].mxu0
      %v558 = vadd.f32 0.0, %v557
      %v559 = vpop.f32.mrb[0].mxu0
      %560 = vmatprep.mubr.f32.mxu0 0.0
      %561 = vmatmul.mubr.f32.gmra.mrb[0].mxu0 %v335
      %v562 = vpop.f32.mrb[0].mxu0
      %v563 = vadd.f32 0.0, %v562
      %v564 = vpop.f32.mrb[0].mxu0
      %565 = vmatprep.mubr.f32.mxu0 0.0
      %566 = vmatmul.mubr.f32.gmra.mrb[0].mxu0 %v338
      %v567 = vpop.f32.mrb[0].mxu0
      %v568 = vadd.f32 0.0, %v567
      %v569 = vpop.f32.mrb[0].mxu0
      %570 = vmatprep.mubr.f32.mxu0 0.0
      %571 = vmatmul.mubr.f32.gmra.mrb[0].mxu0 %v341
      %v572 = vpop.f32.mrb[0].mxu0
      %v573 = vadd.f32 0.0, %v572
      %v574 = vpop.f32.mrb[0].mxu0
      %575 = vmatprep.mubr.f32.mxu0 0.0
      %576 = vmatmul.mubr.f32.gmra.mrb[0].mxu0 %v344
      %v577 = vpop.f32.mrb[0].mxu0
      %v578 = vadd.f32 0.0, %v577
      %v579 = vpop.f32.mrb[0].mxu0
      %580 = vmatprep.mubr.f32.mxu0 0.0
      %581 = vmatmul.mubr.f32.gmra.mrb[0].mxu0 %v347
      %v582 = vpop.f32.mrb[0].mxu0
      %v583 = vadd.f32 0.0, %v582
      %v584 = vpop.f32.mrb[0].mxu0
      %585 = vmatprep.mubr.f32.mxu0 0.0
      %586 = vmatmul.mubr.f32.gmra.mrb[0].mxu0 %v350
      %v587 = vpop.f32.mrb[0].mxu0
      %v588 = vadd.f32 0.0, %v587
      %v589 = vpop.f32.mrb[0].mxu0
      %590 = vmatprep.mubr.f32.mxu0 0.0
      %591 = vmatmul.mubr.f32.gmra.mrb[0].mxu0 %v353
      %v592 = vpop.f32.mrb[0].mxu0
      %v593 = vadd.f32 0.0, %v592
      %v594 = vpop.f32.mrb[0].mxu0
      %595 = vmatprep.mubr.f32.mxu0 0.0
      %596 = vmatmul.mubr.f32.gmra.mrb[0].mxu0 %v356
      %v597 = vpop.f32.mrb[0].mxu0
      %v598 = vadd.f32 0.0, %v597
      %v599 = vpop.f32.mrb[0].mxu0
      %600 = vmatprep.mubr.f32.mxu0 0.0
      %601 = vmatmul.mubr.f32.gmra.mrb[0].mxu0 %v359
      %v602 = vpop.f32.mrb[0].mxu0
      %v603 = vadd.f32 0.0, %v602
      %v604 = vpop.f32.mrb[0].mxu0
      %605 = vdwg.mxu0
      %v607 = vsel %vm252, %v169, 0
      %v610 = vsel %vm252, %v170, 0
      %v613 = vsel %vm252, %v171, 0
      %v616 = vsel %vm252, %v172, 0
      %v619 = vsel %vm252, %v173, 0
      %v622 = vsel %vm252, %v174, 0
      %v625 = vsel %vm252, %v175, 0
      %v628 = vsel %vm252, %v176, 0
      %v631 = vsel %vm252, %v177, 0
      %v634 = vsel %vm252, %v178, 0
      %v637 = vsel %vm252, %v179, 0
      %v640 = vsel %vm252, %v180, 0
      %v643 = vsel %vm252, %v181, 0
      %v646 = vsel %vm252, %v182, 0
      %v649 = vsel %vm252, %v183, 0
      %v652 = vsel %vm252, %v184, 0
      %v655 = vsel %vm252, %v185, 0
      %v658 = vsel %vm252, %v186, 0
      %v661 = vsel %vm252, %v187, 0
      %v664 = vsel %vm252, %v188, 0
      %v667 = vsel %vm252, %v189, 0
      %v670 = vsel %vm252, %v190, 0
      %v673 = vsel %vm252, %v191, 0
      %v676 = vsel %vm252, %v192, 0
      %v679 = vsel %vm252, %v193, 0
      %v682 = vsel %vm252, %v194, 0
      %v685 = vsel %vm252, %v195, 0
      %v688 = vsel %vm252, %v196, 0
      %v691 = vsel %vm252, %v197, 0
      %v694 = vsel %vm252, %v198, 0
      %v697 = vsel %vm252, %v199, 0
      %v700 = vsel %vm252, %v200, 0
      %v703 = vsel %vm252, %v201, 0
      %v706 = vsel %vm252, %v202, 0
      %v709 = vsel %vm252, %v203, 0
      %v712 = vsel %vm252, %v204, 0
      %714 = vmatprep.subr.mxu0 0.0
      %715 = vmatpush1.msra.mxu0 %v205
      %716 = vmatprep.subr.mxu0 0.0
      %717 = vmatpush1.msra.mxu0 %v206
      %718 = vmatprep.subr.mxu0 0.0
      %719 = vmatpush1.msra.mxu0 %v207
      %720 = vmatprep.subr.mxu0 0.0
      %721 = vmatpush1.msra.mxu0 %v208
      %722 = vmatprep.subr.mxu0 0.0
      %723 = vmatpush1.msra.mxu0 0.0
      %724 = vmatprep.subr.mxu0 0.0
      %725 = vmatpush1.msra.mxu0 0.0
      %726 = vmatprep.subr.mxu0 0.0
      %727 = vmatpush1.msra.mxu0 0.0
      %728 = vmatprep.subr.mxu0 0.0
      %729 = vmatpush1.msra.mxu0 0.0
      %730 = vmatprep.subr.mxu0 0.0
      %731 = vmatpush1.msra.mxu0 0.0
      %732 = vmatprep.subr.mxu0 0.0
      %733 = vmatpush1.msra.mxu0 0.0
      %734 = vmatprep.subr.mxu0 0.0
      %735 = vmatpush1.msra.mxu0 0.0
      %736 = vmatprep.subr.mxu0 0.0
      %737 = vmatpush1.msra.mxu0 0.0
      %738 = vmatprep.subr.mxu0 0.0
      %739 = vmatpush1.msra.mxu0 0.0
      %740 = vmatprep.subr.mxu0 0.0
      %741 = vmatpush1.msra.mxu0 0.0
      %742 = vmatprep.subr.mxu0 0.0
      %743 = vmatpush1.msra.mxu0 0.0
      %744 = vmatprep.subr.mxu0 0.0
      %745 = vmatpush1.msra.mxu0 0.0
      %746 = vmatprep.subr.mxu0 0.0
      %747 = vmatpush1.msra.mxu0 0.0
      %748 = vmatprep.subr.mxu0 0.0
      %749 = vmatpush1.msra.mxu0 0.0
      %750 = vmatprep.subr.mxu0 0.0
      %751 = vmatpush1.msra.mxu0 0.0
      %752 = vmatprep.subr.mxu0 0.0
      %753 = vmatpush1.msra.mxu0 0.0
      %754 = vmatprep.subr.mxu0 0.0
      %755 = vmatpush1.msra.mxu0 0.0
      %756 = vmatprep.subr.mxu0 0.0
      %757 = vmatpush1.msra.mxu0 0.0
      %758 = vmatprep.subr.mxu0 0.0
      %759 = vmatpush1.msra.mxu0 0.0
      %760 = vmatprep.subr.mxu0 0.0
      %761 = vmatpush1.msra.mxu0 0.0
      %762 = vmatprep.subr.mxu0 0.0
      %763 = vmatpush1.msra.mxu0 0.0
      %764 = vmatprep.subr.mxu0 0.0
      %765 = vmatpush1.msra.mxu0 0.0
      %766 = vmatprep.subr.mxu0 0.0
      %767 = vmatpush1.msra.mxu0 0.0
      %768 = vmatprep.subr.mxu0 0.0
      %769 = vmatpush1.msra.mxu0 0.0
      %770 = vmatprep.subr.mxu0 0.0
      %771 = vmatpush1.msra.mxu0 0.0
      %772 = vmatprep.subr.mxu0 0.0
      %773 = vmatpush1.msra.mxu0 0.0
      %774 = vmatprep.subr.mxu0 0.0
      %775 = vmatpush1.msra.mxu0 0.0
      %776 = vmatprep.subr.mxu0 0.0
      %777 = vmatpush1.msra.mxu0 0.0
      %778 = vmatprep.mubr.f32.mxu0 0.0
      %779 = vmatmul.mubr.f32.gmra.mrb[0].mxu0 %v607
      %v780 = vpop.f32.mrb[0].mxu0
      %v781 = vadd.f32 %v428, %v780
      %v782 = vpop.f32.mrb[0].mxu0
      %783 = vmatprep.mubr.f32.mxu0 0.0
      %784 = vmatmul.mubr.f32.gmra.mrb[0].mxu0 %v610
      %v785 = vpop.f32.mrb[0].mxu0
      %v786 = vadd.f32 %v433, %v785
      %v787 = vpop.f32.mrb[0].mxu0
      %788 = vmatprep.mubr.f32.mxu0 0.0
      %789 = vmatmul.mubr.f32.gmra.mrb[0].mxu0 %v613
      %v790 = vpop.f32.mrb[0].mxu0
      %v791 = vadd.f32 %v438, %v790
      %v792 = vpop.f32.mrb[0].mxu0
      %793 = vmatprep.mubr.f32.mxu0 0.0
      %794 = vmatmul.mubr.f32.gmra.mrb[0].mxu0 %v616
      %v795 = vpop.f32.mrb[0].mxu0
      %v796 = vadd.f32 %v443, %v795
      %v797 = vpop.f32.mrb[0].mxu0
      %798 = vmatprep.mubr.f32.mxu0 0.0
      %799 = vmatmul.mubr.f32.gmra.mrb[0].mxu0 %v619
      %v800 = vpop.f32.mrb[0].mxu0
      %v801 = vadd.f32 %v448, %v800
      %v802 = vpop.f32.mrb[0].mxu0
      %803 = vmatprep.mubr.f32.mxu0 0.0
      %804 = vmatmul.mubr.f32.gmra.mrb[0].mxu0 %v622
      %v805 = vpop.f32.mrb[0].mxu0
      %v806 = vadd.f32 %v453, %v805
      %v807 = vpop.f32.mrb[0].mxu0
      %808 = vmatprep.mubr.f32.mxu0 0.0
      %809 = vmatmul.mubr.f32.gmra.mrb[0].mxu0 %v625
      %v810 = vpop.f32.mrb[0].mxu0
      %v811 = vadd.f32 %v458, %v810
      %v812 = vpop.f32.mrb[0].mxu0
      %813 = vmatprep.mubr.f32.mxu0 0.0
      %814 = vmatmul.mubr.f32.gmra.mrb[0].mxu0 %v628
      %v815 = vpop.f32.mrb[0].mxu0
      %v816 = vadd.f32 %v463, %v815
      %v817 = vpop.f32.mrb[0].mxu0
      %818 = vmatprep.mubr.f32.mxu0 0.0
      %819 = vmatmul.mubr.f32.gmra.mrb[0].mxu0 %v631
      %v820 = vpop.f32.mrb[0].mxu0
      %v821 = vadd.f32 %v468, %v820
      %v822 = vpop.f32.mrb[0].mxu0
      %823 = vmatprep.mubr.f32.mxu0 0.0
      %824 = vmatmul.mubr.f32.gmra.mrb[0].mxu0 %v634
      %v825 = vpop.f32.mrb[0].mxu0
      %v826 = vadd.f32 %v473, %v825
      %v827 = vpop.f32.mrb[0].mxu0
      %828 = vmatprep.mubr.f32.mxu0 0.0
      %829 = vmatmul.mubr.f32.gmra.mrb[0].mxu0 %v637
      %v830 = vpop.f32.mrb[0].mxu0
      %v831 = vadd.f32 %v478, %v830
      %v832 = vpop.f32.mrb[0].mxu0
      %833 = vmatprep.mubr.f32.mxu0 0.0
      %834 = vmatmul.mubr.f32.gmra.mrb[0].mxu0 %v640
      %v835 = vpop.f32.mrb[0].mxu0
      %v836 = vadd.f32 %v483, %v835
      %v837 = vpop.f32.mrb[0].mxu0
      %838 = vmatprep.mubr.f32.mxu0 0.0
      %839 = vmatmul.mubr.f32.gmra.mrb[0].mxu0 %v643
      %v840 = vpop.f32.mrb[0].mxu0
      %v841 = vadd.f32 %v488, %v840
      %v842 = vpop.f32.mrb[0].mxu0
      %843 = vmatprep.mubr.f32.mxu0 0.0
      %844 = vmatmul.mubr.f32.gmra.mrb[0].mxu0 %v646
      %v845 = vpop.f32.mrb[0].mxu0
      %v846 = vadd.f32 %v493, %v845
      %v847 = vpop.f32.mrb[0].mxu0
      %848 = vmatprep.mubr.f32.mxu0 0.0
      %849 = vmatmul.mubr.f32.gmra.mrb[0].mxu0 %v649
      %v850 = vpop.f32.mrb[0].mxu0
      %v851 = vadd.f32 %v498, %v850
      %v852 = vpop.f32.mrb[0].mxu0
      %853 = vmatprep.mubr.f32.mxu0 0.0
      %854 = vmatmul.mubr.f32.gmra.mrb[0].mxu0 %v652
      %v855 = vpop.f32.mrb[0].mxu0
      %v856 = vadd.f32 %v503, %v855
      %v857 = vpop.f32.mrb[0].mxu0
      %858 = vmatprep.mubr.f32.mxu0 0.0
      %859 = vmatmul.mubr.f32.gmra.mrb[0].mxu0 %v655
      %v860 = vpop.f32.mrb[0].mxu0
      %v861 = vadd.f32 %v508, %v860
      %v862 = vpop.f32.mrb[0].mxu0
      %863 = vmatprep.mubr.f32.mxu0 0.0
      %864 = vmatmul.mubr.f32.gmra.mrb[0].mxu0 %v658
      %v865 = vpop.f32.mrb[0].mxu0
      %v866 = vadd.f32 %v513, %v865
      %v867 = vpop.f32.mrb[0].mxu0
      %868 = vmatprep.mubr.f32.mxu0 0.0
      %869 = vmatmul.mubr.f32.gmra.mrb[0].mxu0 %v661
      %v870 = vpop.f32.mrb[0].mxu0
      %v871 = vadd.f32 %v518, %v870
      %v872 = vpop.f32.mrb[0].mxu0
      %873 = vmatprep.mubr.f32.mxu0 0.0
      %874 = vmatmul.mubr.f32.gmra.mrb[0].mxu0 %v664
      %v875 = vpop.f32.mrb[0].mxu0
      %v876 = vadd.f32 %v523, %v875
      %v877 = vpop.f32.mrb[0].mxu0
      %878 = vmatprep.mubr.f32.mxu0 0.0
      %879 = vmatmul.mubr.f32.gmra.mrb[0].mxu0 %v667
      %v880 = vpop.f32.mrb[0].mxu0
      %v881 = vadd.f32 %v528, %v880
      %v882 = vpop.f32.mrb[0].mxu0
      %883 = vmatprep.mubr.f32.mxu0 0.0
      %884 = vmatmul.mubr.f32.gmra.mrb[0].mxu0 %v670
      %v885 = vpop.f32.mrb[0].mxu0
      %v886 = vadd.f32 %v533, %v885
      %v887 = vpop.f32.mrb[0].mxu0
      %888 = vmatprep.mubr.f32.mxu0 0.0
      %889 = vmatmul.mubr.f32.gmra.mrb[0].mxu0 %v673
      %v890 = vpop.f32.mrb[0].mxu0
      %v891 = vadd.f32 %v538, %v890
      %v892 = vpop.f32.mrb[0].mxu0
      %893 = vmatprep.mubr.f32.mxu0 0.0
      %894 = vmatmul.mubr.f32.gmra.mrb[0].mxu0 %v676
      %v895 = vpop.f32.mrb[0].mxu0
      %v896 = vadd.f32 %v543, %v895
      %v897 = vpop.f32.mrb[0].mxu0
      %898 = vmatprep.mubr.f32.mxu0 0.0
      %899 = vmatmul.mubr.f32.gmra.mrb[0].mxu0 %v679
      %v900 = vpop.f32.mrb[0].mxu0
      %v901 = vadd.f32 %v548, %v900
      %v902 = vpop.f32.mrb[0].mxu0
      %903 = vmatprep.mubr.f32.mxu0 0.0
      %904 = vmatmul.mubr.f32.gmra.mrb[0].mxu0 %v682
      %v905 = vpop.f32.mrb[0].mxu0
      %v906 = vadd.f32 %v553, %v905
      %v907 = vpop.f32.mrb[0].mxu0
      %908 = vmatprep.mubr.f32.mxu0 0.0
      %909 = vmatmul.mubr.f32.gmra.mrb[0].mxu0 %v685
      %v910 = vpop.f32.mrb[0].mxu0
      %v911 = vadd.f32 %v558, %v910
      %v912 = vpop.f32.mrb[0].mxu0
      %913 = vmatprep.mubr.f32.mxu0 0.0
      %914 = vmatmul.mubr.f32.gmra.mrb[0].mxu0 %v688
      %v915 = vpop.f32.mrb[0].mxu0
      %v916 = vadd.f32 %v563, %v915
      %v917 = vpop.f32.mrb[0].mxu0
      %918 = vmatprep.mubr.f32.mxu0 0.0
      %919 = vmatmul.mubr.f32.gmra.mrb[0].mxu0 %v691
      %v920 = vpop.f32.mrb[0].mxu0
      %v921 = vadd.f32 %v568, %v920
      %v922 = vpop.f32.mrb[0].mxu0
      %923 = vmatprep.mubr.f32.mxu0 0.0
      %924 = vmatmul.mubr.f32.gmra.mrb[0].mxu0 %v694
      %v925 = vpop.f32.mrb[0].mxu0
      %v926 = vadd.f32 %v573, %v925
      %v927 = vpop.f32.mrb[0].mxu0
      %928 = vmatprep.mubr.f32.mxu0 0.0
      %929 = vmatmul.mubr.f32.gmra.mrb[0].mxu0 %v697
      %v930 = vpop.f32.mrb[0].mxu0
      %v931 = vadd.f32 %v578, %v930
      %v932 = vpop.f32.mrb[0].mxu0
      %933 = vmatprep.mubr.f32.mxu0 0.0
      %934 = vmatmul.mubr.f32.gmra.mrb[0].mxu0 %v700
      %v935 = vpop.f32.mrb[0].mxu0
      %v936 = vadd.f32 %v583, %v935
      %v937 = vpop.f32.mrb[0].mxu0
      %938 = vmatprep.mubr.f32.mxu0 0.0
      %939 = vmatmul.mubr.f32.gmra.mrb[0].mxu0 %v703
      %v940 = vpop.f32.mrb[0].mxu0
      %v941 = vadd.f32 %v588, %v940
      %v942 = vpop.f32.mrb[0].mxu0
      %943 = vmatprep.mubr.f32.mxu0 0.0
      %944 = vmatmul.mubr.f32.gmra.mrb[0].mxu0 %v706
      %v945 = vpop.f32.mrb[0].mxu0
      %v946 = vadd.f32 %v593, %v945
      %v947 = vpop.f32.mrb[0].mxu0
      %948 = vmatprep.mubr.f32.mxu0 0.0
      %949 = vmatmul.mubr.f32.gmra.mrb[0].mxu0 %v709
      %v950 = vpop.f32.mrb[0].mxu0
      %v951 = vadd.f32 %v598, %v950
      %v952 = vpop.f32.mrb[0].mxu0
      %953 = vmatprep.mubr.f32.mxu0 0.0
      %954 = vmatmul.mubr.f32.gmra.mrb[0].mxu0 %v712
      %v955 = vpop.f32.mrb[0].mxu0
      %v956 = vadd.f32 %v603, %v955
      %v957 = vpop.f32.mrb[0].mxu0
      %958 = vdwg.mxu0
      %s959 = sadd.s32 %s167, 2
      %s960 = scalar_lea.vmem %s156, %s959
      %v961 = vld [vmem:[%s960] sm:$0xff]
      %v962 = vld [vmem:[%s960 + $0x8] sm:$0xff]
      %v963 = vld [vmem:[%s960 + $0x10] sm:$0xff]
      %v964 = vld [vmem:[%s960 + $0x18] sm:$0xff]
      %v965 = vld [vmem:[%s960 + $0x20] sm:$0xff]
      %v966 = vld [vmem:[%s960 + $0x28] sm:$0xff]
      %v967 = vld [vmem:[%s960 + $0x30] sm:$0xff]
      %v968 = vld [vmem:[%s960 + $0x38] sm:$0xff]
      %v969 = vld [vmem:[%s960 + $0x40] sm:$0xff]
      %v970 = vld [vmem:[%s960 + $0x48] sm:$0xff]
      %v971 = vld [vmem:[%s960 + $0x50] sm:$0xff]
      %v972 = vld [vmem:[%s960 + $0x58] sm:$0xff]
      %v973 = vld [vmem:[%s960 + $0x60] sm:$0xff]
      %v974 = vld [vmem:[%s960 + $0x68] sm:$0xff]
      %v975 = vld [vmem:[%s960 + $0x70] sm:$0xff]
      %v976 = vld [vmem:[%s960 + $0x78] sm:$0xff]
      %v977 = vld [vmem:[%s960 + $0x80] sm:$0xff]
      %v978 = vld [vmem:[%s960 + $0x88] sm:$0xff]
      %v979 = vld [vmem:[%s960 + $0x90] sm:$0xff]
      %v980 = vld [vmem:[%s960 + $0x98] sm:$0xff]
      %v981 = vld [vmem:[%s960 + $0xa0] sm:$0xff]
      %v982 = vld [vmem:[%s960 + $0xa8] sm:$0xff]
      %v983 = vld [vmem:[%s960 + $0xb0] sm:$0xff]
      %v984 = vld [vmem:[%s960 + $0xb8] sm:$0xff]
      %v985 = vld [vmem:[%s960 + $0xc0] sm:$0xff]
      %v986 = vld [vmem:[%s960 + $0xc8] sm:$0xff]
      %v987 = vld [vmem:[%s960 + $0xd0] sm:$0xff]
      %v988 = vld [vmem:[%s960 + $0xd8] sm:$0xff]
      %v989 = vld [vmem:[%s960 + $0xe0] sm:$0xff]
      %v990 = vld [vmem:[%s960 + $0xe8] sm:$0xff]
      %v991 = vld [vmem:[%s960 + $0xf0] sm:$0xff]
      %v992 = vld [vmem:[%s960 + $0xf8] sm:$0xff]
      %v993 = vld [vmem:[%s960 + $0x100] sm:$0xff]
      %v994 = vld [vmem:[%s960 + $0x108] sm:$0xff]
      %v995 = vld [vmem:[%s960 + $0x110] sm:$0xff]
      %v996 = vld [vmem:[%s960 + $0x118] sm:$0xff]
      %s997 = scalar_lea.vmem %s1, 64
      %v998 = vld [vmem:[%s997] sm:$0xff]
      %v999 = vld [vmem:[%s997 + $0x8] sm:$0xff]
      %v1000 = vld [vmem:[%s997 + $0x10] sm:$0xff]
      %v1001 = vld [vmem:[%s997 + $0x18] sm:$0xff]
      %v1003 = vsel %vm252, %v961, 0
      %v1006 = vsel %vm252, %v962, 0
      %v1009 = vsel %vm252, %v963, 0
      %v1012 = vsel %vm252, %v964, 0
      %v1015 = vsel %vm252, %v965, 0
      %v1018 = vsel %vm252, %v966, 0
      %v1021 = vsel %vm252, %v967, 0
      %v1024 = vsel %vm252, %v968, 0
      %v1027 = vsel %vm252, %v969, 0
      %v1030 = vsel %vm252, %v970, 0
      %v1033 = vsel %vm252, %v971, 0
      %v1036 = vsel %vm252, %v972, 0
      %v1039 = vsel %vm252, %v973, 0
      %v1042 = vsel %vm252, %v974, 0
      %v1045 = vsel %vm252, %v975, 0
      %v1048 = vsel %vm252, %v976, 0
      %v1051 = vsel %vm252, %v977, 0
      %v1054 = vsel %vm252, %v978, 0
      %v1057 = vsel %vm252, %v979, 0
      %v1060 = vsel %vm252, %v980, 0
      %v1063 = vsel %vm252, %v981, 0
      %v1066 = vsel %vm252, %v982, 0
      %v1069 = vsel %vm252, %v983, 0
      %v1072 = vsel %vm252, %v984, 0
      %v1075 = vsel %vm252, %v985, 0
      %v1078 = vsel %vm252, %v986, 0
      %v1081 = vsel %vm252, %v987, 0
      %v1084 = vsel %vm252, %v988, 0
      %v1087 = vsel %vm252, %v989, 0
      %v1090 = vsel %vm252, %v990, 0
      %v1093 = vsel %vm252, %v991, 0
      %v1096 = vsel %vm252, %v992, 0
      %v1099 = vsel %vm252, %v993, 0
      %v1102 = vsel %vm252, %v994, 0
      %v1105 = vsel %vm252, %v995, 0
      %v1108 = vsel %vm252, %v996, 0
      %1110 = vmatprep.subr.mxu0 0.0
      %1111 = vmatpush1.msra.mxu0 %v998
      %1112 = vmatprep.subr.mxu0 0.0
      %1113 = vmatpush1.msra.mxu0 %v999
      %1114 = vmatprep.subr.mxu0 0.0
      %1115 = vmatpush1.msra.mxu0 %v1000
      %1116 = vmatprep.subr.mxu0 0.0
      %1117 = vmatpush1.msra.mxu0 %v1001
      %1118 = vmatprep.subr.mxu0 0.0
      %1119 = vmatpush1.msra.mxu0 0.0
      %1120 = vmatprep.subr.mxu0 0.0
      %1121 = vmatpush1.msra.mxu0 0.0
      %1122 = vmatprep.subr.mxu0 0.0
      %1123 = vmatpush1.msra.mxu0 0.0
      %1124 = vmatprep.subr.mxu0 0.0
      %1125 = vmatpush1.msra.mxu0 0.0
      %1126 = vmatprep.subr.mxu0 0.0
      %1127 = vmatpush1.msra.mxu0 0.0
      %1128 = vmatprep.subr.mxu0 0.0
      %1129 = vmatpush1.msra.mxu0 0.0
      %1130 = vmatprep.subr.mxu0 0.0
      %1131 = vmatpush1.msra.mxu0 0.0
      %1132 = vmatprep.subr.mxu0 0.0
      %1133 = vmatpush1.msra.mxu0 0.0
      %1134 = vmatprep.subr.mxu0 0.0
      %1135 = vmatpush1.msra.mxu0 0.0
      %1136 = vmatprep.subr.mxu0 0.0
      %1137 = vmatpush1.msra.mxu0 0.0
      %1138 = vmatprep.subr.mxu0 0.0
      %1139 = vmatpush1.msra.mxu0 0.0
      %1140 = vmatprep.subr.mxu0 0.0
      %1141 = vmatpush1.msra.mxu0 0.0
      %1142 = vmatprep.subr.mxu0 0.0
      %1143 = vmatpush1.msra.mxu0 0.0
      %1144 = vmatprep.subr.mxu0 0.0
      %1145 = vmatpush1.msra.mxu0 0.0
      %1146 = vmatprep.subr.mxu0 0.0
      %1147 = vmatpush1.msra.mxu0 0.0
      %1148 = vmatprep.subr.mxu0 0.0
      %1149 = vmatpush1.msra.mxu0 0.0
      %1150 = vmatprep.subr.mxu0 0.0
      %1151 = vmatpush1.msra.mxu0 0.0
      %1152 = vmatprep.subr.mxu0 0.0
      %1153 = vmatpush1.msra.mxu0 0.0
      %1154 = vmatprep.subr.mxu0 0.0
      %1155 = vmatpush1.msra.mxu0 0.0
      %1156 = vmatprep.subr.mxu0 0.0
      %1157 = vmatpush1.msra.mxu0 0.0
      %1158 = vmatprep.subr.mxu0 0.0
      %1159 = vmatpush1.msra.mxu0 0.0
      %1160 = vmatprep.subr.mxu0 0.0
      %1161 = vmatpush1.msra.mxu0 0.0
      %1162 = vmatprep.subr.mxu0 0.0
      %1163 = vmatpush1.msra.mxu0 0.0
      %1164 = vmatprep.subr.mxu0 0.0
      %1165 = vmatpush1.msra.mxu0 0.0
      %1166 = vmatprep.subr.mxu0 0.0
      %1167 = vmatpush1.msra.mxu0 0.0
      %1168 = vmatprep.subr.mxu0 0.0
      %1169 = vmatpush1.msra.mxu0 0.0
      %1170 = vmatprep.subr.mxu0 0.0
      %1171 = vmatpush1.msra.mxu0 0.0
      %1172 = vmatprep.subr.mxu0 0.0
      %1173 = vmatpush1.msra.mxu0 0.0
      %1174 = vmatprep.mubr.f32.mxu0 0.0
      %1175 = vmatmul.mubr.f32.gmra.mrb[0].mxu0 %v1003
      %v1176 = vpop.f32.mrb[0].mxu0
      %v1177 = vadd.f32 0.0, %v1176
      %v1178 = vpop.f32.mrb[0].mxu0
      %1179 = vmatprep.mubr.f32.mxu0 0.0
      %1180 = vmatmul.mubr.f32.gmra.mrb[0].mxu0 %v1006
      %v1181 = vpop.f32.mrb[0].mxu0
      %v1182 = vadd.f32 0.0, %v1181
      %v1183 = vpop.f32.mrb[0].mxu0
      %1184 = vmatprep.mubr.f32.mxu0 0.0
      %1185 = vmatmul.mubr.f32.gmra.mrb[0].mxu0 %v1009
      %v1186 = vpop.f32.mrb[0].mxu0
      %v1187 = vadd.f32 0.0, %v1186
      %v1188 = vpop.f32.mrb[0].mxu0
      %1189 = vmatprep.mubr.f32.mxu0 0.0
      %1190 = vmatmul.mubr.f32.gmra.mrb[0].mxu0 %v1012
      %v1191 = vpop.f32.mrb[0].mxu0
      %v1192 = vadd.f32 0.0, %v1191
      %v1193 = vpop.f32.mrb[0].mxu0
      %1194 = vmatprep.mubr.f32.mxu0 0.0
      %1195 = vmatmul.mubr.f32.gmra.mrb[0].mxu0 %v1015
      %v1196 = vpop.f32.mrb[0].mxu0
      %v1197 = vadd.f32 0.0, %v1196
      %v1198 = vpop.f32.mrb[0].mxu0
      %1199 = vmatprep.mubr.f32.mxu0 0.0
      %1200 = vmatmul.mubr.f32.gmra.mrb[0].mxu0 %v1018
      %v1201 = vpop.f32.mrb[0].mxu0
      %v1202 = vadd.f32 0.0, %v1201
      %v1203 = vpop.f32.mrb[0].mxu0
      %1204 = vmatprep.mubr.f32.mxu0 0.0
      %1205 = vmatmul.mubr.f32.gmra.mrb[0].mxu0 %v1021
      %v1206 = vpop.f32.mrb[0].mxu0
      %v1207 = vadd.f32 0.0, %v1206
      %v1208 = vpop.f32.mrb[0].mxu0
      %1209 = vmatprep.mubr.f32.mxu0 0.0
      %1210 = vmatmul.mubr.f32.gmra.mrb[0].mxu0 %v1024
      %v1211 = vpop.f32.mrb[0].mxu0
      %v1212 = vadd.f32 0.0, %v1211
      %v1213 = vpop.f32.mrb[0].mxu0
      %1214 = vmatprep.mubr.f32.mxu0 0.0
      %1215 = vmatmul.mubr.f32.gmra.mrb[0].mxu0 %v1027
      %v1216 = vpop.f32.mrb[0].mxu0
      %v1217 = vadd.f32 0.0, %v1216
      %v1218 = vpop.f32.mrb[0].mxu0
      %1219 = vmatprep.mubr.f32.mxu0 0.0
      %1220 = vmatmul.mubr.f32.gmra.mrb[0].mxu0 %v1030
      %v1221 = vpop.f32.mrb[0].mxu0
      %v1222 = vadd.f32 0.0, %v1221
      %v1223 = vpop.f32.mrb[0].mxu0
      %1224 = vmatprep.mubr.f32.mxu0 0.0
      %1225 = vmatmul.mubr.f32.gmra.mrb[0].mxu0 %v1033
      %v1226 = vpop.f32.mrb[0].mxu0
      %v1227 = vadd.f32 0.0, %v1226
      %v1228 = vpop.f32.mrb[0].mxu0
      %1229 = vmatprep.mubr.f32.mxu0 0.0
      %1230 = vmatmul.mubr.f32.gmra.mrb[0].mxu0 %v1036
      %v1231 = vpop.f32.mrb[0].mxu0
      %v1232 = vadd.f32 0.0, %v1231
      %v1233 = vpop.f32.mrb[0].mxu0
      %1234 = vmatprep.mubr.f32.mxu0 0.0
      %1235 = vmatmul.mubr.f32.gmra.mrb[0].mxu0 %v1039
      %v1236 = vpop.f32.mrb[0].mxu0
      %v1237 = vadd.f32 0.0, %v1236
      %v1238 = vpop.f32.mrb[0].mxu0
      %1239 = vmatprep.mubr.f32.mxu0 0.0
      %1240 = vmatmul.mubr.f32.gmra.mrb[0].mxu0 %v1042
      %v1241 = vpop.f32.mrb[0].mxu0
      %v1242 = vadd.f32 0.0, %v1241
      %v1243 = vpop.f32.mrb[0].mxu0
      %1244 = vmatprep.mubr.f32.mxu0 0.0
      %1245 = vmatmul.mubr.f32.gmra.mrb[0].mxu0 %v1045
      %v1246 = vpop.f32.mrb[0].mxu0
      %v1247 = vadd.f32 0.0, %v1246
      %v1248 = vpop.f32.mrb[0].mxu0
      %1249 = vmatprep.mubr.f32.mxu0 0.0
      %1250 = vmatmul.mubr.f32.gmra.mrb[0].mxu0 %v1048
      %v1251 = vpop.f32.mrb[0].mxu0
      %v1252 = vadd.f32 0.0, %v1251
      %v1253 = vpop.f32.mrb[0].mxu0
      %1254 = vmatprep.mubr.f32.mxu0 0.0
      %1255 = vmatmul.mubr.f32.gmra.mrb[0].mxu0 %v1051
      %v1256 = vpop.f32.mrb[0].mxu0
      %v1257 = vadd.f32 0.0, %v1256
      %v1258 = vpop.f32.mrb[0].mxu0
      %1259 = vmatprep.mubr.f32.mxu0 0.0
      %1260 = vmatmul.mubr.f32.gmra.mrb[0].mxu0 %v1054
      %v1261 = vpop.f32.mrb[0].mxu0
      %v1262 = vadd.f32 0.0, %v1261
      %v1263 = vpop.f32.mrb[0].mxu0
      %1264 = vmatprep.mubr.f32.mxu0 0.0
      %1265 = vmatmul.mubr.f32.gmra.mrb[0].mxu0 %v1057
      %v1266 = vpop.f32.mrb[0].mxu0
      %v1267 = vadd.f32 0.0, %v1266
      %v1268 = vpop.f32.mrb[0].mxu0
      %1269 = vmatprep.mubr.f32.mxu0 0.0
      %1270 = vmatmul.mubr.f32.gmra.mrb[0].mxu0 %v1060
      %v1271 = vpop.f32.mrb[0].mxu0
      %v1272 = vadd.f32 0.0, %v1271
      %v1273 = vpop.f32.mrb[0].mxu0
      %1274 = vmatprep.mubr.f32.mxu0 0.0
      %1275 = vmatmul.mubr.f32.gmra.mrb[0].mxu0 %v1063
      %v1276 = vpop.f32.mrb[0].mxu0
      %v1277 = vadd.f32 0.0, %v1276
      %v1278 = vpop.f32.mrb[0].mxu0
      %1279 = vmatprep.mubr.f32.mxu0 0.0
      %1280 = vmatmul.mubr.f32.gmra.mrb[0].mxu0 %v1066
      %v1281 = vpop.f32.mrb[0].mxu0
      %v1282 = vadd.f32 0.0, %v1281
      %v1283 = vpop.f32.mrb[0].mxu0
      %1284 = vmatprep.mubr.f32.mxu0 0.0
      %1285 = vmatmul.mubr.f32.gmra.mrb[0].mxu0 %v1069
      %v1286 = vpop.f32.mrb[0].mxu0
      %v1287 = vadd.f32 0.0, %v1286
      %v1288 = vpop.f32.mrb[0].mxu0
      %1289 = vmatprep.mubr.f32.mxu0 0.0
      %1290 = vmatmul.mubr.f32.gmra.mrb[0].mxu0 %v1072
      %v1291 = vpop.f32.mrb[0].mxu0
      %v1292 = vadd.f32 0.0, %v1291
      %v1293 = vpop.f32.mrb[0].mxu0
      %1294 = vmatprep.mubr.f32.mxu0 0.0
      %1295 = vmatmul.mubr.f32.gmra.mrb[0].mxu0 %v1075
      %v1296 = vpop.f32.mrb[0].mxu0
      %v1297 = vadd.f32 0.0, %v1296
      %v1298 = vpop.f32.mrb[0].mxu0
      %1299 = vmatprep.mubr.f32.mxu0 0.0
      %1300 = vmatmul.mubr.f32.gmra.mrb[0].mxu0 %v1078
      %v1301 = vpop.f32.mrb[0].mxu0
      %v1302 = vadd.f32 0.0, %v1301
      %v1303 = vpop.f32.mrb[0].mxu0
      %1304 = vmatprep.mubr.f32.mxu0 0.0
      %1305 = vmatmul.mubr.f32.gmra.mrb[0].mxu0 %v1081
      %v1306 = vpop.f32.mrb[0].mxu0
      %v1307 = vadd.f32 0.0, %v1306
      %v1308 = vpop.f32.mrb[0].mxu0
      %1309 = vmatprep.mubr.f32.mxu0 0.0
      %1310 = vmatmul.mubr.f32.gmra.mrb[0].mxu0 %v1084
      %v1311 = vpop.f32.mrb[0].mxu0
      %v1312 = vadd.f32 0.0, %v1311
      %v1313 = vpop.f32.mrb[0].mxu0
      %1314 = vmatprep.mubr.f32.mxu0 0.0
      %1315 = vmatmul.mubr.f32.gmra.mrb[0].mxu0 %v1087
      %v1316 = vpop.f32.mrb[0].mxu0
      %v1317 = vadd.f32 0.0, %v1316
      %v1318 = vpop.f32.mrb[0].mxu0
      %1319 = vmatprep.mubr.f32.mxu0 0.0
      %1320 = vmatmul.mubr.f32.gmra.mrb[0].mxu0 %v1090
      %v1321 = vpop.f32.mrb[0].mxu0
      %v1322 = vadd.f32 0.0, %v1321
      %v1323 = vpop.f32.mrb[0].mxu0
      %1324 = vmatprep.mubr.f32.mxu0 0.0
      %1325 = vmatmul.mubr.f32.gmra.mrb[0].mxu0 %v1093
      %v1326 = vpop.f32.mrb[0].mxu0
      %v1327 = vadd.f32 0.0, %v1326
      %v1328 = vpop.f32.mrb[0].mxu0
      %1329 = vmatprep.mubr.f32.mxu0 0.0
      %1330 = vmatmul.mubr.f32.gmra.mrb[0].mxu0 %v1096
      %v1331 = vpop.f32.mrb[0].mxu0
      %v1332 = vadd.f32 0.0, %v1331
      %v1333 = vpop.f32.mrb[0].mxu0
      %1334 = vmatprep.mubr.f32.mxu0 0.0
      %1335 = vmatmul.mubr.f32.gmra.mrb[0].mxu0 %v1099
      %v1336 = vpop.f32.mrb[0].mxu0
      %v1337 = vadd.f32 0.0, %v1336
      %v1338 = vpop.f32.mrb[0].mxu0
      %1339 = vmatprep.mubr.f32.mxu0 0.0
      %1340 = vmatmul.mubr.f32.gmra.mrb[0].mxu0 %v1102
      %v1341 = vpop.f32.mrb[0].mxu0
      %v1342 = vadd.f32 0.0, %v1341
      %v1343 = vpop.f32.mrb[0].mxu0
      %1344 = vmatprep.mubr.f32.mxu0 0.0
      %1345 = vmatmul.mubr.f32.gmra.mrb[0].mxu0 %v1105
      %v1346 = vpop.f32.mrb[0].mxu0
      %v1347 = vadd.f32 0.0, %v1346
      %v1348 = vpop.f32.mrb[0].mxu0
      %1349 = vmatprep.mubr.f32.mxu0 0.0
      %1350 = vmatmul.mubr.f32.gmra.mrb[0].mxu0 %v1108
      %v1351 = vpop.f32.mrb[0].mxu0
      %v1352 = vadd.f32 0.0, %v1351
      %v1353 = vpop.f32.mrb[0].mxu0
      %1354 = vdwg.mxu0
      %v1355 = vadd.f32 %v781, %v1177
      %v1356 = vadd.f32 %v786, %v1182
      %v1357 = vadd.f32 %v791, %v1187
      %v1358 = vadd.f32 %v796, %v1192
      %v1359 = vadd.f32 %v801, %v1197
      %v1360 = vadd.f32 %v806, %v1202
      %v1361 = vadd.f32 %v811, %v1207
      %v1362 = vadd.f32 %v816, %v1212
      %v1363 = vadd.f32 %v821, %v1217
      %v1364 = vadd.f32 %v826, %v1222
      %v1365 = vadd.f32 %v831, %v1227
      %v1366 = vadd.f32 %v836, %v1232
      %v1367 = vadd.f32 %v841, %v1237
      %v1368 = vadd.f32 %v846, %v1242
      %v1369 = vadd.f32 %v851, %v1247
      %v1370 = vadd.f32 %v856, %v1252
      %v1371 = vadd.f32 %v861, %v1257
      %v1372 = vadd.f32 %v866, %v1262
      %v1373 = vadd.f32 %v871, %v1267
      %v1374 = vadd.f32 %v876, %v1272
      %v1375 = vadd.f32 %v881, %v1277
      %v1376 = vadd.f32 %v886, %v1282
      %v1377 = vadd.f32 %v891, %v1287
      %v1378 = vadd.f32 %v896, %v1292
      %v1379 = vadd.f32 %v901, %v1297
      %v1380 = vadd.f32 %v906, %v1302
      %v1381 = vadd.f32 %v911, %v1307
      %v1382 = vadd.f32 %v916, %v1312
      %v1383 = vadd.f32 %v921, %v1317
      %v1384 = vadd.f32 %v926, %v1322
      %v1385 = vadd.f32 %v931, %v1327
      %v1386 = vadd.f32 %v936, %v1332
      %v1387 = vadd.f32 %v941, %v1337
      %v1388 = vadd.f32 %v946, %v1342
      %v1389 = vadd.f32 %v951, %v1347
      %v1390 = vadd.f32 %v956, %v1352
      %s1391 = sadd.s32 %s167, 18
      %s1392 = scalar_lea.vmem %s156, %s1391
      %v1393 = vld [vmem:[%s1392] sm:$0xff]
      %v1394 = vld [vmem:[%s1392 + $0x8] sm:$0xff]
      %v1395 = vld [vmem:[%s1392 + $0x10] sm:$0xff]
      %v1396 = vld [vmem:[%s1392 + $0x18] sm:$0xff]
      %v1397 = vld [vmem:[%s1392 + $0x20] sm:$0xff]
      %v1398 = vld [vmem:[%s1392 + $0x28] sm:$0xff]
      %v1399 = vld [vmem:[%s1392 + $0x30] sm:$0xff]
      %v1400 = vld [vmem:[%s1392 + $0x38] sm:$0xff]
      %v1401 = vld [vmem:[%s1392 + $0x40] sm:$0xff]
      %v1402 = vld [vmem:[%s1392 + $0x48] sm:$0xff]
      %v1403 = vld [vmem:[%s1392 + $0x50] sm:$0xff]
      %v1404 = vld [vmem:[%s1392 + $0x58] sm:$0xff]
      %v1405 = vld [vmem:[%s1392 + $0x60] sm:$0xff]
      %v1406 = vld [vmem:[%s1392 + $0x68] sm:$0xff]
      %v1407 = vld [vmem:[%s1392 + $0x70] sm:$0xff]
      %v1408 = vld [vmem:[%s1392 + $0x78] sm:$0xff]
      %v1409 = vld [vmem:[%s1392 + $0x80] sm:$0xff]
      %v1410 = vld [vmem:[%s1392 + $0x88] sm:$0xff]
      %v1411 = vld [vmem:[%s1392 + $0x90] sm:$0xff]
      %v1412 = vld [vmem:[%s1392 + $0x98] sm:$0xff]
      %v1413 = vld [vmem:[%s1392 + $0xa0] sm:$0xff]
      %v1414 = vld [vmem:[%s1392 + $0xa8] sm:$0xff]
      %v1415 = vld [vmem:[%s1392 + $0xb0] sm:$0xff]
      %v1416 = vld [vmem:[%s1392 + $0xb8] sm:$0xff]
      %v1417 = vld [vmem:[%s1392 + $0xc0] sm:$0xff]
      %v1418 = vld [vmem:[%s1392 + $0xc8] sm:$0xff]
      %v1419 = vld [vmem:[%s1392 + $0xd0] sm:$0xff]
      %v1420 = vld [vmem:[%s1392 + $0xd8] sm:$0xff]
      %v1421 = vld [vmem:[%s1392 + $0xe0] sm:$0xff]
      %v1422 = vld [vmem:[%s1392 + $0xe8] sm:$0xff]
      %v1423 = vld [vmem:[%s1392 + $0xf0] sm:$0xff]
      %v1424 = vld [vmem:[%s1392 + $0xf8] sm:$0xff]
      %v1425 = vld [vmem:[%s1392 + $0x100] sm:$0xff]
      %v1426 = vld [vmem:[%s1392 + $0x108] sm:$0xff]
      %v1427 = vld [vmem:[%s1392 + $0x110] sm:$0xff]
      %v1428 = vld [vmem:[%s1392 + $0x118] sm:$0xff]
      %s1429 = scalar_lea.vmem %s1, 96
      %v1430 = vld [vmem:[%s1429] sm:$0xff]
      %v1431 = vld [vmem:[%s1429 + $0x8] sm:$0xff]
      %v1432 = vld [vmem:[%s1429 + $0x10] sm:$0xff]
      %v1433 = vld [vmem:[%s1429 + $0x18] sm:$0xff]
      %v1435 = vsel %vm252, %v1393, 0
      %v1438 = vsel %vm252, %v1394, 0
      %v1441 = vsel %vm252, %v1395, 0
      %v1444 = vsel %vm252, %v1396, 0
      %v1447 = vsel %vm252, %v1397, 0
      %v1450 = vsel %vm252, %v1398, 0
      %v1453 = vsel %vm252, %v1399, 0
      %v1456 = vsel %vm252, %v1400, 0
      %v1459 = vsel %vm252, %v1401, 0
      %v1462 = vsel %vm252, %v1402, 0
      %v1465 = vsel %vm252, %v1403, 0
      %v1468 = vsel %vm252, %v1404, 0
      %v1471 = vsel %vm252, %v1405, 0
      %v1474 = vsel %vm252, %v1406, 0
      %v1477 = vsel %vm252, %v1407, 0
      %v1480 = vsel %vm252, %v1408, 0
      %v1483 = vsel %vm252, %v1409, 0
      %v1486 = vsel %vm252, %v1410, 0
      %v1489 = vsel %vm252, %v1411, 0
      %v1492 = vsel %vm252, %v1412, 0
      %v1495 = vsel %vm252, %v1413, 0
      %v1498 = vsel %vm252, %v1414, 0
      %v1501 = vsel %vm252, %v1415, 0
      %v1504 = vsel %vm252, %v1416, 0
      %v1507 = vsel %vm252, %v1417, 0
      %v1510 = vsel %vm252, %v1418, 0
      %v1513 = vsel %vm252, %v1419, 0
      %v1516 = vsel %vm252, %v1420, 0
      %v1519 = vsel %vm252, %v1421, 0
      %v1522 = vsel %vm252, %v1422, 0
      %v1525 = vsel %vm252, %v1423, 0
      %v1528 = vsel %vm252, %v1424, 0
      %v1531 = vsel %vm252, %v1425, 0
      %v1534 = vsel %vm252, %v1426, 0
      %v1537 = vsel %vm252, %v1427, 0
      %v1540 = vsel %vm252, %v1428, 0
      %1542 = vmatprep.subr.mxu0 0.0
      %1543 = vmatpush1.msra.mxu0 %v1430
      %1544 = vmatprep.subr.mxu0 0.0
      %1545 = vmatpush1.msra.mxu0 %v1431
      %1546 = vmatprep.subr.mxu0 0.0
      %1547 = vmatpush1.msra.mxu0 %v1432
      %1548 = vmatprep.subr.mxu0 0.0
      %1549 = vmatpush1.msra.mxu0 %v1433
      %1550 = vmatprep.subr.mxu0 0.0
      %1551 = vmatpush1.msra.mxu0 0.0
      %1552 = vmatprep.subr.mxu0 0.0
      %1553 = vmatpush1.msra.mxu0 0.0
      %1554 = vmatprep.subr.mxu0 0.0
      %1555 = vmatpush1.msra.mxu0 0.0
      %1556 = vmatprep.subr.mxu0 0.0
      %1557 = vmatpush1.msra.mxu0 0.0
      %1558 = vmatprep.subr.mxu0 0.0
      %1559 = vmatpush1.msra.mxu0 0.0
      %1560 = vmatprep.subr.mxu0 0.0
      %1561 = vmatpush1.msra.mxu0 0.0
      %1562 = vmatprep.subr.mxu0 0.0
      %1563 = vmatpush1.msra.mxu0 0.0
      %1564 = vmatprep.subr.mxu0 0.0
      %1565 = vmatpush1.msra.mxu0 0.0
      %1566 = vmatprep.subr.mxu0 0.0
      %1567 = vmatpush1.msra.mxu0 0.0
      %1568 = vmatprep.subr.mxu0 0.0
      %1569 = vmatpush1.msra.mxu0 0.0
      %1570 = vmatprep.subr.mxu0 0.0
      %1571 = vmatpush1.msra.mxu0 0.0
      %1572 = vmatprep.subr.mxu0 0.0
      %1573 = vmatpush1.msra.mxu0 0.0
      %1574 = vmatprep.subr.mxu0 0.0
      %1575 = vmatpush1.msra.mxu0 0.0
      %1576 = vmatprep.subr.mxu0 0.0
      %1577 = vmatpush1.msra.mxu0 0.0
      %1578 = vmatprep.subr.mxu0 0.0
      %1579 = vmatpush1.msra.mxu0 0.0
      %1580 = vmatprep.subr.mxu0 0.0
      %1581 = vmatpush1.msra.mxu0 0.0
      %1582 = vmatprep.subr.mxu0 0.0
      %1583 = vmatpush1.msra.mxu0 0.0
      %1584 = vmatprep.subr.mxu0 0.0
      %1585 = vmatpush1.msra.mxu0 0.0
      %1586 = vmatprep.subr.mxu0 0.0
      %1587 = vmatpush1.msra.mxu0 0.0
      %1588 = vmatprep.subr.mxu0 0.0
      %1589 = vmatpush1.msra.mxu0 0.0
      %1590 = vmatprep.subr.mxu0 0.0
      %1591 = vmatpush1.msra.mxu0 0.0
      %1592 = vmatprep.subr.mxu0 0.0
      %1593 = vmatpush1.msra.mxu0 0.0
      %1594 = vmatprep.subr.mxu0 0.0
      %1595 = vmatpush1.msra.mxu0 0.0
      %1596 = vmatprep.subr.mxu0 0.0
      %1597 = vmatpush1.msra.mxu0 0.0
      %1598 = vmatprep.subr.mxu0 0.0
      %1599 = vmatpush1.msra.mxu0 0.0
      %1600 = vmatprep.subr.mxu0 0.0
      %1601 = vmatpush1.msra.mxu0 0.0
      %1602 = vmatprep.subr.mxu0 0.0
      %1603 = vmatpush1.msra.mxu0 0.0
      %1604 = vmatprep.subr.mxu0 0.0
      %1605 = vmatpush1.msra.mxu0 0.0
      %1606 = vmatprep.mubr.f32.mxu0 0.0
      %1607 = vmatmul.mubr.f32.gmra.mrb[0].mxu0 %v1435
      %v1608 = vpop.f32.mrb[0].mxu0
      %v1609 = vadd.f32 0.0, %v1608
      %v1610 = vpop.f32.mrb[0].mxu0
      %1611 = vmatprep.mubr.f32.mxu0 0.0
      %1612 = vmatmul.mubr.f32.gmra.mrb[0].mxu0 %v1438
      %v1613 = vpop.f32.mrb[0].mxu0
      %v1614 = vadd.f32 0.0, %v1613
      %v1615 = vpop.f32.mrb[0].mxu0
      %1616 = vmatprep.mubr.f32.mxu0 0.0
      %1617 = vmatmul.mubr.f32.gmra.mrb[0].mxu0 %v1441
      %v1618 = vpop.f32.mrb[0].mxu0
      %v1619 = vadd.f32 0.0, %v1618
      %v1620 = vpop.f32.mrb[0].mxu0
      %1621 = vmatprep.mubr.f32.mxu0 0.0
      %1622 = vmatmul.mubr.f32.gmra.mrb[0].mxu0 %v1444
      %v1623 = vpop.f32.mrb[0].mxu0
      %v1624 = vadd.f32 0.0, %v1623
      %v1625 = vpop.f32.mrb[0].mxu0
      %1626 = vmatprep.mubr.f32.mxu0 0.0
      %1627 = vmatmul.mubr.f32.gmra.mrb[0].mxu0 %v1447
      %v1628 = vpop.f32.mrb[0].mxu0
      %v1629 = vadd.f32 0.0, %v1628
      %v1630 = vpop.f32.mrb[0].mxu0
      %1631 = vmatprep.mubr.f32.mxu0 0.0
      %1632 = vmatmul.mubr.f32.gmra.mrb[0].mxu0 %v1450
      %v1633 = vpop.f32.mrb[0].mxu0
      %v1634 = vadd.f32 0.0, %v1633
      %v1635 = vpop.f32.mrb[0].mxu0
      %1636 = vmatprep.mubr.f32.mxu0 0.0
      %1637 = vmatmul.mubr.f32.gmra.mrb[0].mxu0 %v1453
      %v1638 = vpop.f32.mrb[0].mxu0
      %v1639 = vadd.f32 0.0, %v1638
      %v1640 = vpop.f32.mrb[0].mxu0
      %1641 = vmatprep.mubr.f32.mxu0 0.0
      %1642 = vmatmul.mubr.f32.gmra.mrb[0].mxu0 %v1456
      %v1643 = vpop.f32.mrb[0].mxu0
      %v1644 = vadd.f32 0.0, %v1643
      %v1645 = vpop.f32.mrb[0].mxu0
      %1646 = vmatprep.mubr.f32.mxu0 0.0
      %1647 = vmatmul.mubr.f32.gmra.mrb[0].mxu0 %v1459
      %v1648 = vpop.f32.mrb[0].mxu0
      %v1649 = vadd.f32 0.0, %v1648
      %v1650 = vpop.f32.mrb[0].mxu0
      %1651 = vmatprep.mubr.f32.mxu0 0.0
      %1652 = vmatmul.mubr.f32.gmra.mrb[0].mxu0 %v1462
      %v1653 = vpop.f32.mrb[0].mxu0
      %v1654 = vadd.f32 0.0, %v1653
      %v1655 = vpop.f32.mrb[0].mxu0
      %1656 = vmatprep.mubr.f32.mxu0 0.0
      %1657 = vmatmul.mubr.f32.gmra.mrb[0].mxu0 %v1465
      %v1658 = vpop.f32.mrb[0].mxu0
      %v1659 = vadd.f32 0.0, %v1658
      %v1660 = vpop.f32.mrb[0].mxu0
      %1661 = vmatprep.mubr.f32.mxu0 0.0
      %1662 = vmatmul.mubr.f32.gmra.mrb[0].mxu0 %v1468
      %v1663 = vpop.f32.mrb[0].mxu0
      %v1664 = vadd.f32 0.0, %v1663
      %v1665 = vpop.f32.mrb[0].mxu0
      %1666 = vmatprep.mubr.f32.mxu0 0.0
      %1667 = vmatmul.mubr.f32.gmra.mrb[0].mxu0 %v1471
      %v1668 = vpop.f32.mrb[0].mxu0
      %v1669 = vadd.f32 0.0, %v1668
      %v1670 = vpop.f32.mrb[0].mxu0
      %1671 = vmatprep.mubr.f32.mxu0 0.0
      %1672 = vmatmul.mubr.f32.gmra.mrb[0].mxu0 %v1474
      %v1673 = vpop.f32.mrb[0].mxu0
      %v1674 = vadd.f32 0.0, %v1673
      %v1675 = vpop.f32.mrb[0].mxu0
      %1676 = vmatprep.mubr.f32.mxu0 0.0
      %1677 = vmatmul.mubr.f32.gmra.mrb[0].mxu0 %v1477
      %v1678 = vpop.f32.mrb[0].mxu0
      %v1679 = vadd.f32 0.0, %v1678
      %v1680 = vpop.f32.mrb[0].mxu0
      %1681 = vmatprep.mubr.f32.mxu0 0.0
      %1682 = vmatmul.mubr.f32.gmra.mrb[0].mxu0 %v1480
      %v1683 = vpop.f32.mrb[0].mxu0
      %v1684 = vadd.f32 0.0, %v1683
      %v1685 = vpop.f32.mrb[0].mxu0
      %1686 = vmatprep.mubr.f32.mxu0 0.0
      %1687 = vmatmul.mubr.f32.gmra.mrb[0].mxu0 %v1483
      %v1688 = vpop.f32.mrb[0].mxu0
      %v1689 = vadd.f32 0.0, %v1688
      %v1690 = vpop.f32.mrb[0].mxu0
      %1691 = vmatprep.mubr.f32.mxu0 0.0
      %1692 = vmatmul.mubr.f32.gmra.mrb[0].mxu0 %v1486
      %v1693 = vpop.f32.mrb[0].mxu0
      %v1694 = vadd.f32 0.0, %v1693
      %v1695 = vpop.f32.mrb[0].mxu0
      %1696 = vmatprep.mubr.f32.mxu0 0.0
      %1697 = vmatmul.mubr.f32.gmra.mrb[0].mxu0 %v1489
      %v1698 = vpop.f32.mrb[0].mxu0
      %v1699 = vadd.f32 0.0, %v1698
      %v1700 = vpop.f32.mrb[0].mxu0
      %1701 = vmatprep.mubr.f32.mxu0 0.0
      %1702 = vmatmul.mubr.f32.gmra.mrb[0].mxu0 %v1492
      %v1703 = vpop.f32.mrb[0].mxu0
      %v1704 = vadd.f32 0.0, %v1703
      %v1705 = vpop.f32.mrb[0].mxu0
      %1706 = vmatprep.mubr.f32.mxu0 0.0
      %1707 = vmatmul.mubr.f32.gmra.mrb[0].mxu0 %v1495
      %v1708 = vpop.f32.mrb[0].mxu0
      %v1709 = vadd.f32 0.0, %v1708
      %v1710 = vpop.f32.mrb[0].mxu0
      %1711 = vmatprep.mubr.f32.mxu0 0.0
      %1712 = vmatmul.mubr.f32.gmra.mrb[0].mxu0 %v1498
      %v1713 = vpop.f32.mrb[0].mxu0
      %v1714 = vadd.f32 0.0, %v1713
      %v1715 = vpop.f32.mrb[0].mxu0
      %1716 = vmatprep.mubr.f32.mxu0 0.0
      %1717 = vmatmul.mubr.f32.gmra.mrb[0].mxu0 %v1501
      %v1718 = vpop.f32.mrb[0].mxu0
      %v1719 = vadd.f32 0.0, %v1718
      %v1720 = vpop.f32.mrb[0].mxu0
      %1721 = vmatprep.mubr.f32.mxu0 0.0
      %1722 = vmatmul.mubr.f32.gmra.mrb[0].mxu0 %v1504
      %v1723 = vpop.f32.mrb[0].mxu0
      %v1724 = vadd.f32 0.0, %v1723
      %v1725 = vpop.f32.mrb[0].mxu0
      %1726 = vmatprep.mubr.f32.mxu0 0.0
      %1727 = vmatmul.mubr.f32.gmra.mrb[0].mxu0 %v1507
      %v1728 = vpop.f32.mrb[0].mxu0
      %v1729 = vadd.f32 0.0, %v1728
      %v1730 = vpop.f32.mrb[0].mxu0
      %1731 = vmatprep.mubr.f32.mxu0 0.0
      %1732 = vmatmul.mubr.f32.gmra.mrb[0].mxu0 %v1510
      %v1733 = vpop.f32.mrb[0].mxu0
      %v1734 = vadd.f32 0.0, %v1733
      %v1735 = vpop.f32.mrb[0].mxu0
      %1736 = vmatprep.mubr.f32.mxu0 0.0
      %1737 = vmatmul.mubr.f32.gmra.mrb[0].mxu0 %v1513
      %v1738 = vpop.f32.mrb[0].mxu0
      %v1739 = vadd.f32 0.0, %v1738
      %v1740 = vpop.f32.mrb[0].mxu0
      %1741 = vmatprep.mubr.f32.mxu0 0.0
      %1742 = vmatmul.mubr.f32.gmra.mrb[0].mxu0 %v1516
      %v1743 = vpop.f32.mrb[0].mxu0
      %v1744 = vadd.f32 0.0, %v1743
      %v1745 = vpop.f32.mrb[0].mxu0
      %1746 = vmatprep.mubr.f32.mxu0 0.0
      %1747 = vmatmul.mubr.f32.gmra.mrb[0].mxu0 %v1519
      %v1748 = vpop.f32.mrb[0].mxu0
      %v1749 = vadd.f32 0.0, %v1748
      %v1750 = vpop.f32.mrb[0].mxu0
      %1751 = vmatprep.mubr.f32.mxu0 0.0
      %1752 = vmatmul.mubr.f32.gmra.mrb[0].mxu0 %v1522
      %v1753 = vpop.f32.mrb[0].mxu0
      %v1754 = vadd.f32 0.0, %v1753
      %v1755 = vpop.f32.mrb[0].mxu0
      %1756 = vmatprep.mubr.f32.mxu0 0.0
      %1757 = vmatmul.mubr.f32.gmra.mrb[0].mxu0 %v1525
      %v1758 = vpop.f32.mrb[0].mxu0
      %v1759 = vadd.f32 0.0, %v1758
      %v1760 = vpop.f32.mrb[0].mxu0
      %1761 = vmatprep.mubr.f32.mxu0 0.0
      %1762 = vmatmul.mubr.f32.gmra.mrb[0].mxu0 %v1528
      %v1763 = vpop.f32.mrb[0].mxu0
      %v1764 = vadd.f32 0.0, %v1763
      %v1765 = vpop.f32.mrb[0].mxu0
      %1766 = vmatprep.mubr.f32.mxu0 0.0
      %1767 = vmatmul.mubr.f32.gmra.mrb[0].mxu0 %v1531
      %v1768 = vpop.f32.mrb[0].mxu0
      %v1769 = vadd.f32 0.0, %v1768
      %v1770 = vpop.f32.mrb[0].mxu0
      %1771 = vmatprep.mubr.f32.mxu0 0.0
      %1772 = vmatmul.mubr.f32.gmra.mrb[0].mxu0 %v1534
      %v1773 = vpop.f32.mrb[0].mxu0
      %v1774 = vadd.f32 0.0, %v1773
      %v1775 = vpop.f32.mrb[0].mxu0
      %1776 = vmatprep.mubr.f32.mxu0 0.0
      %1777 = vmatmul.mubr.f32.gmra.mrb[0].mxu0 %v1537
      %v1778 = vpop.f32.mrb[0].mxu0
      %v1779 = vadd.f32 0.0, %v1778
      %v1780 = vpop.f32.mrb[0].mxu0
      %1781 = vmatprep.mubr.f32.mxu0 0.0
      %1782 = vmatmul.mubr.f32.gmra.mrb[0].mxu0 %v1540
      %v1783 = vpop.f32.mrb[0].mxu0
      %v1784 = vadd.f32 0.0, %v1783
      %v1785 = vpop.f32.mrb[0].mxu0
      %1786 = vdwg.mxu0
      %v1787 = vadd.f32 %v1355, %v1609
      %v1788 = vadd.f32 %v1356, %v1614
      %v1789 = vadd.f32 %v1357, %v1619
      %v1790 = vadd.f32 %v1358, %v1624
      %v1791 = vadd.f32 %v1359, %v1629
      %v1792 = vadd.f32 %v1360, %v1634
      %v1793 = vadd.f32 %v1361, %v1639
      %v1794 = vadd.f32 %v1362, %v1644
      %v1795 = vadd.f32 %v1363, %v1649
      %v1796 = vadd.f32 %v1364, %v1654
      %v1797 = vadd.f32 %v1365, %v1659
      %v1798 = vadd.f32 %v1366, %v1664
      %v1799 = vadd.f32 %v1367, %v1669
      %v1800 = vadd.f32 %v1368, %v1674
      %v1801 = vadd.f32 %v1369, %v1679
      %v1802 = vadd.f32 %v1370, %v1684
      %v1803 = vadd.f32 %v1371, %v1689
      %v1804 = vadd.f32 %v1372, %v1694
      %v1805 = vadd.f32 %v1373, %v1699
      %v1806 = vadd.f32 %v1374, %v1704
      %v1807 = vadd.f32 %v1375, %v1709
      %v1808 = vadd.f32 %v1376, %v1714
      %v1809 = vadd.f32 %v1377, %v1719
      %v1810 = vadd.f32 %v1378, %v1724
      %v1811 = vadd.f32 %v1379, %v1729
      %v1812 = vadd.f32 %v1380, %v1734
      %v1813 = vadd.f32 %v1381, %v1739
      %v1814 = vadd.f32 %v1382, %v1744
      %v1815 = vadd.f32 %v1383, %v1749
      %v1816 = vadd.f32 %v1384, %v1754
      %v1817 = vadd.f32 %v1385, %v1759
      %v1818 = vadd.f32 %v1386, %v1764
      %v1819 = vadd.f32 %v1387, %v1769
      %v1820 = vadd.f32 %v1388, %v1774
      %v1821 = vadd.f32 %v1389, %v1779
      %v1822 = vadd.f32 %v1390, %v1784
      %s1823 = sadd.s32 %s167, 19
      %s1824 = scalar_lea.vmem %s156, %s1823
      %v1825 = vld [vmem:[%s1824] sm:$0xff]
      %v1826 = vld [vmem:[%s1824 + $0x8] sm:$0xff]
      %v1827 = vld [vmem:[%s1824 + $0x10] sm:$0xff]
      %v1828 = vld [vmem:[%s1824 + $0x18] sm:$0xff]
      %v1829 = vld [vmem:[%s1824 + $0x20] sm:$0xff]
      %v1830 = vld [vmem:[%s1824 + $0x28] sm:$0xff]
      %v1831 = vld [vmem:[%s1824 + $0x30] sm:$0xff]
      %v1832 = vld [vmem:[%s1824 + $0x38] sm:$0xff]
      %v1833 = vld [vmem:[%s1824 + $0x40] sm:$0xff]
      %v1834 = vld [vmem:[%s1824 + $0x48] sm:$0xff]
      %v1835 = vld [vmem:[%s1824 + $0x50] sm:$0xff]
      %v1836 = vld [vmem:[%s1824 + $0x58] sm:$0xff]
      %v1837 = vld [vmem:[%s1824 + $0x60] sm:$0xff]
      %v1838 = vld [vmem:[%s1824 + $0x68] sm:$0xff]
      %v1839 = vld [vmem:[%s1824 + $0x70] sm:$0xff]
      %v1840 = vld [vmem:[%s1824 + $0x78] sm:$0xff]
      %v1841 = vld [vmem:[%s1824 + $0x80] sm:$0xff]
      %v1842 = vld [vmem:[%s1824 + $0x88] sm:$0xff]
      %v1843 = vld [vmem:[%s1824 + $0x90] sm:$0xff]
      %v1844 = vld [vmem:[%s1824 + $0x98] sm:$0xff]
      %v1845 = vld [vmem:[%s1824 + $0xa0] sm:$0xff]
      %v1846 = vld [vmem:[%s1824 + $0xa8] sm:$0xff]
      %v1847 = vld [vmem:[%s1824 + $0xb0] sm:$0xff]
      %v1848 = vld [vmem:[%s1824 + $0xb8] sm:$0xff]
      %v1849 = vld [vmem:[%s1824 + $0xc0] sm:$0xff]
      %v1850 = vld [vmem:[%s1824 + $0xc8] sm:$0xff]
      %v1851 = vld [vmem:[%s1824 + $0xd0] sm:$0xff]
      %v1852 = vld [vmem:[%s1824 + $0xd8] sm:$0xff]
      %v1853 = vld [vmem:[%s1824 + $0xe0] sm:$0xff]
      %v1854 = vld [vmem:[%s1824 + $0xe8] sm:$0xff]
      %v1855 = vld [vmem:[%s1824 + $0xf0] sm:$0xff]
      %v1856 = vld [vmem:[%s1824 + $0xf8] sm:$0xff]
      %v1857 = vld [vmem:[%s1824 + $0x100] sm:$0xff]
      %v1858 = vld [vmem:[%s1824 + $0x108] sm:$0xff]
      %v1859 = vld [vmem:[%s1824 + $0x110] sm:$0xff]
      %v1860 = vld [vmem:[%s1824 + $0x118] sm:$0xff]
      %s1861 = scalar_lea.vmem %s1, 128
      %v1862 = vld [vmem:[%s1861] sm:$0xff]
      %v1863 = vld [vmem:[%s1861 + $0x8] sm:$0xff]
      %v1864 = vld [vmem:[%s1861 + $0x10] sm:$0xff]
      %v1865 = vld [vmem:[%s1861 + $0x18] sm:$0xff]
      %v1867 = vsel %vm252, %v1825, 0
      %v1870 = vsel %vm252, %v1826, 0
      %v1873 = vsel %vm252, %v1827, 0
      %v1876 = vsel %vm252, %v1828, 0
      %v1879 = vsel %vm252, %v1829, 0
      %v1882 = vsel %vm252, %v1830, 0
      %v1885 = vsel %vm252, %v1831, 0
      %v1888 = vsel %vm252, %v1832, 0
      %v1891 = vsel %vm252, %v1833, 0
      %v1894 = vsel %vm252, %v1834, 0
      %v1897 = vsel %vm252, %v1835, 0
      %v1900 = vsel %vm252, %v1836, 0
      %v1903 = vsel %vm252, %v1837, 0
      %v1906 = vsel %vm252, %v1838, 0
      %v1909 = vsel %vm252, %v1839, 0
      %v1912 = vsel %vm252, %v1840, 0
      %v1915 = vsel %vm252, %v1841, 0
      %v1918 = vsel %vm252, %v1842, 0
      %v1921 = vsel %vm252, %v1843, 0
      %v1924 = vsel %vm252, %v1844, 0
      %v1927 = vsel %vm252, %v1845, 0
      %v1930 = vsel %vm252, %v1846, 0
      %v1933 = vsel %vm252, %v1847, 0
      %v1936 = vsel %vm252, %v1848, 0
      %v1939 = vsel %vm252, %v1849, 0
      %v1942 = vsel %vm252, %v1850, 0
      %v1945 = vsel %vm252, %v1851, 0
      %v1948 = vsel %vm252, %v1852, 0
      %v1951 = vsel %vm252, %v1853, 0
      %v1954 = vsel %vm252, %v1854, 0
      %v1957 = vsel %vm252, %v1855, 0
      %v1960 = vsel %vm252, %v1856, 0
      %v1963 = vsel %vm252, %v1857, 0
      %v1966 = vsel %vm252, %v1858, 0
      %v1969 = vsel %vm252, %v1859, 0
      %v1972 = vsel %vm252, %v1860, 0
      %1974 = vmatprep.subr.mxu0 0.0
      %1975 = vmatpush1.msra.mxu0 %v1862
      %1976 = vmatprep.subr.mxu0 0.0
      %1977 = vmatpush1.msra.mxu0 %v1863
      %1978 = vmatprep.subr.mxu0 0.0
      %1979 = vmatpush1.msra.mxu0 %v1864
      %1980 = vmatprep.subr.mxu0 0.0
      %1981 = vmatpush1.msra.mxu0 %v1865
      %1982 = vmatprep.subr.mxu0 0.0
      %1983 = vmatpush1.msra.mxu0 0.0
      %1984 = vmatprep.subr.mxu0 0.0
      %1985 = vmatpush1.msra.mxu0 0.0
      %1986 = vmatprep.subr.mxu0 0.0
      %1987 = vmatpush1.msra.mxu0 0.0
      %1988 = vmatprep.subr.mxu0 0.0
      %1989 = vmatpush1.msra.mxu0 0.0
      %1990 = vmatprep.subr.mxu0 0.0
      %1991 = vmatpush1.msra.mxu0 0.0
      %1992 = vmatprep.subr.mxu0 0.0
      %1993 = vmatpush1.msra.mxu0 0.0
      %1994 = vmatprep.subr.mxu0 0.0
      %1995 = vmatpush1.msra.mxu0 0.0
      %1996 = vmatprep.subr.mxu0 0.0
      %1997 = vmatpush1.msra.mxu0 0.0
      %1998 = vmatprep.subr.mxu0 0.0
      %1999 = vmatpush1.msra.mxu0 0.0
      %2000 = vmatprep.subr.mxu0 0.0
      %2001 = vmatpush1.msra.mxu0 0.0
      %2002 = vmatprep.subr.mxu0 0.0
      %2003 = vmatpush1.msra.mxu0 0.0
      %2004 = vmatprep.subr.mxu0 0.0
      %2005 = vmatpush1.msra.mxu0 0.0
      %2006 = vmatprep.subr.mxu0 0.0
      %2007 = vmatpush1.msra.mxu0 0.0
      %2008 = vmatprep.subr.mxu0 0.0
      %2009 = vmatpush1.msra.mxu0 0.0
      %2010 = vmatprep.subr.mxu0 0.0
      %2011 = vmatpush1.msra.mxu0 0.0
      %2012 = vmatprep.subr.mxu0 0.0
      %2013 = vmatpush1.msra.mxu0 0.0
      %2014 = vmatprep.subr.mxu0 0.0
      %2015 = vmatpush1.msra.mxu0 0.0
      %2016 = vmatprep.subr.mxu0 0.0
      %2017 = vmatpush1.msra.mxu0 0.0
      %2018 = vmatprep.subr.mxu0 0.0
      %2019 = vmatpush1.msra.mxu0 0.0
      %2020 = vmatprep.subr.mxu0 0.0
      %2021 = vmatpush1.msra.mxu0 0.0
      %2022 = vmatprep.subr.mxu0 0.0
      %2023 = vmatpush1.msra.mxu0 0.0
      %2024 = vmatprep.subr.mxu0 0.0
      %2025 = vmatpush1.msra.mxu0 0.0
      %2026 = vmatprep.subr.mxu0 0.0
      %2027 = vmatpush1.msra.mxu0 0.0
      %2028 = vmatprep.subr.mxu0 0.0
      %2029 = vmatpush1.msra.mxu0 0.0
      %2030 = vmatprep.subr.mxu0 0.0
      %2031 = vmatpush1.msra.mxu0 0.0
      %2032 = vmatprep.subr.mxu0 0.0
      %2033 = vmatpush1.msra.mxu0 0.0
      %2034 = vmatprep.subr.mxu0 0.0
      %2035 = vmatpush1.msra.mxu0 0.0
      %2036 = vmatprep.subr.mxu0 0.0
      %2037 = vmatpush1.msra.mxu0 0.0
      %2038 = vmatprep.mubr.f32.mxu0 0.0
      %2039 = vmatmul.mubr.f32.gmra.mrb[0].mxu0 %v1867
      %v2040 = vpop.f32.mrb[0].mxu0
      %v2041 = vadd.f32 0.0, %v2040
      %v2042 = vpop.f32.mrb[0].mxu0
      %2043 = vmatprep.mubr.f32.mxu0 0.0
      %2044 = vmatmul.mubr.f32.gmra.mrb[0].mxu0 %v1870
      %v2045 = vpop.f32.mrb[0].mxu0
      %v2046 = vadd.f32 0.0, %v2045
      %v2047 = vpop.f32.mrb[0].mxu0
      %2048 = vmatprep.mubr.f32.mxu0 0.0
      %2049 = vmatmul.mubr.f32.gmra.mrb[0].mxu0 %v1873
      %v2050 = vpop.f32.mrb[0].mxu0
      %v2051 = vadd.f32 0.0, %v2050
      %v2052 = vpop.f32.mrb[0].mxu0
      %2053 = vmatprep.mubr.f32.mxu0 0.0
      %2054 = vmatmul.mubr.f32.gmra.mrb[0].mxu0 %v1876
      %v2055 = vpop.f32.mrb[0].mxu0
      %v2056 = vadd.f32 0.0, %v2055
      %v2057 = vpop.f32.mrb[0].mxu0
      %2058 = vmatprep.mubr.f32.mxu0 0.0
      %2059 = vmatmul.mubr.f32.gmra.mrb[0].mxu0 %v1879
      %v2060 = vpop.f32.mrb[0].mxu0
      %v2061 = vadd.f32 0.0, %v2060
      %v2062 = vpop.f32.mrb[0].mxu0
      %2063 = vmatprep.mubr.f32.mxu0 0.0
      %2064 = vmatmul.mubr.f32.gmra.mrb[0].mxu0 %v1882
      %v2065 = vpop.f32.mrb[0].mxu0
      %v2066 = vadd.f32 0.0, %v2065
      %v2067 = vpop.f32.mrb[0].mxu0
      %2068 = vmatprep.mubr.f32.mxu0 0.0
      %2069 = vmatmul.mubr.f32.gmra.mrb[0].mxu0 %v1885
      %v2070 = vpop.f32.mrb[0].mxu0
      %v2071 = vadd.f32 0.0, %v2070
      %v2072 = vpop.f32.mrb[0].mxu0
      %2073 = vmatprep.mubr.f32.mxu0 0.0
      %2074 = vmatmul.mubr.f32.gmra.mrb[0].mxu0 %v1888
      %v2075 = vpop.f32.mrb[0].mxu0
      %v2076 = vadd.f32 0.0, %v2075
      %v2077 = vpop.f32.mrb[0].mxu0
      %2078 = vmatprep.mubr.f32.mxu0 0.0
      %2079 = vmatmul.mubr.f32.gmra.mrb[0].mxu0 %v1891
      %v2080 = vpop.f32.mrb[0].mxu0
      %v2081 = vadd.f32 0.0, %v2080
      %v2082 = vpop.f32.mrb[0].mxu0
      %2083 = vmatprep.mubr.f32.mxu0 0.0
      %2084 = vmatmul.mubr.f32.gmra.mrb[0].mxu0 %v1894
      %v2085 = vpop.f32.mrb[0].mxu0
      %v2086 = vadd.f32 0.0, %v2085
      %v2087 = vpop.f32.mrb[0].mxu0
      %2088 = vmatprep.mubr.f32.mxu0 0.0
      %2089 = vmatmul.mubr.f32.gmra.mrb[0].mxu0 %v1897
      %v2090 = vpop.f32.mrb[0].mxu0
      %v2091 = vadd.f32 0.0, %v2090
      %v2092 = vpop.f32.mrb[0].mxu0
      %2093 = vmatprep.mubr.f32.mxu0 0.0
      %2094 = vmatmul.mubr.f32.gmra.mrb[0].mxu0 %v1900
      %v2095 = vpop.f32.mrb[0].mxu0
      %v2096 = vadd.f32 0.0, %v2095
      %v2097 = vpop.f32.mrb[0].mxu0
      %2098 = vmatprep.mubr.f32.mxu0 0.0
      %2099 = vmatmul.mubr.f32.gmra.mrb[0].mxu0 %v1903
      %v2100 = vpop.f32.mrb[0].mxu0
      %v2101 = vadd.f32 0.0, %v2100
      %v2102 = vpop.f32.mrb[0].mxu0
      %2103 = vmatprep.mubr.f32.mxu0 0.0
      %2104 = vmatmul.mubr.f32.gmra.mrb[0].mxu0 %v1906
      %v2105 = vpop.f32.mrb[0].mxu0
      %v2106 = vadd.f32 0.0, %v2105
      %v2107 = vpop.f32.mrb[0].mxu0
      %2108 = vmatprep.mubr.f32.mxu0 0.0
      %2109 = vmatmul.mubr.f32.gmra.mrb[0].mxu0 %v1909
      %v2110 = vpop.f32.mrb[0].mxu0
      %v2111 = vadd.f32 0.0, %v2110
      %v2112 = vpop.f32.mrb[0].mxu0
      %2113 = vmatprep.mubr.f32.mxu0 0.0
      %2114 = vmatmul.mubr.f32.gmra.mrb[0].mxu0 %v1912
      %v2115 = vpop.f32.mrb[0].mxu0
      %v2116 = vadd.f32 0.0, %v2115
      %v2117 = vpop.f32.mrb[0].mxu0
      %2118 = vmatprep.mubr.f32.mxu0 0.0
      %2119 = vmatmul.mubr.f32.gmra.mrb[0].mxu0 %v1915
      %v2120 = vpop.f32.mrb[0].mxu0
      %v2121 = vadd.f32 0.0, %v2120
      %v2122 = vpop.f32.mrb[0].mxu0
      %2123 = vmatprep.mubr.f32.mxu0 0.0
      %2124 = vmatmul.mubr.f32.gmra.mrb[0].mxu0 %v1918
      %v2125 = vpop.f32.mrb[0].mxu0
      %v2126 = vadd.f32 0.0, %v2125
      %v2127 = vpop.f32.mrb[0].mxu0
      %2128 = vmatprep.mubr.f32.mxu0 0.0
      %2129 = vmatmul.mubr.f32.gmra.mrb[0].mxu0 %v1921
      %v2130 = vpop.f32.mrb[0].mxu0
      %v2131 = vadd.f32 0.0, %v2130
      %v2132 = vpop.f32.mrb[0].mxu0
      %2133 = vmatprep.mubr.f32.mxu0 0.0
      %2134 = vmatmul.mubr.f32.gmra.mrb[0].mxu0 %v1924
      %v2135 = vpop.f32.mrb[0].mxu0
      %v2136 = vadd.f32 0.0, %v2135
      %v2137 = vpop.f32.mrb[0].mxu0
      %2138 = vmatprep.mubr.f32.mxu0 0.0
      %2139 = vmatmul.mubr.f32.gmra.mrb[0].mxu0 %v1927
      %v2140 = vpop.f32.mrb[0].mxu0
      %v2141 = vadd.f32 0.0, %v2140
      %v2142 = vpop.f32.mrb[0].mxu0
      %2143 = vmatprep.mubr.f32.mxu0 0.0
      %2144 = vmatmul.mubr.f32.gmra.mrb[0].mxu0 %v1930
      %v2145 = vpop.f32.mrb[0].mxu0
      %v2146 = vadd.f32 0.0, %v2145
      %v2147 = vpop.f32.mrb[0].mxu0
      %2148 = vmatprep.mubr.f32.mxu0 0.0
      %2149 = vmatmul.mubr.f32.gmra.mrb[0].mxu0 %v1933
      %v2150 = vpop.f32.mrb[0].mxu0
      %v2151 = vadd.f32 0.0, %v2150
      %v2152 = vpop.f32.mrb[0].mxu0
      %2153 = vmatprep.mubr.f32.mxu0 0.0
      %2154 = vmatmul.mubr.f32.gmra.mrb[0].mxu0 %v1936
      %v2155 = vpop.f32.mrb[0].mxu0
      %v2156 = vadd.f32 0.0, %v2155
      %v2157 = vpop.f32.mrb[0].mxu0
      %2158 = vmatprep.mubr.f32.mxu0 0.0
      %2159 = vmatmul.mubr.f32.gmra.mrb[0].mxu0 %v1939
      %v2160 = vpop.f32.mrb[0].mxu0
      %v2161 = vadd.f32 0.0, %v2160
      %v2162 = vpop.f32.mrb[0].mxu0
      %2163 = vmatprep.mubr.f32.mxu0 0.0
      %2164 = vmatmul.mubr.f32.gmra.mrb[0].mxu0 %v1942
      %v2165 = vpop.f32.mrb[0].mxu0
      %v2166 = vadd.f32 0.0, %v2165
      %v2167 = vpop.f32.mrb[0].mxu0
      %2168 = vmatprep.mubr.f32.mxu0 0.0
      %2169 = vmatmul.mubr.f32.gmra.mrb[0].mxu0 %v1945
      %v2170 = vpop.f32.mrb[0].mxu0
      %v2171 = vadd.f32 0.0, %v2170
      %v2172 = vpop.f32.mrb[0].mxu0
      %2173 = vmatprep.mubr.f32.mxu0 0.0
      %2174 = vmatmul.mubr.f32.gmra.mrb[0].mxu0 %v1948
      %v2175 = vpop.f32.mrb[0].mxu0
      %v2176 = vadd.f32 0.0, %v2175
      %v2177 = vpop.f32.mrb[0].mxu0
      %2178 = vmatprep.mubr.f32.mxu0 0.0
      %2179 = vmatmul.mubr.f32.gmra.mrb[0].mxu0 %v1951
      %v2180 = vpop.f32.mrb[0].mxu0
      %v2181 = vadd.f32 0.0, %v2180
      %v2182 = vpop.f32.mrb[0].mxu0
      %2183 = vmatprep.mubr.f32.mxu0 0.0
      %2184 = vmatmul.mubr.f32.gmra.mrb[0].mxu0 %v1954
      %v2185 = vpop.f32.mrb[0].mxu0
      %v2186 = vadd.f32 0.0, %v2185
      %v2187 = vpop.f32.mrb[0].mxu0
      %2188 = vmatprep.mubr.f32.mxu0 0.0
      %2189 = vmatmul.mubr.f32.gmra.mrb[0].mxu0 %v1957
      %v2190 = vpop.f32.mrb[0].mxu0
      %v2191 = vadd.f32 0.0, %v2190
      %v2192 = vpop.f32.mrb[0].mxu0
      %2193 = vmatprep.mubr.f32.mxu0 0.0
      %2194 = vmatmul.mubr.f32.gmra.mrb[0].mxu0 %v1960
      %v2195 = vpop.f32.mrb[0].mxu0
      %v2196 = vadd.f32 0.0, %v2195
      %v2197 = vpop.f32.mrb[0].mxu0
      %2198 = vmatprep.mubr.f32.mxu0 0.0
      %2199 = vmatmul.mubr.f32.gmra.mrb[0].mxu0 %v1963
      %v2200 = vpop.f32.mrb[0].mxu0
      %v2201 = vadd.f32 0.0, %v2200
      %v2202 = vpop.f32.mrb[0].mxu0
      %2203 = vmatprep.mubr.f32.mxu0 0.0
      %2204 = vmatmul.mubr.f32.gmra.mrb[0].mxu0 %v1966
      %v2205 = vpop.f32.mrb[0].mxu0
      %v2206 = vadd.f32 0.0, %v2205
      %v2207 = vpop.f32.mrb[0].mxu0
      %2208 = vmatprep.mubr.f32.mxu0 0.0
      %2209 = vmatmul.mubr.f32.gmra.mrb[0].mxu0 %v1969
      %v2210 = vpop.f32.mrb[0].mxu0
      %v2211 = vadd.f32 0.0, %v2210
      %v2212 = vpop.f32.mrb[0].mxu0
      %2213 = vmatprep.mubr.f32.mxu0 0.0
      %2214 = vmatmul.mubr.f32.gmra.mrb[0].mxu0 %v1972
      %v2215 = vpop.f32.mrb[0].mxu0
      %v2216 = vadd.f32 0.0, %v2215
      %v2217 = vpop.f32.mrb[0].mxu0
      %2218 = vdwg.mxu0
      %v2219 = vadd.f32 %v1787, %v2041
      %v2220 = vadd.f32 %v1788, %v2046
      %v2221 = vadd.f32 %v1789, %v2051
      %v2222 = vadd.f32 %v1790, %v2056
      %v2223 = vadd.f32 %v1791, %v2061
      %v2224 = vadd.f32 %v1792, %v2066
      %v2225 = vadd.f32 %v1793, %v2071
      %v2226 = vadd.f32 %v1794, %v2076
      %v2227 = vadd.f32 %v1795, %v2081
      %v2228 = vadd.f32 %v1796, %v2086
      %v2229 = vadd.f32 %v1797, %v2091
      %v2230 = vadd.f32 %v1798, %v2096
      %v2231 = vadd.f32 %v1799, %v2101
      %v2232 = vadd.f32 %v1800, %v2106
      %v2233 = vadd.f32 %v1801, %v2111
      %v2234 = vadd.f32 %v1802, %v2116
      %v2235 = vadd.f32 %v1803, %v2121
      %v2236 = vadd.f32 %v1804, %v2126
      %v2237 = vadd.f32 %v1805, %v2131
      %v2238 = vadd.f32 %v1806, %v2136
      %v2239 = vadd.f32 %v1807, %v2141
      %v2240 = vadd.f32 %v1808, %v2146
      %v2241 = vadd.f32 %v1809, %v2151
      %v2242 = vadd.f32 %v1810, %v2156
      %v2243 = vadd.f32 %v1811, %v2161
      %v2244 = vadd.f32 %v1812, %v2166
      %v2245 = vadd.f32 %v1813, %v2171
      %v2246 = vadd.f32 %v1814, %v2176
      %v2247 = vadd.f32 %v1815, %v2181
      %v2248 = vadd.f32 %v1816, %v2186
      %v2249 = vadd.f32 %v1817, %v2191
      %v2250 = vadd.f32 %v1818, %v2196
      %v2251 = vadd.f32 %v1819, %v2201
      %v2252 = vadd.f32 %v1820, %v2206
      %v2253 = vadd.f32 %v1821, %v2211
      %v2254 = vadd.f32 %v1822, %v2216
      %s2255 = sadd.s32 %s167, 20
      %s2256 = scalar_lea.vmem %s156, %s2255
      %v2257 = vld [vmem:[%s2256] sm:$0xff]
      %v2258 = vld [vmem:[%s2256 + $0x8] sm:$0xff]
      %v2259 = vld [vmem:[%s2256 + $0x10] sm:$0xff]
      %v2260 = vld [vmem:[%s2256 + $0x18] sm:$0xff]
      %v2261 = vld [vmem:[%s2256 + $0x20] sm:$0xff]
      %v2262 = vld [vmem:[%s2256 + $0x28] sm:$0xff]
      %v2263 = vld [vmem:[%s2256 + $0x30] sm:$0xff]
      %v2264 = vld [vmem:[%s2256 + $0x38] sm:$0xff]
      %v2265 = vld [vmem:[%s2256 + $0x40] sm:$0xff]
      %v2266 = vld [vmem:[%s2256 + $0x48] sm:$0xff]
      %v2267 = vld [vmem:[%s2256 + $0x50] sm:$0xff]
      %v2268 = vld [vmem:[%s2256 + $0x58] sm:$0xff]
      %v2269 = vld [vmem:[%s2256 + $0x60] sm:$0xff]
      %v2270 = vld [vmem:[%s2256 + $0x68] sm:$0xff]
      %v2271 = vld [vmem:[%s2256 + $0x70] sm:$0xff]
      %v2272 = vld [vmem:[%s2256 + $0x78] sm:$0xff]
      %v2273 = vld [vmem:[%s2256 + $0x80] sm:$0xff]
      %v2274 = vld [vmem:[%s2256 + $0x88] sm:$0xff]
      %v2275 = vld [vmem:[%s2256 + $0x90] sm:$0xff]
      %v2276 = vld [vmem:[%s2256 + $0x98] sm:$0xff]
      %v2277 = vld [vmem:[%s2256 + $0xa0] sm:$0xff]
      %v2278 = vld [vmem:[%s2256 + $0xa8] sm:$0xff]
      %v2279 = vld [vmem:[%s2256 + $0xb0] sm:$0xff]
      %v2280 = vld [vmem:[%s2256 + $0xb8] sm:$0xff]
      %v2281 = vld [vmem:[%s2256 + $0xc0] sm:$0xff]
      %v2282 = vld [vmem:[%s2256 + $0xc8] sm:$0xff]
      %v2283 = vld [vmem:[%s2256 + $0xd0] sm:$0xff]
      %v2284 = vld [vmem:[%s2256 + $0xd8] sm:$0xff]
      %v2285 = vld [vmem:[%s2256 + $0xe0] sm:$0xff]
      %v2286 = vld [vmem:[%s2256 + $0xe8] sm:$0xff]
      %v2287 = vld [vmem:[%s2256 + $0xf0] sm:$0xff]
      %v2288 = vld [vmem:[%s2256 + $0xf8] sm:$0xff]
      %v2289 = vld [vmem:[%s2256 + $0x100] sm:$0xff]
      %v2290 = vld [vmem:[%s2256 + $0x108] sm:$0xff]
      %v2291 = vld [vmem:[%s2256 + $0x110] sm:$0xff]
      %v2292 = vld [vmem:[%s2256 + $0x118] sm:$0xff]
      %s2293 = scalar_lea.vmem %s1, 160
      %v2294 = vld [vmem:[%s2293] sm:$0xff]
      %v2295 = vld [vmem:[%s2293 + $0x8] sm:$0xff]
      %v2296 = vld [vmem:[%s2293 + $0x10] sm:$0xff]
      %v2297 = vld [vmem:[%s2293 + $0x18] sm:$0xff]
      %v2299 = vsel %vm252, %v2257, 0
      %v2302 = vsel %vm252, %v2258, 0
      %v2305 = vsel %vm252, %v2259, 0
      %v2308 = vsel %vm252, %v2260, 0
      %v2311 = vsel %vm252, %v2261, 0
      %v2314 = vsel %vm252, %v2262, 0
      %v2317 = vsel %vm252, %v2263, 0
      %v2320 = vsel %vm252, %v2264, 0
      %v2323 = vsel %vm252, %v2265, 0
      %v2326 = vsel %vm252, %v2266, 0
      %v2329 = vsel %vm252, %v2267, 0
      %v2332 = vsel %vm252, %v2268, 0
      %v2335 = vsel %vm252, %v2269, 0
      %v2338 = vsel %vm252, %v2270, 0
      %v2341 = vsel %vm252, %v2271, 0
      %v2344 = vsel %vm252, %v2272, 0
      %v2347 = vsel %vm252, %v2273, 0
      %v2350 = vsel %vm252, %v2274, 0
      %v2353 = vsel %vm252, %v2275, 0
      %v2356 = vsel %vm252, %v2276, 0
      %v2359 = vsel %vm252, %v2277, 0
      %v2362 = vsel %vm252, %v2278, 0
      %v2365 = vsel %vm252, %v2279, 0
      %v2368 = vsel %vm252, %v2280, 0
      %v2371 = vsel %vm252, %v2281, 0
      %v2374 = vsel %vm252, %v2282, 0
      %v2377 = vsel %vm252, %v2283, 0
      %v2380 = vsel %vm252, %v2284, 0
      %v2383 = vsel %vm252, %v2285, 0
      %v2386 = vsel %vm252, %v2286, 0
      %v2389 = vsel %vm252, %v2287, 0
      %v2392 = vsel %vm252, %v2288, 0
      %v2395 = vsel %vm252, %v2289, 0
      %v2398 = vsel %vm252, %v2290, 0
      %v2401 = vsel %vm252, %v2291, 0
      %v2404 = vsel %vm252, %v2292, 0
      %2406 = vmatprep.subr.mxu0 0.0
      %2407 = vmatpush1.msra.mxu0 %v2294
      %2408 = vmatprep.subr.mxu0 0.0
      %2409 = vmatpush1.msra.mxu0 %v2295
      %2410 = vmatprep.subr.mxu0 0.0
      %2411 = vmatpush1.msra.mxu0 %v2296
      %2412 = vmatprep.subr.mxu0 0.0
      %2413 = vmatpush1.msra.mxu0 %v2297
      %2414 = vmatprep.subr.mxu0 0.0
      %2415 = vmatpush1.msra.mxu0 0.0
      %2416 = vmatprep.subr.mxu0 0.0
      %2417 = vmatpush1.msra.mxu0 0.0
      %2418 = vmatprep.subr.mxu0 0.0
      %2419 = vmatpush1.msra.mxu0 0.0
      %2420 = vmatprep.subr.mxu0 0.0
      %2421 = vmatpush1.msra.mxu0 0.0
      %2422 = vmatprep.subr.mxu0 0.0
      %2423 = vmatpush1.msra.mxu0 0.0
      %2424 = vmatprep.subr.mxu0 0.0
      %2425 = vmatpush1.msra.mxu0 0.0
      %2426 = vmatprep.subr.mxu0 0.0
      %2427 = vmatpush1.msra.mxu0 0.0
      %2428 = vmatprep.subr.mxu0 0.0
      %2429 = vmatpush1.msra.mxu0 0.0
      %2430 = vmatprep.subr.mxu0 0.0
      %2431 = vmatpush1.msra.mxu0 0.0
      %2432 = vmatprep.subr.mxu0 0.0
      %2433 = vmatpush1.msra.mxu0 0.0
      %2434 = vmatprep.subr.mxu0 0.0
      %2435 = vmatpush1.msra.mxu0 0.0
      %2436 = vmatprep.subr.mxu0 0.0
      %2437 = vmatpush1.msra.mxu0 0.0
      %2438 = vmatprep.subr.mxu0 0.0
      %2439 = vmatpush1.msra.mxu0 0.0
      %2440 = vmatprep.subr.mxu0 0.0
      %2441 = vmatpush1.msra.mxu0 0.0
      %2442 = vmatprep.subr.mxu0 0.0
      %2443 = vmatpush1.msra.mxu0 0.0
      %2444 = vmatprep.subr.mxu0 0.0
      %2445 = vmatpush1.msra.mxu0 0.0
      %2446 = vmatprep.subr.mxu0 0.0
      %2447 = vmatpush1.msra.mxu0 0.0
      %2448 = vmatprep.subr.mxu0 0.0
      %2449 = vmatpush1.msra.mxu0 0.0
      %2450 = vmatprep.subr.mxu0 0.0
      %2451 = vmatpush1.msra.mxu0 0.0
      %2452 = vmatprep.subr.mxu0 0.0
      %2453 = vmatpush1.msra.mxu0 0.0
      %2454 = vmatprep.subr.mxu0 0.0
      %2455 = vmatpush1.msra.mxu0 0.0
      %2456 = vmatprep.subr.mxu0 0.0
      %2457 = vmatpush1.msra.mxu0 0.0
      %2458 = vmatprep.subr.mxu0 0.0
      %2459 = vmatpush1.msra.mxu0 0.0
      %2460 = vmatprep.subr.mxu0 0.0
      %2461 = vmatpush1.msra.mxu0 0.0
      %2462 = vmatprep.subr.mxu0 0.0
      %2463 = vmatpush1.msra.mxu0 0.0
      %2464 = vmatprep.subr.mxu0 0.0
      %2465 = vmatpush1.msra.mxu0 0.0
      %2466 = vmatprep.subr.mxu0 0.0
      %2467 = vmatpush1.msra.mxu0 0.0
      %2468 = vmatprep.subr.mxu0 0.0
      %2469 = vmatpush1.msra.mxu0 0.0
      %2470 = vmatprep.mubr.f32.mxu0 0.0
      %2471 = vmatmul.mubr.f32.gmra.mrb[0].mxu0 %v2299
      %v2472 = vpop.f32.mrb[0].mxu0
      %v2473 = vadd.f32 0.0, %v2472
      %v2474 = vpop.f32.mrb[0].mxu0
      %2475 = vmatprep.mubr.f32.mxu0 0.0
      %2476 = vmatmul.mubr.f32.gmra.mrb[0].mxu0 %v2302
      %v2477 = vpop.f32.mrb[0].mxu0
      %v2478 = vadd.f32 0.0, %v2477
      %v2479 = vpop.f32.mrb[0].mxu0
      %2480 = vmatprep.mubr.f32.mxu0 0.0
      %2481 = vmatmul.mubr.f32.gmra.mrb[0].mxu0 %v2305
      %v2482 = vpop.f32.mrb[0].mxu0
      %v2483 = vadd.f32 0.0, %v2482
      %v2484 = vpop.f32.mrb[0].mxu0
      %2485 = vmatprep.mubr.f32.mxu0 0.0
      %2486 = vmatmul.mubr.f32.gmra.mrb[0].mxu0 %v2308
      %v2487 = vpop.f32.mrb[0].mxu0
      %v2488 = vadd.f32 0.0, %v2487
      %v2489 = vpop.f32.mrb[0].mxu0
      %2490 = vmatprep.mubr.f32.mxu0 0.0
      %2491 = vmatmul.mubr.f32.gmra.mrb[0].mxu0 %v2311
      %v2492 = vpop.f32.mrb[0].mxu0
      %v2493 = vadd.f32 0.0, %v2492
      %v2494 = vpop.f32.mrb[0].mxu0
      %2495 = vmatprep.mubr.f32.mxu0 0.0
      %2496 = vmatmul.mubr.f32.gmra.mrb[0].mxu0 %v2314
      %v2497 = vpop.f32.mrb[0].mxu0
      %v2498 = vadd.f32 0.0, %v2497
      %v2499 = vpop.f32.mrb[0].mxu0
      %2500 = vmatprep.mubr.f32.mxu0 0.0
      %2501 = vmatmul.mubr.f32.gmra.mrb[0].mxu0 %v2317
      %v2502 = vpop.f32.mrb[0].mxu0
      %v2503 = vadd.f32 0.0, %v2502
      %v2504 = vpop.f32.mrb[0].mxu0
      %2505 = vmatprep.mubr.f32.mxu0 0.0
      %2506 = vmatmul.mubr.f32.gmra.mrb[0].mxu0 %v2320
      %v2507 = vpop.f32.mrb[0].mxu0
      %v2508 = vadd.f32 0.0, %v2507
      %v2509 = vpop.f32.mrb[0].mxu0
      %2510 = vmatprep.mubr.f32.mxu0 0.0
      %2511 = vmatmul.mubr.f32.gmra.mrb[0].mxu0 %v2323
      %v2512 = vpop.f32.mrb[0].mxu0
      %v2513 = vadd.f32 0.0, %v2512
      %v2514 = vpop.f32.mrb[0].mxu0
      %2515 = vmatprep.mubr.f32.mxu0 0.0
      %2516 = vmatmul.mubr.f32.gmra.mrb[0].mxu0 %v2326
      %v2517 = vpop.f32.mrb[0].mxu0
      %v2518 = vadd.f32 0.0, %v2517
      %v2519 = vpop.f32.mrb[0].mxu0
      %2520 = vmatprep.mubr.f32.mxu0 0.0
      %2521 = vmatmul.mubr.f32.gmra.mrb[0].mxu0 %v2329
      %v2522 = vpop.f32.mrb[0].mxu0
      %v2523 = vadd.f32 0.0, %v2522
      %v2524 = vpop.f32.mrb[0].mxu0
      %2525 = vmatprep.mubr.f32.mxu0 0.0
      %2526 = vmatmul.mubr.f32.gmra.mrb[0].mxu0 %v2332
      %v2527 = vpop.f32.mrb[0].mxu0
      %v2528 = vadd.f32 0.0, %v2527
      %v2529 = vpop.f32.mrb[0].mxu0
      %2530 = vmatprep.mubr.f32.mxu0 0.0
      %2531 = vmatmul.mubr.f32.gmra.mrb[0].mxu0 %v2335
      %v2532 = vpop.f32.mrb[0].mxu0
      %v2533 = vadd.f32 0.0, %v2532
      %v2534 = vpop.f32.mrb[0].mxu0
      %2535 = vmatprep.mubr.f32.mxu0 0.0
      %2536 = vmatmul.mubr.f32.gmra.mrb[0].mxu0 %v2338
      %v2537 = vpop.f32.mrb[0].mxu0
      %v2538 = vadd.f32 0.0, %v2537
      %v2539 = vpop.f32.mrb[0].mxu0
      %2540 = vmatprep.mubr.f32.mxu0 0.0
      %2541 = vmatmul.mubr.f32.gmra.mrb[0].mxu0 %v2341
      %v2542 = vpop.f32.mrb[0].mxu0
      %v2543 = vadd.f32 0.0, %v2542
      %v2544 = vpop.f32.mrb[0].mxu0
      %2545 = vmatprep.mubr.f32.mxu0 0.0
      %2546 = vmatmul.mubr.f32.gmra.mrb[0].mxu0 %v2344
      %v2547 = vpop.f32.mrb[0].mxu0
      %v2548 = vadd.f32 0.0, %v2547
      %v2549 = vpop.f32.mrb[0].mxu0
      %2550 = vmatprep.mubr.f32.mxu0 0.0
      %2551 = vmatmul.mubr.f32.gmra.mrb[0].mxu0 %v2347
      %v2552 = vpop.f32.mrb[0].mxu0
      %v2553 = vadd.f32 0.0, %v2552
      %v2554 = vpop.f32.mrb[0].mxu0
      %2555 = vmatprep.mubr.f32.mxu0 0.0
      %2556 = vmatmul.mubr.f32.gmra.mrb[0].mxu0 %v2350
      %v2557 = vpop.f32.mrb[0].mxu0
      %v2558 = vadd.f32 0.0, %v2557
      %v2559 = vpop.f32.mrb[0].mxu0
      %2560 = vmatprep.mubr.f32.mxu0 0.0
      %2561 = vmatmul.mubr.f32.gmra.mrb[0].mxu0 %v2353
      %v2562 = vpop.f32.mrb[0].mxu0
      %v2563 = vadd.f32 0.0, %v2562
      %v2564 = vpop.f32.mrb[0].mxu0
      %2565 = vmatprep.mubr.f32.mxu0 0.0
      %2566 = vmatmul.mubr.f32.gmra.mrb[0].mxu0 %v2356
      %v2567 = vpop.f32.mrb[0].mxu0
      %v2568 = vadd.f32 0.0, %v2567
      %v2569 = vpop.f32.mrb[0].mxu0
      %2570 = vmatprep.mubr.f32.mxu0 0.0
      %2571 = vmatmul.mubr.f32.gmra.mrb[0].mxu0 %v2359
      %v2572 = vpop.f32.mrb[0].mxu0
      %v2573 = vadd.f32 0.0, %v2572
      %v2574 = vpop.f32.mrb[0].mxu0
      %2575 = vmatprep.mubr.f32.mxu0 0.0
      %2576 = vmatmul.mubr.f32.gmra.mrb[0].mxu0 %v2362
      %v2577 = vpop.f32.mrb[0].mxu0
      %v2578 = vadd.f32 0.0, %v2577
      %v2579 = vpop.f32.mrb[0].mxu0
      %2580 = vmatprep.mubr.f32.mxu0 0.0
      %2581 = vmatmul.mubr.f32.gmra.mrb[0].mxu0 %v2365
      %v2582 = vpop.f32.mrb[0].mxu0
      %v2583 = vadd.f32 0.0, %v2582
      %v2584 = vpop.f32.mrb[0].mxu0
      %2585 = vmatprep.mubr.f32.mxu0 0.0
      %2586 = vmatmul.mubr.f32.gmra.mrb[0].mxu0 %v2368
      %v2587 = vpop.f32.mrb[0].mxu0
      %v2588 = vadd.f32 0.0, %v2587
      %v2589 = vpop.f32.mrb[0].mxu0
      %2590 = vmatprep.mubr.f32.mxu0 0.0
      %2591 = vmatmul.mubr.f32.gmra.mrb[0].mxu0 %v2371
      %v2592 = vpop.f32.mrb[0].mxu0
      %v2593 = vadd.f32 0.0, %v2592
      %v2594 = vpop.f32.mrb[0].mxu0
      %2595 = vmatprep.mubr.f32.mxu0 0.0
      %2596 = vmatmul.mubr.f32.gmra.mrb[0].mxu0 %v2374
      %v2597 = vpop.f32.mrb[0].mxu0
      %v2598 = vadd.f32 0.0, %v2597
      %v2599 = vpop.f32.mrb[0].mxu0
      %2600 = vmatprep.mubr.f32.mxu0 0.0
      %2601 = vmatmul.mubr.f32.gmra.mrb[0].mxu0 %v2377
      %v2602 = vpop.f32.mrb[0].mxu0
      %v2603 = vadd.f32 0.0, %v2602
      %v2604 = vpop.f32.mrb[0].mxu0
      %2605 = vmatprep.mubr.f32.mxu0 0.0
      %2606 = vmatmul.mubr.f32.gmra.mrb[0].mxu0 %v2380
      %v2607 = vpop.f32.mrb[0].mxu0
      %v2608 = vadd.f32 0.0, %v2607
      %v2609 = vpop.f32.mrb[0].mxu0
      %2610 = vmatprep.mubr.f32.mxu0 0.0
      %2611 = vmatmul.mubr.f32.gmra.mrb[0].mxu0 %v2383
      %v2612 = vpop.f32.mrb[0].mxu0
      %v2613 = vadd.f32 0.0, %v2612
      %v2614 = vpop.f32.mrb[0].mxu0
      %2615 = vmatprep.mubr.f32.mxu0 0.0
      %2616 = vmatmul.mubr.f32.gmra.mrb[0].mxu0 %v2386
      %v2617 = vpop.f32.mrb[0].mxu0
      %v2618 = vadd.f32 0.0, %v2617
      %v2619 = vpop.f32.mrb[0].mxu0
      %2620 = vmatprep.mubr.f32.mxu0 0.0
      %2621 = vmatmul.mubr.f32.gmra.mrb[0].mxu0 %v2389
      %v2622 = vpop.f32.mrb[0].mxu0
      %v2623 = vadd.f32 0.0, %v2622
      %v2624 = vpop.f32.mrb[0].mxu0
      %2625 = vmatprep.mubr.f32.mxu0 0.0
      %2626 = vmatmul.mubr.f32.gmra.mrb[0].mxu0 %v2392
      %v2627 = vpop.f32.mrb[0].mxu0
      %v2628 = vadd.f32 0.0, %v2627
      %v2629 = vpop.f32.mrb[0].mxu0
      %2630 = vmatprep.mubr.f32.mxu0 0.0
      %2631 = vmatmul.mubr.f32.gmra.mrb[0].mxu0 %v2395
      %v2632 = vpop.f32.mrb[0].mxu0
      %v2633 = vadd.f32 0.0, %v2632
      %v2634 = vpop.f32.mrb[0].mxu0
      %2635 = vmatprep.mubr.f32.mxu0 0.0
      %2636 = vmatmul.mubr.f32.gmra.mrb[0].mxu0 %v2398
      %v2637 = vpop.f32.mrb[0].mxu0
      %v2638 = vadd.f32 0.0, %v2637
      %v2639 = vpop.f32.mrb[0].mxu0
      %2640 = vmatprep.mubr.f32.mxu0 0.0
      %2641 = vmatmul.mubr.f32.gmra.mrb[0].mxu0 %v2401
      %v2642 = vpop.f32.mrb[0].mxu0
      %v2643 = vadd.f32 0.0, %v2642
      %v2644 = vpop.f32.mrb[0].mxu0
      %2645 = vmatprep.mubr.f32.mxu0 0.0
      %2646 = vmatmul.mubr.f32.gmra.mrb[0].mxu0 %v2404
      %v2647 = vpop.f32.mrb[0].mxu0
      %v2648 = vadd.f32 0.0, %v2647
      %v2649 = vpop.f32.mrb[0].mxu0
      %2650 = vdwg.mxu0
      %v2651 = vadd.f32 %v2219, %v2473
      %v2652 = vadd.f32 %v2220, %v2478
      %v2653 = vadd.f32 %v2221, %v2483
      %v2654 = vadd.f32 %v2222, %v2488
      %v2655 = vadd.f32 %v2223, %v2493
      %v2656 = vadd.f32 %v2224, %v2498
      %v2657 = vadd.f32 %v2225, %v2503
      %v2658 = vadd.f32 %v2226, %v2508
      %v2659 = vadd.f32 %v2227, %v2513
      %v2660 = vadd.f32 %v2228, %v2518
      %v2661 = vadd.f32 %v2229, %v2523
      %v2662 = vadd.f32 %v2230, %v2528
      %v2663 = vadd.f32 %v2231, %v2533
      %v2664 = vadd.f32 %v2232, %v2538
      %v2665 = vadd.f32 %v2233, %v2543
      %v2666 = vadd.f32 %v2234, %v2548
      %v2667 = vadd.f32 %v2235, %v2553
      %v2668 = vadd.f32 %v2236, %v2558
      %v2669 = vadd.f32 %v2237, %v2563
      %v2670 = vadd.f32 %v2238, %v2568
      %v2671 = vadd.f32 %v2239, %v2573
      %v2672 = vadd.f32 %v2240, %v2578
      %v2673 = vadd.f32 %v2241, %v2583
      %v2674 = vadd.f32 %v2242, %v2588
      %v2675 = vadd.f32 %v2243, %v2593
      %v2676 = vadd.f32 %v2244, %v2598
      %v2677 = vadd.f32 %v2245, %v2603
      %v2678 = vadd.f32 %v2246, %v2608
      %v2679 = vadd.f32 %v2247, %v2613
      %v2680 = vadd.f32 %v2248, %v2618
      %v2681 = vadd.f32 %v2249, %v2623
      %v2682 = vadd.f32 %v2250, %v2628
      %v2683 = vadd.f32 %v2251, %v2633
      %v2684 = vadd.f32 %v2252, %v2638
      %v2685 = vadd.f32 %v2253, %v2643
      %v2686 = vadd.f32 %v2254, %v2648
      %s2687 = sadd.s32 %s167, 36
      %s2688 = scalar_lea.vmem %s156, %s2687
      %v2689 = vld [vmem:[%s2688] sm:$0xff]
      %v2690 = vld [vmem:[%s2688 + $0x8] sm:$0xff]
      %v2691 = vld [vmem:[%s2688 + $0x10] sm:$0xff]
      %v2692 = vld [vmem:[%s2688 + $0x18] sm:$0xff]
      %v2693 = vld [vmem:[%s2688 + $0x20] sm:$0xff]
      %v2694 = vld [vmem:[%s2688 + $0x28] sm:$0xff]
      %v2695 = vld [vmem:[%s2688 + $0x30] sm:$0xff]
      %v2696 = vld [vmem:[%s2688 + $0x38] sm:$0xff]
      %v2697 = vld [vmem:[%s2688 + $0x40] sm:$0xff]
      %v2698 = vld [vmem:[%s2688 + $0x48] sm:$0xff]
      %v2699 = vld [vmem:[%s2688 + $0x50] sm:$0xff]
      %v2700 = vld [vmem:[%s2688 + $0x58] sm:$0xff]
      %v2701 = vld [vmem:[%s2688 + $0x60] sm:$0xff]
      %v2702 = vld [vmem:[%s2688 + $0x68] sm:$0xff]
      %v2703 = vld [vmem:[%s2688 + $0x70] sm:$0xff]
      %v2704 = vld [vmem:[%s2688 + $0x78] sm:$0xff]
      %v2705 = vld [vmem:[%s2688 + $0x80] sm:$0xff]
      %v2706 = vld [vmem:[%s2688 + $0x88] sm:$0xff]
      %v2707 = vld [vmem:[%s2688 + $0x90] sm:$0xff]
      %v2708 = vld [vmem:[%s2688 + $0x98] sm:$0xff]
      %v2709 = vld [vmem:[%s2688 + $0xa0] sm:$0xff]
      %v2710 = vld [vmem:[%s2688 + $0xa8] sm:$0xff]
      %v2711 = vld [vmem:[%s2688 + $0xb0] sm:$0xff]
      %v2712 = vld [vmem:[%s2688 + $0xb8] sm:$0xff]
      %v2713 = vld [vmem:[%s2688 + $0xc0] sm:$0xff]
      %v2714 = vld [vmem:[%s2688 + $0xc8] sm:$0xff]
      %v2715 = vld [vmem:[%s2688 + $0xd0] sm:$0xff]
      %v2716 = vld [vmem:[%s2688 + $0xd8] sm:$0xff]
      %v2717 = vld [vmem:[%s2688 + $0xe0] sm:$0xff]
      %v2718 = vld [vmem:[%s2688 + $0xe8] sm:$0xff]
      %v2719 = vld [vmem:[%s2688 + $0xf0] sm:$0xff]
      %v2720 = vld [vmem:[%s2688 + $0xf8] sm:$0xff]
      %v2721 = vld [vmem:[%s2688 + $0x100] sm:$0xff]
      %v2722 = vld [vmem:[%s2688 + $0x108] sm:$0xff]
      %v2723 = vld [vmem:[%s2688 + $0x110] sm:$0xff]
      %v2724 = vld [vmem:[%s2688 + $0x118] sm:$0xff]
      %s2725 = scalar_lea.vmem %s1, 192
      %v2726 = vld [vmem:[%s2725] sm:$0xff]
      %v2727 = vld [vmem:[%s2725 + $0x8] sm:$0xff]
      %v2728 = vld [vmem:[%s2725 + $0x10] sm:$0xff]
      %v2729 = vld [vmem:[%s2725 + $0x18] sm:$0xff]
      %v2731 = vsel %vm252, %v2689, 0
      %v2734 = vsel %vm252, %v2690, 0
      %v2737 = vsel %vm252, %v2691, 0
      %v2740 = vsel %vm252, %v2692, 0
      %v2743 = vsel %vm252, %v2693, 0
      %v2746 = vsel %vm252, %v2694, 0
      %v2749 = vsel %vm252, %v2695, 0
      %v2752 = vsel %vm252, %v2696, 0
      %v2755 = vsel %vm252, %v2697, 0
      %v2758 = vsel %vm252, %v2698, 0
      %v2761 = vsel %vm252, %v2699, 0
      %v2764 = vsel %vm252, %v2700, 0
      %v2767 = vsel %vm252, %v2701, 0
      %v2770 = vsel %vm252, %v2702, 0
      %v2773 = vsel %vm252, %v2703, 0
      %v2776 = vsel %vm252, %v2704, 0
      %v2779 = vsel %vm252, %v2705, 0
      %v2782 = vsel %vm252, %v2706, 0
      %v2785 = vsel %vm252, %v2707, 0
      %v2788 = vsel %vm252, %v2708, 0
      %v2791 = vsel %vm252, %v2709, 0
      %v2794 = vsel %vm252, %v2710, 0
      %v2797 = vsel %vm252, %v2711, 0
      %v2800 = vsel %vm252, %v2712, 0
      %v2803 = vsel %vm252, %v2713, 0
      %v2806 = vsel %vm252, %v2714, 0
      %v2809 = vsel %vm252, %v2715, 0
      %v2812 = vsel %vm252, %v2716, 0
      %v2815 = vsel %vm252, %v2717, 0
      %v2818 = vsel %vm252, %v2718, 0
      %v2821 = vsel %vm252, %v2719, 0
      %v2824 = vsel %vm252, %v2720, 0
      %v2827 = vsel %vm252, %v2721, 0
      %v2830 = vsel %vm252, %v2722, 0
      %v2833 = vsel %vm252, %v2723, 0
      %v2836 = vsel %vm252, %v2724, 0
      %2838 = vmatprep.subr.mxu0 0.0
      %2839 = vmatpush1.msra.mxu0 %v2726
      %2840 = vmatprep.subr.mxu0 0.0
      %2841 = vmatpush1.msra.mxu0 %v2727
      %2842 = vmatprep.subr.mxu0 0.0
      %2843 = vmatpush1.msra.mxu0 %v2728
      %2844 = vmatprep.subr.mxu0 0.0
      %2845 = vmatpush1.msra.mxu0 %v2729
      %2846 = vmatprep.subr.mxu0 0.0
      %2847 = vmatpush1.msra.mxu0 0.0
      %2848 = vmatprep.subr.mxu0 0.0
      %2849 = vmatpush1.msra.mxu0 0.0
      %2850 = vmatprep.subr.mxu0 0.0
      %2851 = vmatpush1.msra.mxu0 0.0
      %2852 = vmatprep.subr.mxu0 0.0
      %2853 = vmatpush1.msra.mxu0 0.0
      %2854 = vmatprep.subr.mxu0 0.0
      %2855 = vmatpush1.msra.mxu0 0.0
      %2856 = vmatprep.subr.mxu0 0.0
      %2857 = vmatpush1.msra.mxu0 0.0
      %2858 = vmatprep.subr.mxu0 0.0
      %2859 = vmatpush1.msra.mxu0 0.0
      %2860 = vmatprep.subr.mxu0 0.0
      %2861 = vmatpush1.msra.mxu0 0.0
      %2862 = vmatprep.subr.mxu0 0.0
      %2863 = vmatpush1.msra.mxu0 0.0
      %2864 = vmatprep.subr.mxu0 0.0
      %2865 = vmatpush1.msra.mxu0 0.0
      %2866 = vmatprep.subr.mxu0 0.0
      %2867 = vmatpush1.msra.mxu0 0.0
      %2868 = vmatprep.subr.mxu0 0.0
      %2869 = vmatpush1.msra.mxu0 0.0
      %2870 = vmatprep.subr.mxu0 0.0
      %2871 = vmatpush1.msra.mxu0 0.0
      %2872 = vmatprep.subr.mxu0 0.0
      %2873 = vmatpush1.msra.mxu0 0.0
      %2874 = vmatprep.subr.mxu0 0.0
      %2875 = vmatpush1.msra.mxu0 0.0
      %2876 = vmatprep.subr.mxu0 0.0
      %2877 = vmatpush1.msra.mxu0 0.0
      %2878 = vmatprep.subr.mxu0 0.0
      %2879 = vmatpush1.msra.mxu0 0.0
      %2880 = vmatprep.subr.mxu0 0.0
      %2881 = vmatpush1.msra.mxu0 0.0
      %2882 = vmatprep.subr.mxu0 0.0
      %2883 = vmatpush1.msra.mxu0 0.0
      %2884 = vmatprep.subr.mxu0 0.0
      %2885 = vmatpush1.msra.mxu0 0.0
      %2886 = vmatprep.subr.mxu0 0.0
      %2887 = vmatpush1.msra.mxu0 0.0
      %2888 = vmatprep.subr.mxu0 0.0
      %2889 = vmatpush1.msra.mxu0 0.0
      %2890 = vmatprep.subr.mxu0 0.0
      %2891 = vmatpush1.msra.mxu0 0.0
      %2892 = vmatprep.subr.mxu0 0.0
      %2893 = vmatpush1.msra.mxu0 0.0
      %2894 = vmatprep.subr.mxu0 0.0
      %2895 = vmatpush1.msra.mxu0 0.0
      %2896 = vmatprep.subr.mxu0 0.0
      %2897 = vmatpush1.msra.mxu0 0.0
      %2898 = vmatprep.subr.mxu0 0.0
      %2899 = vmatpush1.msra.mxu0 0.0
      %2900 = vmatprep.subr.mxu0 0.0
      %2901 = vmatpush1.msra.mxu0 0.0
      %2902 = vmatprep.mubr.f32.mxu0 0.0
      %2903 = vmatmul.mubr.f32.gmra.mrb[0].mxu0 %v2731
      %v2904 = vpop.f32.mrb[0].mxu0
      %v2905 = vadd.f32 0.0, %v2904
      %v2906 = vpop.f32.mrb[0].mxu0
      %2907 = vmatprep.mubr.f32.mxu0 0.0
      %2908 = vmatmul.mubr.f32.gmra.mrb[0].mxu0 %v2734
      %v2909 = vpop.f32.mrb[0].mxu0
      %v2910 = vadd.f32 0.0, %v2909
      %v2911 = vpop.f32.mrb[0].mxu0
      %2912 = vmatprep.mubr.f32.mxu0 0.0
      %2913 = vmatmul.mubr.f32.gmra.mrb[0].mxu0 %v2737
      %v2914 = vpop.f32.mrb[0].mxu0
      %v2915 = vadd.f32 0.0, %v2914
      %v2916 = vpop.f32.mrb[0].mxu0
      %2917 = vmatprep.mubr.f32.mxu0 0.0
      %2918 = vmatmul.mubr.f32.gmra.mrb[0].mxu0 %v2740
      %v2919 = vpop.f32.mrb[0].mxu0
      %v2920 = vadd.f32 0.0, %v2919
      %v2921 = vpop.f32.mrb[0].mxu0
      %2922 = vmatprep.mubr.f32.mxu0 0.0
      %2923 = vmatmul.mubr.f32.gmra.mrb[0].mxu0 %v2743
      %v2924 = vpop.f32.mrb[0].mxu0
      %v2925 = vadd.f32 0.0, %v2924
      %v2926 = vpop.f32.mrb[0].mxu0
      %2927 = vmatprep.mubr.f32.mxu0 0.0
      %2928 = vmatmul.mubr.f32.gmra.mrb[0].mxu0 %v2746
      %v2929 = vpop.f32.mrb[0].mxu0
      %v2930 = vadd.f32 0.0, %v2929
      %v2931 = vpop.f32.mrb[0].mxu0
      %2932 = vmatprep.mubr.f32.mxu0 0.0
      %2933 = vmatmul.mubr.f32.gmra.mrb[0].mxu0 %v2749
      %v2934 = vpop.f32.mrb[0].mxu0
      %v2935 = vadd.f32 0.0, %v2934
      %v2936 = vpop.f32.mrb[0].mxu0
      %2937 = vmatprep.mubr.f32.mxu0 0.0
      %2938 = vmatmul.mubr.f32.gmra.mrb[0].mxu0 %v2752
      %v2939 = vpop.f32.mrb[0].mxu0
      %v2940 = vadd.f32 0.0, %v2939
      %v2941 = vpop.f32.mrb[0].mxu0
      %2942 = vmatprep.mubr.f32.mxu0 0.0
      %2943 = vmatmul.mubr.f32.gmra.mrb[0].mxu0 %v2755
      %v2944 = vpop.f32.mrb[0].mxu0
      %v2945 = vadd.f32 0.0, %v2944
      %v2946 = vpop.f32.mrb[0].mxu0
      %2947 = vmatprep.mubr.f32.mxu0 0.0
      %2948 = vmatmul.mubr.f32.gmra.mrb[0].mxu0 %v2758
      %v2949 = vpop.f32.mrb[0].mxu0
      %v2950 = vadd.f32 0.0, %v2949
      %v2951 = vpop.f32.mrb[0].mxu0
      %2952 = vmatprep.mubr.f32.mxu0 0.0
      %2953 = vmatmul.mubr.f32.gmra.mrb[0].mxu0 %v2761
      %v2954 = vpop.f32.mrb[0].mxu0
      %v2955 = vadd.f32 0.0, %v2954
      %v2956 = vpop.f32.mrb[0].mxu0
      %2957 = vmatprep.mubr.f32.mxu0 0.0
      %2958 = vmatmul.mubr.f32.gmra.mrb[0].mxu0 %v2764
      %v2959 = vpop.f32.mrb[0].mxu0
      %v2960 = vadd.f32 0.0, %v2959
      %v2961 = vpop.f32.mrb[0].mxu0
      %2962 = vmatprep.mubr.f32.mxu0 0.0
      %2963 = vmatmul.mubr.f32.gmra.mrb[0].mxu0 %v2767
      %v2964 = vpop.f32.mrb[0].mxu0
      %v2965 = vadd.f32 0.0, %v2964
      %v2966 = vpop.f32.mrb[0].mxu0
      %2967 = vmatprep.mubr.f32.mxu0 0.0
      %2968 = vmatmul.mubr.f32.gmra.mrb[0].mxu0 %v2770
      %v2969 = vpop.f32.mrb[0].mxu0
      %v2970 = vadd.f32 0.0, %v2969
      %v2971 = vpop.f32.mrb[0].mxu0
      %2972 = vmatprep.mubr.f32.mxu0 0.0
      %2973 = vmatmul.mubr.f32.gmra.mrb[0].mxu0 %v2773
      %v2974 = vpop.f32.mrb[0].mxu0
      %v2975 = vadd.f32 0.0, %v2974
      %v2976 = vpop.f32.mrb[0].mxu0
      %2977 = vmatprep.mubr.f32.mxu0 0.0
      %2978 = vmatmul.mubr.f32.gmra.mrb[0].mxu0 %v2776
      %v2979 = vpop.f32.mrb[0].mxu0
      %v2980 = vadd.f32 0.0, %v2979
      %v2981 = vpop.f32.mrb[0].mxu0
      %2982 = vmatprep.mubr.f32.mxu0 0.0
      %2983 = vmatmul.mubr.f32.gmra.mrb[0].mxu0 %v2779
      %v2984 = vpop.f32.mrb[0].mxu0
      %v2985 = vadd.f32 0.0, %v2984
      %v2986 = vpop.f32.mrb[0].mxu0
      %2987 = vmatprep.mubr.f32.mxu0 0.0
      %2988 = vmatmul.mubr.f32.gmra.mrb[0].mxu0 %v2782
      %v2989 = vpop.f32.mrb[0].mxu0
      %v2990 = vadd.f32 0.0, %v2989
      %v2991 = vpop.f32.mrb[0].mxu0
      %2992 = vmatprep.mubr.f32.mxu0 0.0
      %2993 = vmatmul.mubr.f32.gmra.mrb[0].mxu0 %v2785
      %v2994 = vpop.f32.mrb[0].mxu0
      %v2995 = vadd.f32 0.0, %v2994
      %v2996 = vpop.f32.mrb[0].mxu0
      %2997 = vmatprep.mubr.f32.mxu0 0.0
      %2998 = vmatmul.mubr.f32.gmra.mrb[0].mxu0 %v2788
      %v2999 = vpop.f32.mrb[0].mxu0
      %v3000 = vadd.f32 0.0, %v2999
      %v3001 = vpop.f32.mrb[0].mxu0
      %3002 = vmatprep.mubr.f32.mxu0 0.0
      %3003 = vmatmul.mubr.f32.gmra.mrb[0].mxu0 %v2791
      %v3004 = vpop.f32.mrb[0].mxu0
      %v3005 = vadd.f32 0.0, %v3004
      %v3006 = vpop.f32.mrb[0].mxu0
      %3007 = vmatprep.mubr.f32.mxu0 0.0
      %3008 = vmatmul.mubr.f32.gmra.mrb[0].mxu0 %v2794
      %v3009 = vpop.f32.mrb[0].mxu0
      %v3010 = vadd.f32 0.0, %v3009
      %v3011 = vpop.f32.mrb[0].mxu0
      %3012 = vmatprep.mubr.f32.mxu0 0.0
      %3013 = vmatmul.mubr.f32.gmra.mrb[0].mxu0 %v2797
      %v3014 = vpop.f32.mrb[0].mxu0
      %v3015 = vadd.f32 0.0, %v3014
      %v3016 = vpop.f32.mrb[0].mxu0
      %3017 = vmatprep.mubr.f32.mxu0 0.0
      %3018 = vmatmul.mubr.f32.gmra.mrb[0].mxu0 %v2800
      %v3019 = vpop.f32.mrb[0].mxu0
      %v3020 = vadd.f32 0.0, %v3019
      %v3021 = vpop.f32.mrb[0].mxu0
      %3022 = vmatprep.mubr.f32.mxu0 0.0
      %3023 = vmatmul.mubr.f32.gmra.mrb[0].mxu0 %v2803
      %v3024 = vpop.f32.mrb[0].mxu0
      %v3025 = vadd.f32 0.0, %v3024
      %v3026 = vpop.f32.mrb[0].mxu0
      %3027 = vmatprep.mubr.f32.mxu0 0.0
      %3028 = vmatmul.mubr.f32.gmra.mrb[0].mxu0 %v2806
      %v3029 = vpop.f32.mrb[0].mxu0
      %v3030 = vadd.f32 0.0, %v3029
      %v3031 = vpop.f32.mrb[0].mxu0
      %3032 = vmatprep.mubr.f32.mxu0 0.0
      %3033 = vmatmul.mubr.f32.gmra.mrb[0].mxu0 %v2809
      %v3034 = vpop.f32.mrb[0].mxu0
      %v3035 = vadd.f32 0.0, %v3034
      %v3036 = vpop.f32.mrb[0].mxu0
      %3037 = vmatprep.mubr.f32.mxu0 0.0
      %3038 = vmatmul.mubr.f32.gmra.mrb[0].mxu0 %v2812
      %v3039 = vpop.f32.mrb[0].mxu0
      %v3040 = vadd.f32 0.0, %v3039
      %v3041 = vpop.f32.mrb[0].mxu0
      %3042 = vmatprep.mubr.f32.mxu0 0.0
      %3043 = vmatmul.mubr.f32.gmra.mrb[0].mxu0 %v2815
      %v3044 = vpop.f32.mrb[0].mxu0
      %v3045 = vadd.f32 0.0, %v3044
      %v3046 = vpop.f32.mrb[0].mxu0
      %3047 = vmatprep.mubr.f32.mxu0 0.0
      %3048 = vmatmul.mubr.f32.gmra.mrb[0].mxu0 %v2818
      %v3049 = vpop.f32.mrb[0].mxu0
      %v3050 = vadd.f32 0.0, %v3049
      %v3051 = vpop.f32.mrb[0].mxu0
      %3052 = vmatprep.mubr.f32.mxu0 0.0
      %3053 = vmatmul.mubr.f32.gmra.mrb[0].mxu0 %v2821
      %v3054 = vpop.f32.mrb[0].mxu0
      %v3055 = vadd.f32 0.0, %v3054
      %v3056 = vpop.f32.mrb[0].mxu0
      %3057 = vmatprep.mubr.f32.mxu0 0.0
      %3058 = vmatmul.mubr.f32.gmra.mrb[0].mxu0 %v2824
      %v3059 = vpop.f32.mrb[0].mxu0
      %v3060 = vadd.f32 0.0, %v3059
      %v3061 = vpop.f32.mrb[0].mxu0
      %3062 = vmatprep.mubr.f32.mxu0 0.0
      %3063 = vmatmul.mubr.f32.gmra.mrb[0].mxu0 %v2827
      %v3064 = vpop.f32.mrb[0].mxu0
      %v3065 = vadd.f32 0.0, %v3064
      %v3066 = vpop.f32.mrb[0].mxu0
      %3067 = vmatprep.mubr.f32.mxu0 0.0
      %3068 = vmatmul.mubr.f32.gmra.mrb[0].mxu0 %v2830
      %v3069 = vpop.f32.mrb[0].mxu0
      %v3070 = vadd.f32 0.0, %v3069
      %v3071 = vpop.f32.mrb[0].mxu0
      %3072 = vmatprep.mubr.f32.mxu0 0.0
      %3073 = vmatmul.mubr.f32.gmra.mrb[0].mxu0 %v2833
      %v3074 = vpop.f32.mrb[0].mxu0
      %v3075 = vadd.f32 0.0, %v3074
      %v3076 = vpop.f32.mrb[0].mxu0
      %3077 = vmatprep.mubr.f32.mxu0 0.0
      %3078 = vmatmul.mubr.f32.gmra.mrb[0].mxu0 %v2836
      %v3079 = vpop.f32.mrb[0].mxu0
      %v3080 = vadd.f32 0.0, %v3079
      %v3081 = vpop.f32.mrb[0].mxu0
      %3082 = vdwg.mxu0
      %v3083 = vadd.f32 %v2651, %v2905
      %v3084 = vadd.f32 %v2652, %v2910
      %v3085 = vadd.f32 %v2653, %v2915
      %v3086 = vadd.f32 %v2654, %v2920
      %v3087 = vadd.f32 %v2655, %v2925
      %v3088 = vadd.f32 %v2656, %v2930
      %v3089 = vadd.f32 %v2657, %v2935
      %v3090 = vadd.f32 %v2658, %v2940
      %v3091 = vadd.f32 %v2659, %v2945
      %v3092 = vadd.f32 %v2660, %v2950
      %v3093 = vadd.f32 %v2661, %v2955
      %v3094 = vadd.f32 %v2662, %v2960
      %v3095 = vadd.f32 %v2663, %v2965
      %v3096 = vadd.f32 %v2664, %v2970
      %v3097 = vadd.f32 %v2665, %v2975
      %v3098 = vadd.f32 %v2666, %v2980
      %v3099 = vadd.f32 %v2667, %v2985
      %v3100 = vadd.f32 %v2668, %v2990
      %v3101 = vadd.f32 %v2669, %v2995
      %v3102 = vadd.f32 %v2670, %v3000
      %v3103 = vadd.f32 %v2671, %v3005
      %v3104 = vadd.f32 %v2672, %v3010
      %v3105 = vadd.f32 %v2673, %v3015
      %v3106 = vadd.f32 %v2674, %v3020
      %v3107 = vadd.f32 %v2675, %v3025
      %v3108 = vadd.f32 %v2676, %v3030
      %v3109 = vadd.f32 %v2677, %v3035
      %v3110 = vadd.f32 %v2678, %v3040
      %v3111 = vadd.f32 %v2679, %v3045
      %v3112 = vadd.f32 %v2680, %v3050
      %v3113 = vadd.f32 %v2681, %v3055
      %v3114 = vadd.f32 %v2682, %v3060
      %v3115 = vadd.f32 %v2683, %v3065
      %v3116 = vadd.f32 %v2684, %v3070
      %v3117 = vadd.f32 %v2685, %v3075
      %v3118 = vadd.f32 %v2686, %v3080
      %s3119 = sadd.s32 %s167, 37
      %s3120 = scalar_lea.vmem %s156, %s3119
      %v3121 = vld [vmem:[%s3120] sm:$0xff]
      %v3122 = vld [vmem:[%s3120 + $0x8] sm:$0xff]
      %v3123 = vld [vmem:[%s3120 + $0x10] sm:$0xff]
      %v3124 = vld [vmem:[%s3120 + $0x18] sm:$0xff]
      %v3125 = vld [vmem:[%s3120 + $0x20] sm:$0xff]
      %v3126 = vld [vmem:[%s3120 + $0x28] sm:$0xff]
      %v3127 = vld [vmem:[%s3120 + $0x30] sm:$0xff]
      %v3128 = vld [vmem:[%s3120 + $0x38] sm:$0xff]
      %v3129 = vld [vmem:[%s3120 + $0x40] sm:$0xff]
      %v3130 = vld [vmem:[%s3120 + $0x48] sm:$0xff]
      %v3131 = vld [vmem:[%s3120 + $0x50] sm:$0xff]
      %v3132 = vld [vmem:[%s3120 + $0x58] sm:$0xff]
      %v3133 = vld [vmem:[%s3120 + $0x60] sm:$0xff]
      %v3134 = vld [vmem:[%s3120 + $0x68] sm:$0xff]
      %v3135 = vld [vmem:[%s3120 + $0x70] sm:$0xff]
      %v3136 = vld [vmem:[%s3120 + $0x78] sm:$0xff]
      %v3137 = vld [vmem:[%s3120 + $0x80] sm:$0xff]
      %v3138 = vld [vmem:[%s3120 + $0x88] sm:$0xff]
      %v3139 = vld [vmem:[%s3120 + $0x90] sm:$0xff]
      %v3140 = vld [vmem:[%s3120 + $0x98] sm:$0xff]
      %v3141 = vld [vmem:[%s3120 + $0xa0] sm:$0xff]
      %v3142 = vld [vmem:[%s3120 + $0xa8] sm:$0xff]
      %v3143 = vld [vmem:[%s3120 + $0xb0] sm:$0xff]
      %v3144 = vld [vmem:[%s3120 + $0xb8] sm:$0xff]
      %v3145 = vld [vmem:[%s3120 + $0xc0] sm:$0xff]
      %v3146 = vld [vmem:[%s3120 + $0xc8] sm:$0xff]
      %v3147 = vld [vmem:[%s3120 + $0xd0] sm:$0xff]
      %v3148 = vld [vmem:[%s3120 + $0xd8] sm:$0xff]
      %v3149 = vld [vmem:[%s3120 + $0xe0] sm:$0xff]
      %v3150 = vld [vmem:[%s3120 + $0xe8] sm:$0xff]
      %v3151 = vld [vmem:[%s3120 + $0xf0] sm:$0xff]
      %v3152 = vld [vmem:[%s3120 + $0xf8] sm:$0xff]
      %v3153 = vld [vmem:[%s3120 + $0x100] sm:$0xff]
      %v3154 = vld [vmem:[%s3120 + $0x108] sm:$0xff]
      %v3155 = vld [vmem:[%s3120 + $0x110] sm:$0xff]
      %v3156 = vld [vmem:[%s3120 + $0x118] sm:$0xff]
      %s3157 = scalar_lea.vmem %s1, 224
      %v3158 = vld [vmem:[%s3157] sm:$0xff]
      %v3159 = vld [vmem:[%s3157 + $0x8] sm:$0xff]
      %v3160 = vld [vmem:[%s3157 + $0x10] sm:$0xff]
      %v3161 = vld [vmem:[%s3157 + $0x18] sm:$0xff]
      %v3163 = vsel %vm252, %v3121, 0
      %v3166 = vsel %vm252, %v3122, 0
      %v3169 = vsel %vm252, %v3123, 0
      %v3172 = vsel %vm252, %v3124, 0
      %v3175 = vsel %vm252, %v3125, 0
      %v3178 = vsel %vm252, %v3126, 0
      %v3181 = vsel %vm252, %v3127, 0
      %v3184 = vsel %vm252, %v3128, 0
      %v3187 = vsel %vm252, %v3129, 0
      %v3190 = vsel %vm252, %v3130, 0
      %v3193 = vsel %vm252, %v3131, 0
      %v3196 = vsel %vm252, %v3132, 0
      %v3199 = vsel %vm252, %v3133, 0
      %v3202 = vsel %vm252, %v3134, 0
      %v3205 = vsel %vm252, %v3135, 0
      %v3208 = vsel %vm252, %v3136, 0
      %v3211 = vsel %vm252, %v3137, 0
      %v3214 = vsel %vm252, %v3138, 0
      %v3217 = vsel %vm252, %v3139, 0
      %v3220 = vsel %vm252, %v3140, 0
      %v3223 = vsel %vm252, %v3141, 0
      %v3226 = vsel %vm252, %v3142, 0
      %v3229 = vsel %vm252, %v3143, 0
      %v3232 = vsel %vm252, %v3144, 0
      %v3235 = vsel %vm252, %v3145, 0
      %v3238 = vsel %vm252, %v3146, 0
      %v3241 = vsel %vm252, %v3147, 0
      %v3244 = vsel %vm252, %v3148, 0
      %v3247 = vsel %vm252, %v3149, 0
      %v3250 = vsel %vm252, %v3150, 0
      %v3253 = vsel %vm252, %v3151, 0
      %v3256 = vsel %vm252, %v3152, 0
      %v3259 = vsel %vm252, %v3153, 0
      %v3262 = vsel %vm252, %v3154, 0
      %v3265 = vsel %vm252, %v3155, 0
      %v3268 = vsel %vm252, %v3156, 0
      %3270 = vmatprep.subr.mxu0 0.0
      %3271 = vmatpush1.msra.mxu0 %v3158
      %3272 = vmatprep.subr.mxu0 0.0
      %3273 = vmatpush1.msra.mxu0 %v3159
      %3274 = vmatprep.subr.mxu0 0.0
      %3275 = vmatpush1.msra.mxu0 %v3160
      %3276 = vmatprep.subr.mxu0 0.0
      %3277 = vmatpush1.msra.mxu0 %v3161
      %3278 = vmatprep.subr.mxu0 0.0
      %3279 = vmatpush1.msra.mxu0 0.0
      %3280 = vmatprep.subr.mxu0 0.0
      %3281 = vmatpush1.msra.mxu0 0.0
      %3282 = vmatprep.subr.mxu0 0.0
      %3283 = vmatpush1.msra.mxu0 0.0
      %3284 = vmatprep.subr.mxu0 0.0
      %3285 = vmatpush1.msra.mxu0 0.0
      %3286 = vmatprep.subr.mxu0 0.0
      %3287 = vmatpush1.msra.mxu0 0.0
      %3288 = vmatprep.subr.mxu0 0.0
      %3289 = vmatpush1.msra.mxu0 0.0
      %3290 = vmatprep.subr.mxu0 0.0
      %3291 = vmatpush1.msra.mxu0 0.0
      %3292 = vmatprep.subr.mxu0 0.0
      %3293 = vmatpush1.msra.mxu0 0.0
      %3294 = vmatprep.subr.mxu0 0.0
      %3295 = vmatpush1.msra.mxu0 0.0
      %3296 = vmatprep.subr.mxu0 0.0
      %3297 = vmatpush1.msra.mxu0 0.0
      %3298 = vmatprep.subr.mxu0 0.0
      %3299 = vmatpush1.msra.mxu0 0.0
      %3300 = vmatprep.subr.mxu0 0.0
      %3301 = vmatpush1.msra.mxu0 0.0
      %3302 = vmatprep.subr.mxu0 0.0
      %3303 = vmatpush1.msra.mxu0 0.0
      %3304 = vmatprep.subr.mxu0 0.0
      %3305 = vmatpush1.msra.mxu0 0.0
      %3306 = vmatprep.subr.mxu0 0.0
      %3307 = vmatpush1.msra.mxu0 0.0
      %3308 = vmatprep.subr.mxu0 0.0
      %3309 = vmatpush1.msra.mxu0 0.0
      %3310 = vmatprep.subr.mxu0 0.0
      %3311 = vmatpush1.msra.mxu0 0.0
      %3312 = vmatprep.subr.mxu0 0.0
      %3313 = vmatpush1.msra.mxu0 0.0
      %3314 = vmatprep.subr.mxu0 0.0
      %3315 = vmatpush1.msra.mxu0 0.0
      %3316 = vmatprep.subr.mxu0 0.0
      %3317 = vmatpush1.msra.mxu0 0.0
      %3318 = vmatprep.subr.mxu0 0.0
      %3319 = vmatpush1.msra.mxu0 0.0
      %3320 = vmatprep.subr.mxu0 0.0
      %3321 = vmatpush1.msra.mxu0 0.0
      %3322 = vmatprep.subr.mxu0 0.0
      %3323 = vmatpush1.msra.mxu0 0.0
      %3324 = vmatprep.subr.mxu0 0.0
      %3325 = vmatpush1.msra.mxu0 0.0
      %3326 = vmatprep.subr.mxu0 0.0
      %3327 = vmatpush1.msra.mxu0 0.0
      %3328 = vmatprep.subr.mxu0 0.0
      %3329 = vmatpush1.msra.mxu0 0.0
      %3330 = vmatprep.subr.mxu0 0.0
      %3331 = vmatpush1.msra.mxu0 0.0
      %3332 = vmatprep.subr.mxu0 0.0
      %3333 = vmatpush1.msra.mxu0 0.0
      %3334 = vmatprep.mubr.f32.mxu0 0.0
      %3335 = vmatmul.mubr.f32.gmra.mrb[0].mxu0 %v3163
      %v3336 = vpop.f32.mrb[0].mxu0
      %v3337 = vadd.f32 0.0, %v3336
      %v3338 = vpop.f32.mrb[0].mxu0
      %3339 = vmatprep.mubr.f32.mxu0 0.0
      %3340 = vmatmul.mubr.f32.gmra.mrb[0].mxu0 %v3166
      %v3341 = vpop.f32.mrb[0].mxu0
      %v3342 = vadd.f32 0.0, %v3341
      %v3343 = vpop.f32.mrb[0].mxu0
      %3344 = vmatprep.mubr.f32.mxu0 0.0
      %3345 = vmatmul.mubr.f32.gmra.mrb[0].mxu0 %v3169
      %v3346 = vpop.f32.mrb[0].mxu0
      %v3347 = vadd.f32 0.0, %v3346
      %v3348 = vpop.f32.mrb[0].mxu0
      %3349 = vmatprep.mubr.f32.mxu0 0.0
      %3350 = vmatmul.mubr.f32.gmra.mrb[0].mxu0 %v3172
      %v3351 = vpop.f32.mrb[0].mxu0
      %v3352 = vadd.f32 0.0, %v3351
      %v3353 = vpop.f32.mrb[0].mxu0
      %3354 = vmatprep.mubr.f32.mxu0 0.0
      %3355 = vmatmul.mubr.f32.gmra.mrb[0].mxu0 %v3175
      %v3356 = vpop.f32.mrb[0].mxu0
      %v3357 = vadd.f32 0.0, %v3356
      %v3358 = vpop.f32.mrb[0].mxu0
      %3359 = vmatprep.mubr.f32.mxu0 0.0
      %3360 = vmatmul.mubr.f32.gmra.mrb[0].mxu0 %v3178
      %v3361 = vpop.f32.mrb[0].mxu0
      %v3362 = vadd.f32 0.0, %v3361
      %v3363 = vpop.f32.mrb[0].mxu0
      %3364 = vmatprep.mubr.f32.mxu0 0.0
      %3365 = vmatmul.mubr.f32.gmra.mrb[0].mxu0 %v3181
      %v3366 = vpop.f32.mrb[0].mxu0
      %v3367 = vadd.f32 0.0, %v3366
      %v3368 = vpop.f32.mrb[0].mxu0
      %3369 = vmatprep.mubr.f32.mxu0 0.0
      %3370 = vmatmul.mubr.f32.gmra.mrb[0].mxu0 %v3184
      %v3371 = vpop.f32.mrb[0].mxu0
      %v3372 = vadd.f32 0.0, %v3371
      %v3373 = vpop.f32.mrb[0].mxu0
      %3374 = vmatprep.mubr.f32.mxu0 0.0
      %3375 = vmatmul.mubr.f32.gmra.mrb[0].mxu0 %v3187
      %v3376 = vpop.f32.mrb[0].mxu0
      %v3377 = vadd.f32 0.0, %v3376
      %v3378 = vpop.f32.mrb[0].mxu0
      %3379 = vmatprep.mubr.f32.mxu0 0.0
      %3380 = vmatmul.mubr.f32.gmra.mrb[0].mxu0 %v3190
      %v3381 = vpop.f32.mrb[0].mxu0
      %v3382 = vadd.f32 0.0, %v3381
      %v3383 = vpop.f32.mrb[0].mxu0
      %3384 = vmatprep.mubr.f32.mxu0 0.0
      %3385 = vmatmul.mubr.f32.gmra.mrb[0].mxu0 %v3193
      %v3386 = vpop.f32.mrb[0].mxu0
      %v3387 = vadd.f32 0.0, %v3386
      %v3388 = vpop.f32.mrb[0].mxu0
      %3389 = vmatprep.mubr.f32.mxu0 0.0
      %3390 = vmatmul.mubr.f32.gmra.mrb[0].mxu0 %v3196
      %v3391 = vpop.f32.mrb[0].mxu0
      %v3392 = vadd.f32 0.0, %v3391
      %v3393 = vpop.f32.mrb[0].mxu0
      %3394 = vmatprep.mubr.f32.mxu0 0.0
      %3395 = vmatmul.mubr.f32.gmra.mrb[0].mxu0 %v3199
      %v3396 = vpop.f32.mrb[0].mxu0
      %v3397 = vadd.f32 0.0, %v3396
      %v3398 = vpop.f32.mrb[0].mxu0
      %3399 = vmatprep.mubr.f32.mxu0 0.0
      %3400 = vmatmul.mubr.f32.gmra.mrb[0].mxu0 %v3202
      %v3401 = vpop.f32.mrb[0].mxu0
      %v3402 = vadd.f32 0.0, %v3401
      %v3403 = vpop.f32.mrb[0].mxu0
      %3404 = vmatprep.mubr.f32.mxu0 0.0
      %3405 = vmatmul.mubr.f32.gmra.mrb[0].mxu0 %v3205
      %v3406 = vpop.f32.mrb[0].mxu0
      %v3407 = vadd.f32 0.0, %v3406
      %v3408 = vpop.f32.mrb[0].mxu0
      %3409 = vmatprep.mubr.f32.mxu0 0.0
      %3410 = vmatmul.mubr.f32.gmra.mrb[0].mxu0 %v3208
      %v3411 = vpop.f32.mrb[0].mxu0
      %v3412 = vadd.f32 0.0, %v3411
      %v3413 = vpop.f32.mrb[0].mxu0
      %3414 = vmatprep.mubr.f32.mxu0 0.0
      %3415 = vmatmul.mubr.f32.gmra.mrb[0].mxu0 %v3211
      %v3416 = vpop.f32.mrb[0].mxu0
      %v3417 = vadd.f32 0.0, %v3416
      %v3418 = vpop.f32.mrb[0].mxu0
      %3419 = vmatprep.mubr.f32.mxu0 0.0
      %3420 = vmatmul.mubr.f32.gmra.mrb[0].mxu0 %v3214
      %v3421 = vpop.f32.mrb[0].mxu0
      %v3422 = vadd.f32 0.0, %v3421
      %v3423 = vpop.f32.mrb[0].mxu0
      %3424 = vmatprep.mubr.f32.mxu0 0.0
      %3425 = vmatmul.mubr.f32.gmra.mrb[0].mxu0 %v3217
      %v3426 = vpop.f32.mrb[0].mxu0
      %v3427 = vadd.f32 0.0, %v3426
      %v3428 = vpop.f32.mrb[0].mxu0
      %3429 = vmatprep.mubr.f32.mxu0 0.0
      %3430 = vmatmul.mubr.f32.gmra.mrb[0].mxu0 %v3220
      %v3431 = vpop.f32.mrb[0].mxu0
      %v3432 = vadd.f32 0.0, %v3431
      %v3433 = vpop.f32.mrb[0].mxu0
      %3434 = vmatprep.mubr.f32.mxu0 0.0
      %3435 = vmatmul.mubr.f32.gmra.mrb[0].mxu0 %v3223
      %v3436 = vpop.f32.mrb[0].mxu0
      %v3437 = vadd.f32 0.0, %v3436
      %v3438 = vpop.f32.mrb[0].mxu0
      %3439 = vmatprep.mubr.f32.mxu0 0.0
      %3440 = vmatmul.mubr.f32.gmra.mrb[0].mxu0 %v3226
      %v3441 = vpop.f32.mrb[0].mxu0
      %v3442 = vadd.f32 0.0, %v3441
      %v3443 = vpop.f32.mrb[0].mxu0
      %3444 = vmatprep.mubr.f32.mxu0 0.0
      %3445 = vmatmul.mubr.f32.gmra.mrb[0].mxu0 %v3229
      %v3446 = vpop.f32.mrb[0].mxu0
      %v3447 = vadd.f32 0.0, %v3446
      %v3448 = vpop.f32.mrb[0].mxu0
      %3449 = vmatprep.mubr.f32.mxu0 0.0
      %3450 = vmatmul.mubr.f32.gmra.mrb[0].mxu0 %v3232
      %v3451 = vpop.f32.mrb[0].mxu0
      %v3452 = vadd.f32 0.0, %v3451
      %v3453 = vpop.f32.mrb[0].mxu0
      %3454 = vmatprep.mubr.f32.mxu0 0.0
      %3455 = vmatmul.mubr.f32.gmra.mrb[0].mxu0 %v3235
      %v3456 = vpop.f32.mrb[0].mxu0
      %v3457 = vadd.f32 0.0, %v3456
      %v3458 = vpop.f32.mrb[0].mxu0
      %3459 = vmatprep.mubr.f32.mxu0 0.0
      %3460 = vmatmul.mubr.f32.gmra.mrb[0].mxu0 %v3238
      %v3461 = vpop.f32.mrb[0].mxu0
      %v3462 = vadd.f32 0.0, %v3461
      %v3463 = vpop.f32.mrb[0].mxu0
      %3464 = vmatprep.mubr.f32.mxu0 0.0
      %3465 = vmatmul.mubr.f32.gmra.mrb[0].mxu0 %v3241
      %v3466 = vpop.f32.mrb[0].mxu0
      %v3467 = vadd.f32 0.0, %v3466
      %v3468 = vpop.f32.mrb[0].mxu0
      %3469 = vmatprep.mubr.f32.mxu0 0.0
      %3470 = vmatmul.mubr.f32.gmra.mrb[0].mxu0 %v3244
      %v3471 = vpop.f32.mrb[0].mxu0
      %v3472 = vadd.f32 0.0, %v3471
      %v3473 = vpop.f32.mrb[0].mxu0
      %3474 = vmatprep.mubr.f32.mxu0 0.0
      %3475 = vmatmul.mubr.f32.gmra.mrb[0].mxu0 %v3247
      %v3476 = vpop.f32.mrb[0].mxu0
      %v3477 = vadd.f32 0.0, %v3476
      %v3478 = vpop.f32.mrb[0].mxu0
      %3479 = vmatprep.mubr.f32.mxu0 0.0
      %3480 = vmatmul.mubr.f32.gmra.mrb[0].mxu0 %v3250
      %v3481 = vpop.f32.mrb[0].mxu0
      %v3482 = vadd.f32 0.0, %v3481
      %v3483 = vpop.f32.mrb[0].mxu0
      %3484 = vmatprep.mubr.f32.mxu0 0.0
      %3485 = vmatmul.mubr.f32.gmra.mrb[0].mxu0 %v3253
      %v3486 = vpop.f32.mrb[0].mxu0
      %v3487 = vadd.f32 0.0, %v3486
      %v3488 = vpop.f32.mrb[0].mxu0
      %3489 = vmatprep.mubr.f32.mxu0 0.0
      %3490 = vmatmul.mubr.f32.gmra.mrb[0].mxu0 %v3256
      %v3491 = vpop.f32.mrb[0].mxu0
      %v3492 = vadd.f32 0.0, %v3491
      %v3493 = vpop.f32.mrb[0].mxu0
      %3494 = vmatprep.mubr.f32.mxu0 0.0
      %3495 = vmatmul.mubr.f32.gmra.mrb[0].mxu0 %v3259
      %v3496 = vpop.f32.mrb[0].mxu0
      %v3497 = vadd.f32 0.0, %v3496
      %v3498 = vpop.f32.mrb[0].mxu0
      %3499 = vmatprep.mubr.f32.mxu0 0.0
      %3500 = vmatmul.mubr.f32.gmra.mrb[0].mxu0 %v3262
      %v3501 = vpop.f32.mrb[0].mxu0
      %v3502 = vadd.f32 0.0, %v3501
      %v3503 = vpop.f32.mrb[0].mxu0
      %3504 = vmatprep.mubr.f32.mxu0 0.0
      %3505 = vmatmul.mubr.f32.gmra.mrb[0].mxu0 %v3265
      %v3506 = vpop.f32.mrb[0].mxu0
      %v3507 = vadd.f32 0.0, %v3506
      %v3508 = vpop.f32.mrb[0].mxu0
      %3509 = vmatprep.mubr.f32.mxu0 0.0
      %3510 = vmatmul.mubr.f32.gmra.mrb[0].mxu0 %v3268
      %v3511 = vpop.f32.mrb[0].mxu0
      %v3512 = vadd.f32 0.0, %v3511
      %v3513 = vpop.f32.mrb[0].mxu0
      %3514 = vdwg.mxu0
      %v3515 = vadd.f32 %v3083, %v3337
      %v3516 = vadd.f32 %v3084, %v3342
      %v3517 = vadd.f32 %v3085, %v3347
      %v3518 = vadd.f32 %v3086, %v3352
      %v3519 = vadd.f32 %v3087, %v3357
      %v3520 = vadd.f32 %v3088, %v3362
      %v3521 = vadd.f32 %v3089, %v3367
      %v3522 = vadd.f32 %v3090, %v3372
      %v3523 = vadd.f32 %v3091, %v3377
      %v3524 = vadd.f32 %v3092, %v3382
      %v3525 = vadd.f32 %v3093, %v3387
      %v3526 = vadd.f32 %v3094, %v3392
      %v3527 = vadd.f32 %v3095, %v3397
      %v3528 = vadd.f32 %v3096, %v3402
      %v3529 = vadd.f32 %v3097, %v3407
      %v3530 = vadd.f32 %v3098, %v3412
      %v3531 = vadd.f32 %v3099, %v3417
      %v3532 = vadd.f32 %v3100, %v3422
      %v3533 = vadd.f32 %v3101, %v3427
      %v3534 = vadd.f32 %v3102, %v3432
      %v3535 = vadd.f32 %v3103, %v3437
      %v3536 = vadd.f32 %v3104, %v3442
      %v3537 = vadd.f32 %v3105, %v3447
      %v3538 = vadd.f32 %v3106, %v3452
      %v3539 = vadd.f32 %v3107, %v3457
      %v3540 = vadd.f32 %v3108, %v3462
      %v3541 = vadd.f32 %v3109, %v3467
      %v3542 = vadd.f32 %v3110, %v3472
      %v3543 = vadd.f32 %v3111, %v3477
      %v3544 = vadd.f32 %v3112, %v3482
      %v3545 = vadd.f32 %v3113, %v3487
      %v3546 = vadd.f32 %v3114, %v3492
      %v3547 = vadd.f32 %v3115, %v3497
      %v3548 = vadd.f32 %v3116, %v3502
      %v3549 = vadd.f32 %v3117, %v3507
      %v3550 = vadd.f32 %v3118, %v3512
      %s3551 = sadd.s32 %s167, 38
      %s3552 = scalar_lea.vmem %s156, %s3551
      %v3553 = vld [vmem:[%s3552] sm:$0xff]
      %v3554 = vld [vmem:[%s3552 + $0x8] sm:$0xff]
      %v3555 = vld [vmem:[%s3552 + $0x10] sm:$0xff]
      %v3556 = vld [vmem:[%s3552 + $0x18] sm:$0xff]
      %v3557 = vld [vmem:[%s3552 + $0x20] sm:$0xff]
      %v3558 = vld [vmem:[%s3552 + $0x28] sm:$0xff]
      %v3559 = vld [vmem:[%s3552 + $0x30] sm:$0xff]
      %v3560 = vld [vmem:[%s3552 + $0x38] sm:$0xff]
      %v3561 = vld [vmem:[%s3552 + $0x40] sm:$0xff]
      %v3562 = vld [vmem:[%s3552 + $0x48] sm:$0xff]
      %v3563 = vld [vmem:[%s3552 + $0x50] sm:$0xff]
      %v3564 = vld [vmem:[%s3552 + $0x58] sm:$0xff]
      %v3565 = vld [vmem:[%s3552 + $0x60] sm:$0xff]
      %v3566 = vld [vmem:[%s3552 + $0x68] sm:$0xff]
      %v3567 = vld [vmem:[%s3552 + $0x70] sm:$0xff]
      %v3568 = vld [vmem:[%s3552 + $0x78] sm:$0xff]
      %v3569 = vld [vmem:[%s3552 + $0x80] sm:$0xff]
      %v3570 = vld [vmem:[%s3552 + $0x88] sm:$0xff]
      %v3571 = vld [vmem:[%s3552 + $0x90] sm:$0xff]
      %v3572 = vld [vmem:[%s3552 + $0x98] sm:$0xff]
      %v3573 = vld [vmem:[%s3552 + $0xa0] sm:$0xff]
      %v3574 = vld [vmem:[%s3552 + $0xa8] sm:$0xff]
      %v3575 = vld [vmem:[%s3552 + $0xb0] sm:$0xff]
      %v3576 = vld [vmem:[%s3552 + $0xb8] sm:$0xff]
      %v3577 = vld [vmem:[%s3552 + $0xc0] sm:$0xff]
      %v3578 = vld [vmem:[%s3552 + $0xc8] sm:$0xff]
      %v3579 = vld [vmem:[%s3552 + $0xd0] sm:$0xff]
      %v3580 = vld [vmem:[%s3552 + $0xd8] sm:$0xff]
      %v3581 = vld [vmem:[%s3552 + $0xe0] sm:$0xff]
      %v3582 = vld [vmem:[%s3552 + $0xe8] sm:$0xff]
      %v3583 = vld [vmem:[%s3552 + $0xf0] sm:$0xff]
      %v3584 = vld [vmem:[%s3552 + $0xf8] sm:$0xff]
      %v3585 = vld [vmem:[%s3552 + $0x100] sm:$0xff]
      %v3586 = vld [vmem:[%s3552 + $0x108] sm:$0xff]
      %v3587 = vld [vmem:[%s3552 + $0x110] sm:$0xff]
      %v3588 = vld [vmem:[%s3552 + $0x118] sm:$0xff]
      %s3589 = scalar_lea.vmem %s1, 256
      %v3590 = vld [vmem:[%s3589] sm:$0xff]
      %v3591 = vld [vmem:[%s3589 + $0x8] sm:$0xff]
      %v3592 = vld [vmem:[%s3589 + $0x10] sm:$0xff]
      %v3593 = vld [vmem:[%s3589 + $0x18] sm:$0xff]
      %v3595 = vsel %vm252, %v3553, 0
      %v3598 = vsel %vm252, %v3554, 0
      %v3601 = vsel %vm252, %v3555, 0
      %v3604 = vsel %vm252, %v3556, 0
      %v3607 = vsel %vm252, %v3557, 0
      %v3610 = vsel %vm252, %v3558, 0
      %v3613 = vsel %vm252, %v3559, 0
      %v3616 = vsel %vm252, %v3560, 0
      %v3619 = vsel %vm252, %v3561, 0
      %v3622 = vsel %vm252, %v3562, 0
      %v3625 = vsel %vm252, %v3563, 0
      %v3628 = vsel %vm252, %v3564, 0
      %v3631 = vsel %vm252, %v3565, 0
      %v3634 = vsel %vm252, %v3566, 0
      %v3637 = vsel %vm252, %v3567, 0
      %v3640 = vsel %vm252, %v3568, 0
      %v3643 = vsel %vm252, %v3569, 0
      %v3646 = vsel %vm252, %v3570, 0
      %v3649 = vsel %vm252, %v3571, 0
      %v3652 = vsel %vm252, %v3572, 0
      %v3655 = vsel %vm252, %v3573, 0
      %v3658 = vsel %vm252, %v3574, 0
      %v3661 = vsel %vm252, %v3575, 0
      %v3664 = vsel %vm252, %v3576, 0
      %v3667 = vsel %vm252, %v3577, 0
      %v3670 = vsel %vm252, %v3578, 0
      %v3673 = vsel %vm252, %v3579, 0
      %v3676 = vsel %vm252, %v3580, 0
      %v3679 = vsel %vm252, %v3581, 0
      %v3682 = vsel %vm252, %v3582, 0
      %v3685 = vsel %vm252, %v3583, 0
      %v3688 = vsel %vm252, %v3584, 0
      %v3691 = vsel %vm252, %v3585, 0
      %v3694 = vsel %vm252, %v3586, 0
      %v3697 = vsel %vm252, %v3587, 0
      %v3700 = vsel %vm252, %v3588, 0
      %3702 = vmatprep.subr.mxu0 0.0
      %3703 = vmatpush1.msra.mxu0 %v3590
      %3704 = vmatprep.subr.mxu0 0.0
      %3705 = vmatpush1.msra.mxu0 %v3591
      %3706 = vmatprep.subr.mxu0 0.0
      %3707 = vmatpush1.msra.mxu0 %v3592
      %3708 = vmatprep.subr.mxu0 0.0
      %3709 = vmatpush1.msra.mxu0 %v3593
      %3710 = vmatprep.subr.mxu0 0.0
      %3711 = vmatpush1.msra.mxu0 0.0
      %3712 = vmatprep.subr.mxu0 0.0
      %3713 = vmatpush1.msra.mxu0 0.0
      %3714 = vmatprep.subr.mxu0 0.0
      %3715 = vmatpush1.msra.mxu0 0.0
      %3716 = vmatprep.subr.mxu0 0.0
      %3717 = vmatpush1.msra.mxu0 0.0
      %3718 = vmatprep.subr.mxu0 0.0
      %3719 = vmatpush1.msra.mxu0 0.0
      %3720 = vmatprep.subr.mxu0 0.0
      %3721 = vmatpush1.msra.mxu0 0.0
      %3722 = vmatprep.subr.mxu0 0.0
      %3723 = vmatpush1.msra.mxu0 0.0
      %3724 = vmatprep.subr.mxu0 0.0
      %3725 = vmatpush1.msra.mxu0 0.0
      %3726 = vmatprep.subr.mxu0 0.0
      %3727 = vmatpush1.msra.mxu0 0.0
      %3728 = vmatprep.subr.mxu0 0.0
      %3729 = vmatpush1.msra.mxu0 0.0
      %3730 = vmatprep.subr.mxu0 0.0
      %3731 = vmatpush1.msra.mxu0 0.0
      %3732 = vmatprep.subr.mxu0 0.0
      %3733 = vmatpush1.msra.mxu0 0.0
      %3734 = vmatprep.subr.mxu0 0.0
      %3735 = vmatpush1.msra.mxu0 0.0
      %3736 = vmatprep.subr.mxu0 0.0
      %3737 = vmatpush1.msra.mxu0 0.0
      %3738 = vmatprep.subr.mxu0 0.0
      %3739 = vmatpush1.msra.mxu0 0.0
      %3740 = vmatprep.subr.mxu0 0.0
      %3741 = vmatpush1.msra.mxu0 0.0
      %3742 = vmatprep.subr.mxu0 0.0
      %3743 = vmatpush1.msra.mxu0 0.0
      %3744 = vmatprep.subr.mxu0 0.0
      %3745 = vmatpush1.msra.mxu0 0.0
      %3746 = vmatprep.subr.mxu0 0.0
      %3747 = vmatpush1.msra.mxu0 0.0
      %3748 = vmatprep.subr.mxu0 0.0
      %3749 = vmatpush1.msra.mxu0 0.0
      %3750 = vmatprep.subr.mxu0 0.0
      %3751 = vmatpush1.msra.mxu0 0.0
      %3752 = vmatprep.subr.mxu0 0.0
      %3753 = vmatpush1.msra.mxu0 0.0
      %3754 = vmatprep.subr.mxu0 0.0
      %3755 = vmatpush1.msra.mxu0 0.0
      %3756 = vmatprep.subr.mxu0 0.0
      %3757 = vmatpush1.msra.mxu0 0.0
      %3758 = vmatprep.subr.mxu0 0.0
      %3759 = vmatpush1.msra.mxu0 0.0
      %3760 = vmatprep.subr.mxu0 0.0
      %3761 = vmatpush1.msra.mxu0 0.0
      %3762 = vmatprep.subr.mxu0 0.0
      %3763 = vmatpush1.msra.mxu0 0.0
      %3764 = vmatprep.subr.mxu0 0.0
      %3765 = vmatpush1.msra.mxu0 0.0
      %3766 = vmatprep.mubr.f32.mxu0 0.0
      %3767 = vmatmul.mubr.f32.gmra.mrb[0].mxu0 %v3595
      %v3768 = vpop.f32.mrb[0].mxu0
      %v3769 = vadd.f32 0.0, %v3768
      %v3770 = vpop.f32.mrb[0].mxu0
      %3771 = vmatprep.mubr.f32.mxu0 0.0
      %3772 = vmatmul.mubr.f32.gmra.mrb[0].mxu0 %v3598
      %v3773 = vpop.f32.mrb[0].mxu0
      %v3774 = vadd.f32 0.0, %v3773
      %v3775 = vpop.f32.mrb[0].mxu0
      %3776 = vmatprep.mubr.f32.mxu0 0.0
      %3777 = vmatmul.mubr.f32.gmra.mrb[0].mxu0 %v3601
      %v3778 = vpop.f32.mrb[0].mxu0
      %v3779 = vadd.f32 0.0, %v3778
      %v3780 = vpop.f32.mrb[0].mxu0
      %3781 = vmatprep.mubr.f32.mxu0 0.0
      %3782 = vmatmul.mubr.f32.gmra.mrb[0].mxu0 %v3604
      %v3783 = vpop.f32.mrb[0].mxu0
      %v3784 = vadd.f32 0.0, %v3783
      %v3785 = vpop.f32.mrb[0].mxu0
      %3786 = vmatprep.mubr.f32.mxu0 0.0
      %3787 = vmatmul.mubr.f32.gmra.mrb[0].mxu0 %v3607
      %v3788 = vpop.f32.mrb[0].mxu0
      %v3789 = vadd.f32 0.0, %v3788
      %v3790 = vpop.f32.mrb[0].mxu0
      %3791 = vmatprep.mubr.f32.mxu0 0.0
      %3792 = vmatmul.mubr.f32.gmra.mrb[0].mxu0 %v3610
      %v3793 = vpop.f32.mrb[0].mxu0
      %v3794 = vadd.f32 0.0, %v3793
      %v3795 = vpop.f32.mrb[0].mxu0
      %3796 = vmatprep.mubr.f32.mxu0 0.0
      %3797 = vmatmul.mubr.f32.gmra.mrb[0].mxu0 %v3613
      %v3798 = vpop.f32.mrb[0].mxu0
      %v3799 = vadd.f32 0.0, %v3798
      %v3800 = vpop.f32.mrb[0].mxu0
      %3801 = vmatprep.mubr.f32.mxu0 0.0
      %3802 = vmatmul.mubr.f32.gmra.mrb[0].mxu0 %v3616
      %v3803 = vpop.f32.mrb[0].mxu0
      %v3804 = vadd.f32 0.0, %v3803
      %v3805 = vpop.f32.mrb[0].mxu0
      %3806 = vmatprep.mubr.f32.mxu0 0.0
      %3807 = vmatmul.mubr.f32.gmra.mrb[0].mxu0 %v3619
      %v3808 = vpop.f32.mrb[0].mxu0
      %v3809 = vadd.f32 0.0, %v3808
      %v3810 = vpop.f32.mrb[0].mxu0
      %3811 = vmatprep.mubr.f32.mxu0 0.0
      %3812 = vmatmul.mubr.f32.gmra.mrb[0].mxu0 %v3622
      %v3813 = vpop.f32.mrb[0].mxu0
      %v3814 = vadd.f32 0.0, %v3813
      %v3815 = vpop.f32.mrb[0].mxu0
      %3816 = vmatprep.mubr.f32.mxu0 0.0
      %3817 = vmatmul.mubr.f32.gmra.mrb[0].mxu0 %v3625
      %v3818 = vpop.f32.mrb[0].mxu0
      %v3819 = vadd.f32 0.0, %v3818
      %v3820 = vpop.f32.mrb[0].mxu0
      %3821 = vmatprep.mubr.f32.mxu0 0.0
      %3822 = vmatmul.mubr.f32.gmra.mrb[0].mxu0 %v3628
      %v3823 = vpop.f32.mrb[0].mxu0
      %v3824 = vadd.f32 0.0, %v3823
      %v3825 = vpop.f32.mrb[0].mxu0
      %3826 = vmatprep.mubr.f32.mxu0 0.0
      %3827 = vmatmul.mubr.f32.gmra.mrb[0].mxu0 %v3631
      %v3828 = vpop.f32.mrb[0].mxu0
      %v3829 = vadd.f32 0.0, %v3828
      %v3830 = vpop.f32.mrb[0].mxu0
      %3831 = vmatprep.mubr.f32.mxu0 0.0
      %3832 = vmatmul.mubr.f32.gmra.mrb[0].mxu0 %v3634
      %v3833 = vpop.f32.mrb[0].mxu0
      %v3834 = vadd.f32 0.0, %v3833
      %v3835 = vpop.f32.mrb[0].mxu0
      %3836 = vmatprep.mubr.f32.mxu0 0.0
      %3837 = vmatmul.mubr.f32.gmra.mrb[0].mxu0 %v3637
      %v3838 = vpop.f32.mrb[0].mxu0
      %v3839 = vadd.f32 0.0, %v3838
      %v3840 = vpop.f32.mrb[0].mxu0
      %3841 = vmatprep.mubr.f32.mxu0 0.0
      %3842 = vmatmul.mubr.f32.gmra.mrb[0].mxu0 %v3640
      %v3843 = vpop.f32.mrb[0].mxu0
      %v3844 = vadd.f32 0.0, %v3843
      %v3845 = vpop.f32.mrb[0].mxu0
      %3846 = vmatprep.mubr.f32.mxu0 0.0
      %3847 = vmatmul.mubr.f32.gmra.mrb[0].mxu0 %v3643
      %v3848 = vpop.f32.mrb[0].mxu0
      %v3849 = vadd.f32 0.0, %v3848
      %v3850 = vpop.f32.mrb[0].mxu0
      %3851 = vmatprep.mubr.f32.mxu0 0.0
      %3852 = vmatmul.mubr.f32.gmra.mrb[0].mxu0 %v3646
      %v3853 = vpop.f32.mrb[0].mxu0
      %v3854 = vadd.f32 0.0, %v3853
      %v3855 = vpop.f32.mrb[0].mxu0
      %3856 = vmatprep.mubr.f32.mxu0 0.0
      %3857 = vmatmul.mubr.f32.gmra.mrb[0].mxu0 %v3649
      %v3858 = vpop.f32.mrb[0].mxu0
      %v3859 = vadd.f32 0.0, %v3858
      %v3860 = vpop.f32.mrb[0].mxu0
      %3861 = vmatprep.mubr.f32.mxu0 0.0
      %3862 = vmatmul.mubr.f32.gmra.mrb[0].mxu0 %v3652
      %v3863 = vpop.f32.mrb[0].mxu0
      %v3864 = vadd.f32 0.0, %v3863
      %v3865 = vpop.f32.mrb[0].mxu0
      %3866 = vmatprep.mubr.f32.mxu0 0.0
      %3867 = vmatmul.mubr.f32.gmra.mrb[0].mxu0 %v3655
      %v3868 = vpop.f32.mrb[0].mxu0
      %v3869 = vadd.f32 0.0, %v3868
      %v3870 = vpop.f32.mrb[0].mxu0
      %3871 = vmatprep.mubr.f32.mxu0 0.0
      %3872 = vmatmul.mubr.f32.gmra.mrb[0].mxu0 %v3658
      %v3873 = vpop.f32.mrb[0].mxu0
      %v3874 = vadd.f32 0.0, %v3873
      %v3875 = vpop.f32.mrb[0].mxu0
      %3876 = vmatprep.mubr.f32.mxu0 0.0
      %3877 = vmatmul.mubr.f32.gmra.mrb[0].mxu0 %v3661
      %v3878 = vpop.f32.mrb[0].mxu0
      %v3879 = vadd.f32 0.0, %v3878
      %v3880 = vpop.f32.mrb[0].mxu0
      %3881 = vmatprep.mubr.f32.mxu0 0.0
      %3882 = vmatmul.mubr.f32.gmra.mrb[0].mxu0 %v3664
      %v3883 = vpop.f32.mrb[0].mxu0
      %v3884 = vadd.f32 0.0, %v3883
      %v3885 = vpop.f32.mrb[0].mxu0
      %3886 = vmatprep.mubr.f32.mxu0 0.0
      %3887 = vmatmul.mubr.f32.gmra.mrb[0].mxu0 %v3667
      %v3888 = vpop.f32.mrb[0].mxu0
      %v3889 = vadd.f32 0.0, %v3888
      %v3890 = vpop.f32.mrb[0].mxu0
      %3891 = vmatprep.mubr.f32.mxu0 0.0
      %3892 = vmatmul.mubr.f32.gmra.mrb[0].mxu0 %v3670
      %v3893 = vpop.f32.mrb[0].mxu0
      %v3894 = vadd.f32 0.0, %v3893
      %v3895 = vpop.f32.mrb[0].mxu0
      %3896 = vmatprep.mubr.f32.mxu0 0.0
      %3897 = vmatmul.mubr.f32.gmra.mrb[0].mxu0 %v3673
      %v3898 = vpop.f32.mrb[0].mxu0
      %v3899 = vadd.f32 0.0, %v3898
      %v3900 = vpop.f32.mrb[0].mxu0
      %3901 = vmatprep.mubr.f32.mxu0 0.0
      %3902 = vmatmul.mubr.f32.gmra.mrb[0].mxu0 %v3676
      %v3903 = vpop.f32.mrb[0].mxu0
      %v3904 = vadd.f32 0.0, %v3903
      %v3905 = vpop.f32.mrb[0].mxu0
      %3906 = vmatprep.mubr.f32.mxu0 0.0
      %3907 = vmatmul.mubr.f32.gmra.mrb[0].mxu0 %v3679
      %v3908 = vpop.f32.mrb[0].mxu0
      %v3909 = vadd.f32 0.0, %v3908
      %v3910 = vpop.f32.mrb[0].mxu0
      %3911 = vmatprep.mubr.f32.mxu0 0.0
      %3912 = vmatmul.mubr.f32.gmra.mrb[0].mxu0 %v3682
      %v3913 = vpop.f32.mrb[0].mxu0
      %v3914 = vadd.f32 0.0, %v3913
      %v3915 = vpop.f32.mrb[0].mxu0
      %3916 = vmatprep.mubr.f32.mxu0 0.0
      %3917 = vmatmul.mubr.f32.gmra.mrb[0].mxu0 %v3685
      %v3918 = vpop.f32.mrb[0].mxu0
      %v3919 = vadd.f32 0.0, %v3918
      %v3920 = vpop.f32.mrb[0].mxu0
      %3921 = vmatprep.mubr.f32.mxu0 0.0
      %3922 = vmatmul.mubr.f32.gmra.mrb[0].mxu0 %v3688
      %v3923 = vpop.f32.mrb[0].mxu0
      %v3924 = vadd.f32 0.0, %v3923
      %v3925 = vpop.f32.mrb[0].mxu0
      %3926 = vmatprep.mubr.f32.mxu0 0.0
      %3927 = vmatmul.mubr.f32.gmra.mrb[0].mxu0 %v3691
      %v3928 = vpop.f32.mrb[0].mxu0
      %v3929 = vadd.f32 0.0, %v3928
      %v3930 = vpop.f32.mrb[0].mxu0
      %3931 = vmatprep.mubr.f32.mxu0 0.0
      %3932 = vmatmul.mubr.f32.gmra.mrb[0].mxu0 %v3694
      %v3933 = vpop.f32.mrb[0].mxu0
      %v3934 = vadd.f32 0.0, %v3933
      %v3935 = vpop.f32.mrb[0].mxu0
      %3936 = vmatprep.mubr.f32.mxu0 0.0
      %3937 = vmatmul.mubr.f32.gmra.mrb[0].mxu0 %v3697
      %v3938 = vpop.f32.mrb[0].mxu0
      %v3939 = vadd.f32 0.0, %v3938
      %v3940 = vpop.f32.mrb[0].mxu0
      %3941 = vmatprep.mubr.f32.mxu0 0.0
      %3942 = vmatmul.mubr.f32.gmra.mrb[0].mxu0 %v3700
      %v3943 = vpop.f32.mrb[0].mxu0
      %v3944 = vadd.f32 0.0, %v3943
      %v3945 = vpop.f32.mrb[0].mxu0
      %3946 = vdwg.mxu0
      %v3947 = vadd.f32 %v3515, %v3769
      %v3948 = vadd.f32 %v3516, %v3774
      %v3949 = vadd.f32 %v3517, %v3779
      %v3950 = vadd.f32 %v3518, %v3784
      %v3951 = vadd.f32 %v3519, %v3789
      %v3952 = vadd.f32 %v3520, %v3794
      %v3953 = vadd.f32 %v3521, %v3799
      %v3954 = vadd.f32 %v3522, %v3804
      %v3955 = vadd.f32 %v3523, %v3809
      %v3956 = vadd.f32 %v3524, %v3814
      %v3957 = vadd.f32 %v3525, %v3819
      %v3958 = vadd.f32 %v3526, %v3824
      %v3959 = vadd.f32 %v3527, %v3829
      %v3960 = vadd.f32 %v3528, %v3834
      %v3961 = vadd.f32 %v3529, %v3839
      %v3962 = vadd.f32 %v3530, %v3844
      %v3963 = vadd.f32 %v3531, %v3849
      %v3964 = vadd.f32 %v3532, %v3854
      %v3965 = vadd.f32 %v3533, %v3859
      %v3966 = vadd.f32 %v3534, %v3864
      %v3967 = vadd.f32 %v3535, %v3869
      %v3968 = vadd.f32 %v3536, %v3874
      %v3969 = vadd.f32 %v3537, %v3879
      %v3970 = vadd.f32 %v3538, %v3884
      %v3971 = vadd.f32 %v3539, %v3889
      %v3972 = vadd.f32 %v3540, %v3894
      %v3973 = vadd.f32 %v3541, %v3899
      %v3974 = vadd.f32 %v3542, %v3904
      %v3975 = vadd.f32 %v3543, %v3909
      %v3976 = vadd.f32 %v3544, %v3914
      %v3977 = vadd.f32 %v3545, %v3919
      %v3978 = vadd.f32 %v3546, %v3924
      %v3979 = vadd.f32 %v3547, %v3929
      %v3980 = vadd.f32 %v3548, %v3934
      %v3981 = vadd.f32 %v3549, %v3939
      %v3982 = vadd.f32 %v3550, %v3944
      %vm3983 = vcmask 130048
      %3984 = vst.msk [vmem:[%s165] sm:$0xff] %vm3983, %v3947
      %3985 = vst.msk [vmem:[%s165 + $0x8] sm:$0xff] %vm3983, %v3948
      %3986 = vst.msk [vmem:[%s165 + $0x10] sm:$0xff] %vm3983, %v3949
      %3987 = vst.msk [vmem:[%s165 + $0x18] sm:$0xff] %vm3983, %v3950
      %3988 = vst.msk [vmem:[%s165 + $0x20] sm:$0xff] %vm3983, %v3951
      %3989 = vst.msk [vmem:[%s165 + $0x28] sm:$0xff] %vm3983, %v3952
      %3990 = vst.msk [vmem:[%s165 + $0x30] sm:$0xff] %vm3983, %v3953
      %3991 = vst.msk [vmem:[%s165 + $0x38] sm:$0xff] %vm3983, %v3954
      %3992 = vst.msk [vmem:[%s165 + $0x40] sm:$0xff] %vm3983, %v3955
      %3993 = vst.msk [vmem:[%s165 + $0x48] sm:$0xff] %vm3983, %v3956
      %3994 = vst.msk [vmem:[%s165 + $0x50] sm:$0xff] %vm3983, %v3957
      %3995 = vst.msk [vmem:[%s165 + $0x58] sm:$0xff] %vm3983, %v3958
      %3996 = vst.msk [vmem:[%s165 + $0x60] sm:$0xff] %vm3983, %v3959
      %3997 = vst.msk [vmem:[%s165 + $0x68] sm:$0xff] %vm3983, %v3960
      %3998 = vst.msk [vmem:[%s165 + $0x70] sm:$0xff] %vm3983, %v3961
      %3999 = vst.msk [vmem:[%s165 + $0x78] sm:$0xff] %vm3983, %v3962
      %4000 = vst.msk [vmem:[%s165 + $0x80] sm:$0xff] %vm3983, %v3963
      %4001 = vst.msk [vmem:[%s165 + $0x88] sm:$0xff] %vm3983, %v3964
      %4002 = vst.msk [vmem:[%s165 + $0x90] sm:$0xff] %vm3983, %v3965
      %4003 = vst.msk [vmem:[%s165 + $0x98] sm:$0xff] %vm3983, %v3966
      %4004 = vst.msk [vmem:[%s165 + $0xa0] sm:$0xff] %vm3983, %v3967
      %4005 = vst.msk [vmem:[%s165 + $0xa8] sm:$0xff] %vm3983, %v3968
      %4006 = vst.msk [vmem:[%s165 + $0xb0] sm:$0xff] %vm3983, %v3969
      %4007 = vst.msk [vmem:[%s165 + $0xb8] sm:$0xff] %vm3983, %v3970
      %4008 = vst.msk [vmem:[%s165 + $0xc0] sm:$0xff] %vm3983, %v3971
      %4009 = vst.msk [vmem:[%s165 + $0xc8] sm:$0xff] %vm3983, %v3972
      %4010 = vst.msk [vmem:[%s165 + $0xd0] sm:$0xff] %vm3983, %v3973
      %4011 = vst.msk [vmem:[%s165 + $0xd8] sm:$0xff] %vm3983, %v3974
      %4012 = vst.msk [vmem:[%s165 + $0xe0] sm:$0xff] %vm3983, %v3975
      %4013 = vst.msk [vmem:[%s165 + $0xe8] sm:$0xff] %vm3983, %v3976
      %4014 = vst.msk [vmem:[%s165 + $0xf0] sm:$0xff] %vm3983, %v3977
      %4015 = vst.msk [vmem:[%s165 + $0xf8] sm:$0xff] %vm3983, %v3978
      %4016 = vst.msk [vmem:[%s165 + $0x100] sm:$0xff] %vm3983, %v3979
      %4017 = vst.msk [vmem:[%s165 + $0x108] sm:$0xff] %vm3983, %v3980
      %4018 = vst.msk [vmem:[%s165 + $0x110] sm:$0xff] %vm3983, %v3981
      %4019 = vst.msk [vmem:[%s165 + $0x118] sm:$0xff] %vm3983, %v3982
      %s4020 = smul.u32 36, %s18
      %p4021 = scmp.lt.s32.totalorder %s17, 1
      %s4022 = scalar_select %p4021, %s17, 1
      %p4023 = scmp.lt.s32.totalorder %s4020, 35
      %s4024 = scalar_select %p4023, %s4020, 35
      %s4025 = smul.addr %s4022, 36
      %s4026 = sadd.s32 %s4024, %s4025
      %s4027 = smul.addr %s4026, 8
      %s4028 = scalar_lea.vmem %s2, %s4027
      // Predicated region
      $region29: #{downsample_forward.1} parent=27 // pred_check
        %p4029 = pneg %p92
      $region30: #{downsample_forward.1} parent=27 // pred_check_branch
        %4031 = sbr.rel (%p4029) target = $region32
      $region31: #{downsample_forward.1} parent=27 // pred_region
        %s4032 = smul.u32 36, %s18
      $region32: #{downsample_forward.1} parent=27 // pred_fallthru
        _
    $region28: #{downsample_forward.1} parent=5 // pred_fallthru
      _
    %p4033 = scmp.le.s32.totalorder 2, %s8
    // Predicated region
    $region33: #{downsample_forward.1} parent=5 // pred_check
      %p4034 = pneg %p4033
    $region34: #{downsample_forward.1} parent=5 // pred_check_branch
      %4036 = sbr.rel (%p4034) target = $region36
    $region35: #{downsample_forward.1} parent=5 // pred_region
      %s4037 = ssub.s32 %s8, 2
      // Predicated region
      $region37: #{downsample_forward.1} parent=35 // pred_check
        %p4038 = pneg %p98
      $region38: #{downsample_forward.1} parent=35 // pred_check_branch
        %4040 = sbr.rel (%p4038) target = $region40
      $region39: #{downsample_forward.1} parent=35 // pred_region
        %s4041 = smul.u32 36, %s20
        %p4042 = scmp.lt.s32.totalorder %s19, 1
        %s4043 = scalar_select %p4042, %s19, 1
        %p4044 = scmp.lt.s32.totalorder %s4041, 35
        %s4045 = scalar_select %p4044, %s4041, 35
        %s4046 = smul.addr %s4043, 36
        %s4047 = sadd.s32 %s4045, %s4046
        %s4048 = smul.addr %s4047, 8
        %s4049 = scalar_lea.vmem %s2, %s4048
      $region40: #{downsample_forward.1} parent=35 // pred_fallthru
        _
    $region36: #{downsample_forward.1} parent=5 // pred_fallthru
      _
  $region6: #{downsample_forward.1} parent=0 // loop_footer
    %s12 = sadd.s32 1, %s8
  $region7: #{downsample_forward.1} parent=0 // loop_footer_branch
    %7 = sbr.rel target = $region3
  $region8: #{downsample_forward.1} parent=0 // loop_exit
    _

</llo_original>
